<compile_context>
chip_gen: v7x
topology: tpu7x:2x2x1
jax: 0.10.0
libtpu: 0.0.40
codegen_flags: <defaults>
</compile_context>

<pallas_src>
import functools

import jax
import jax.numpy as jnp
import numpy as np
from jax.experimental import pallas as pl
from jax.experimental.pallas import tpu as pltpu


def _round_up(x, m):
    return (x + m - 1) // m * m


def _permute_gate_cols(w):
    """Reorder last-dim gate blocks from PyTorch [i, f, g, o] to kernel order [f, i, o, g]."""
    i, f, g, o = jnp.split(w, 4, axis=-1)
    return jnp.concatenate([f, i, o, g], axis=-1)


# ------------------------------------------------------------------
# One-time parameter preparation (OUT of the per-call hot path)
# ------------------------------------------------------------------
def prepare_params(lstm_params, fc_w, fc_b):
    """Transpose, gate-permute, combine biases, pad FC and cast MXU operands to bf16. Run once."""
    O = fc_w.shape[0]
    Op = _round_up(O, 128)
    prepped = []
    for (w_ih, w_hh, b_ih, b_hh) in lstm_params:
        prepped.append(_permute_gate_cols(jnp.transpose(w_ih)).astype(jnp.bfloat16))  # (D_l, 4H)
        prepped.append(_permute_gate_cols(jnp.transpose(w_hh)).astype(jnp.bfloat16))  # (H,   4H)
        prepped.append(_permute_gate_cols((b_ih + b_hh)[None, :]).astype(jnp.float32))  # (1, 4H)
    prepped.append(
        jnp.pad(jnp.transpose(fc_w), ((0, 0), (0, Op - O))).astype(jnp.bfloat16))      # (H, Op)
    prepped.append(jnp.pad(fc_b, (0, Op - O)).astype(jnp.float32)[None, :])             # (1, Op)
    return tuple(prepped)


# ------------------------------------------------------------------
# Fused Pallas kernel: num_layers x LSTM + final Linear, fully VMEM-resident
# ------------------------------------------------------------------
def _make_fused_lstm_fc_kernel(num_layers, seq_len, batch_pad, hidden):
    T, Bp, H = seq_len, batch_pad, hidden
    G4 = 4 * H

    def kernel(*refs):
        # refs = [x_flat, (wih_T, whh_T, b) * num_layers, fc_w_T, fc_b, out]
        x_ref = refs[0]
        fcw_ref = refs[1 + 3 * num_layers]          # (H, Op) bf16
        fcb_ref = refs[2 + 3 * num_layers]          # (1, Op) f32
        o_ref = refs[3 + 3 * num_layers]            # (Bp, Op) f32

        # Hoisted lane mask (JAX does not CSE broadcast_in_dim across the unrolled loops):
        # tanh on the g block (lanes 3H:4H in the permuted [f,i,o,g] layout), sigmoid elsewhere.
        lane = jax.lax.broadcasted_iota(jnp.int32, (Bp, G4), 1)
        g_mask = lane >= 3 * H

        xs = x_ref[...].astype(jnp.bfloat16)        # (T*Bp, D0) MXU operand for layer 0
        h_bf = None
        for layer in range(num_layers):             # static layer loop
            wih = refs[1 + 3 * layer][...]          # (D_l, 4H) bf16 == W_ih^T (gate-permuted)
            whh = refs[2 + 3 * layer][...]          # (H,   4H) bf16 == W_hh^T (gate-permuted)
            b = refs[3 + 3 * layer][...]            # (1,   4H) f32 == b_ih + b_hh (permuted)

            # Batched input projection for all T timesteps at once (one MXU matmul), f32 accum.
            xp = jnp.dot(xs, wih, preferred_element_type=jnp.float32) + b   # (T*Bp, 4H) f32

            h_bf = jnp.zeros((Bp, H), jnp.bfloat16)
            c = jnp.zeros((Bp, G4), jnp.float32)    # cell state lives in lane block 0
            hs = []
            for t in range(T):                      # static unroll: T small & fixed
                # gate pre-activations, permuted block layout: [f | i | o | g]
                gates = xp[t * Bp:(t + 1) * Bp, :] + jnp.dot(
                    h_bf, whh, preferred_element_type=jnp.float32)          # (Bp, 4H) f32
                # Two full-vreg EUP pushes + per-lane select (no misaligned gate slices).
                act = jnp.where(g_mask, jnp.tanh(gates), jax.nn.sigmoid(gates))
                # blocks of act: [F, I, O, G]
                r64 = pltpu.roll(act, 2 * H, 1)     # blocks: [O, G, F, I] (64-roll: self-inverse)
                # act*r64 blocks: [F*O, I*G, O*F, G*I]; a 32-lane roll (either direction) puts
                # the I*G product into block 0.
                ig = pltpu.roll(act * r64, H, 1)
                c = act * c + ig                    # block 0: f*c + i*g   (others: bounded junk)
                h_full = r64 * jnp.tanh(c)          # block 0: o*tanh(c)
                h_f32 = h_full[:, :H]               # offset-0 narrow slice only
                h_bf = h_f32.astype(jnp.bfloat16)   # MXU operand for the next recurrent dot
                if layer < num_layers - 1:
                    hs.append(h_f32)                # vreg-resident stash (no VMEM scratch stores)
            if layer < num_layers - 1:
                # Next layer's batched-projection input, kept on-chip.
                xs = jnp.concatenate(hs, axis=0).astype(jnp.bfloat16)       # (T*Bp, H)

        # Fused final Linear on the last timestep's hidden state (lane-dense padded output).
        logits = jnp.dot(h_bf, fcw_ref[...],
                         preferred_element_type=jnp.float32) + fcb_ref[...]
        o_ref[...] = logits.astype(o_ref.dtype)

    return kernel


# ------------------------------------------------------------------
# Jitted wrapper: one pallas_call per forward pass (weights already prepped)
# ------------------------------------------------------------------
@functools.partial(jax.jit, static_argnames=("output_dim",))
def lstm_classifier_forward(x, prepped, *, output_dim):
    """x: (B, T, feature) batch_first, like the PyTorch module. Returns (B, output_dim)."""
    B, T, D = x.shape
    num_layers = (len(prepped) - 2) // 3
    H = prepped[1].shape[0]
    Op = prepped[-2].shape[1]
    Bp = _round_up(B, 8)       # sublane-dense batch

    # time-major, batch-padded, flattened to 2D -> every matmul is (T*Bp, .) @ (., 4H)
    x_t = jnp.transpose(x, (1, 0, 2))                      # (T, B, D)
    x_t = jnp.pad(x_t, ((0, 0), (0, Bp - B), (0, 0)))      # (T, Bp, D)
    x_flat = x_t.reshape(T * Bp, D).astype(jnp.float32)

    # Advisory cost estimate for XLA's scheduler (all static Python ints).
    flops = 0
    d_in = D
    for _ in range(num_layers):
        flops += 2 * (T * Bp) * d_in * (4 * H)     # batched input projection
        flops += 2 * Bp * H * (4 * H) * T          # serial recurrent dots
        d_in = H
    flops += 2 * Bp * H * Op                       # final FC
    transcendentals = num_layers * T * 3 * Bp * 4 * H
    bytes_accessed = int(x_flat.size * 4 + Bp * Op * 4
                         + sum(int(p.size) * p.dtype.itemsize for p in prepped))

    n_in = 1 + len(prepped)
    out = pl.pallas_call(
        _make_fused_lstm_fc_kernel(num_layers, T, Bp, H),
        out_shape=jax.ShapeDtypeStruct((Bp, Op), jnp.float32),
        in_specs=[pl.BlockSpec(memory_space=pltpu.MemorySpace.VMEM)] * n_in,
        out_specs=pl.BlockSpec(memory_space=pltpu.MemorySpace.VMEM),
        cost_estimate=pl.CostEstimate(flops=int(flops),
                                      transcendentals=int(transcendentals),
                                      bytes_accessed=bytes_accessed),
        # NOTE(v7x): gridless call -> one TensorCore. If batch grows, add a batch-tile grid
        # axis with dimension_semantics=("parallel",) to use the second TC.
    )(x_flat, *prepped)
    return out[:B, :output_dim]


# ------------------------------------------------------------------
# Pure-JAX f32 reference (for correctness check)
# ------------------------------------------------------------------
def lstm_classifier_ref(x, lstm_params, fc_w, fc_b):
    h = x
    for (w_ih, w_hh, b_ih, b_hh) in lstm_params:
        B, T, D = h.shape
        H = w_hh.shape[1]

        def step(carry, xt):
            hp, cp = carry
            gates = xt @ w_ih.T + hp @ w_hh.T + b_ih + b_hh
            i, f, g, o = jnp.split(gates, 4, axis=-1)
            i, f, o = jax.nn.sigmoid(i), jax.nn.sigmoid(f), jax.nn.sigmoid(o)
            g = jnp.tanh(g)
            c = f * cp + i * g
            hh = o * jnp.tanh(c)
            return (hh, c), hh

        init = (jnp.zeros((B, H), jnp.float32), jnp.zeros((B, H), jnp.float32))
        _, ys = jax.lax.scan(step, init, jnp.transpose(h, (1, 0, 2)))
        h = jnp.transpose(ys, (1, 0, 2))
    return h[:, -1, :] @ fc_w.T + fc_b


# ------------------------------------------------------------------
# Main
# ------------------------------------------------------------------
if __name__ == "__main__":
    # Small shapes consistent with the module's forward.
    BATCH, SEQ, FEATURE = 2, 8, 16
    HIDDEN, NUM_LAYERS, OUTPUT_DIM = 32, 4, 2

    key = jax.random.PRNGKey(0)
    k_lim = 1.0 / np.sqrt(HIDDEN)

    lstm_params = []
    for layer in range(NUM_LAYERS):
        d_in = FEATURE if layer == 0 else HIDDEN
        key, k1, k2, k3, k4 = jax.random.split(key, 5)
        w_ih = jax.random.uniform(k1, (4 * HIDDEN, d_in), jnp.float32, -k_lim, k_lim)
        w_hh = jax.random.uniform(k2, (4 * HIDDEN, HIDDEN), jnp.float32, -k_lim, k_lim)
        b_ih = jax.random.uniform(k3, (4 * HIDDEN,), jnp.float32, -k_lim, k_lim)
        b_hh = jax.random.uniform(k4, (4 * HIDDEN,), jnp.float32, -k_lim, k_lim)
        lstm_params.append((w_ih, w_hh, b_ih, b_hh))

    key, k5, k6, kx = jax.random.split(key, 4)
    fc_w = jax.random.uniform(k5, (OUTPUT_DIM, HIDDEN), jnp.float32, -k_lim, k_lim)
    fc_b = jax.random.uniform(k6, (OUTPUT_DIM,), jnp.float32, -k_lim, k_lim)

    x = jax.random.normal(kx, (BATCH, SEQ, FEATURE), jnp.float32)

    # One-time weight prep (transposes / gate permutation / bf16 cast / FC pad).
    prepped = prepare_params(lstm_params, fc_w, fc_b)

    out = lstm_classifier_forward(x, prepped, output_dim=OUTPUT_DIM)
    out = jax.block_until_ready(out)

    ref = jax.block_until_ready(lstm_classifier_ref(x, lstm_params, fc_w, fc_b))
    assert out.shape == (BATCH, OUTPUT_DIM), out.shape
    # bf16 MXU operands with f32 accumulation: tolerance loosened vs. the pure-f32 check.
    np.testing.assert_allclose(np.asarray(out), np.asarray(ref), rtol=2e-2, atol=2e-2)

    print("KERNEL_OK")
</pallas_src>

<mosaic_0001>
module attributes {stable_mosaic.version = 11 : i64} {
  func.func @kernel(%arg0: memref<64x16xf32, #tpu.memory_space<vmem>>, %arg1: memref<16x128xbf16, #tpu.memory_space<vmem>>, %arg2: memref<32x128xbf16, #tpu.memory_space<vmem>>, %arg3: memref<1x128xf32, #tpu.memory_space<vmem>>, %arg4: memref<32x128xbf16, #tpu.memory_space<vmem>>, %arg5: memref<32x128xbf16, #tpu.memory_space<vmem>>, %arg6: memref<1x128xf32, #tpu.memory_space<vmem>>, %arg7: memref<32x128xbf16, #tpu.memory_space<vmem>>, %arg8: memref<32x128xbf16, #tpu.memory_space<vmem>>, %arg9: memref<1x128xf32, #tpu.memory_space<vmem>>, %arg10: memref<32x128xbf16, #tpu.memory_space<vmem>>, %arg11: memref<32x128xbf16, #tpu.memory_space<vmem>>, %arg12: memref<1x128xf32, #tpu.memory_space<vmem>>, %arg13: memref<32x128xbf16, #tpu.memory_space<vmem>>, %arg14: memref<1x128xf32, #tpu.memory_space<vmem>>, %arg15: memref<8x128xf32, #tpu.memory_space<vmem>>) attributes {dimension_semantics = [], scalar_prefetch = 0 : i64, scratch_operands = 0 : i64, tpu.core_type = #tpu.core_type<tc>} {
    %0 = tpu.iota {dimensions = array<i32: 1>} : vector<8x128xi32>
    %c96_i32 = arith.constant 96 : i32
    %1 = vector.broadcast %c96_i32 : i32 to vector<8x128xi32>
    %2 = arith.cmpi sge, %0, %1 : vector<8x128xi32>
    %c0 = arith.constant 0 : index
    %c0_0 = arith.constant 0 : index
    %3 = vector.load %arg0[%c0, %c0_0] : memref<64x16xf32, #tpu.memory_space<vmem>>, vector<64x16xf32>
    %4 = arith.truncf %3 : vector<64x16xf32> to vector<64x16xbf16>
    %c0_1 = arith.constant 0 : index
    %c0_2 = arith.constant 0 : index
    %5 = vector.load %arg1[%c0_1, %c0_2] : memref<16x128xbf16, #tpu.memory_space<vmem>>, vector<16x128xbf16>
    %c0_3 = arith.constant 0 : index
    %c0_4 = arith.constant 0 : index
    %6 = vector.load %arg2[%c0_3, %c0_4] : memref<32x128xbf16, #tpu.memory_space<vmem>>, vector<32x128xbf16>
    %c0_5 = arith.constant 0 : index
    %c0_6 = arith.constant 0 : index
    %7 = vector.load %arg3[%c0_5, %c0_6] : memref<1x128xf32, #tpu.memory_space<vmem>>, vector<1x128xf32>
    %cst = arith.constant dense<0.000000e+00> : vector<64x128xf32>
    %8 = tpu.matmul %4, %5, %cst {dimension_numbers = #tpu.dot_dimension_numbers<[1], [0], [0], [1], [0, 0, 1, 1], [], []>} : vector<64x16xbf16>, vector<16x128xbf16>, vector<64x128xf32> -> vector<64x128xf32>
    %9 = vector.broadcast %7 : vector<1x128xf32> to vector<64x128xf32>
    %10 = arith.addf %8, %9 : vector<64x128xf32>
    %cst_7 = arith.constant 0.000000e+00 : bf16
    %11 = vector.broadcast %cst_7 : bf16 to vector<8x32xbf16>
    %cst_8 = arith.constant 0.000000e+00 : f32
    %12 = vector.broadcast %cst_8 : f32 to vector<8x128xf32>
    %13 = vector.extract_strided_slice %10 {offsets = [0, 0], sizes = [8, 128], strides = [1, 1]} : vector<64x128xf32> to vector<8x128xf32>
    %cst_9 = arith.constant dense<0.000000e+00> : vector<8x128xf32>
    %14 = tpu.matmul %11, %6, %cst_9 {dimension_numbers = #tpu.dot_dimension_numbers<[1], [0], [0], [1], [0, 0, 1, 1], [], []>} : vector<8x32xbf16>, vector<32x128xbf16>, vector<8x128xf32> -> vector<8x128xf32>
    %15 = arith.addf %13, %14 : vector<8x128xf32>
    %16 = math.tanh %15 : vector<8x128xf32>
    %17 = arith.negf %15 : vector<8x128xf32>
    %18 = math.exp %17 : vector<8x128xf32>
    %cst_10 = arith.constant 1.000000e+00 : f32
    %19 = vector.broadcast %cst_10 : f32 to vector<8x128xf32>
    %20 = arith.addf %19, %18 : vector<8x128xf32>
    %21 = arith.divf %19, %20 : vector<8x128xf32>
    %22 = arith.select %2, %16, %21 : vector<8x128xi1>, vector<8x128xf32>
    %c64_i32 = arith.constant 64 : i32
    %23 = tpu.dynamic_rotate %22 by %c64_i32 dim 1 : vector<8x128xf32>, i32 -> vector<8x128xf32>
    %24 = arith.mulf %22, %23 : vector<8x128xf32>
    %c32_i32 = arith.constant 32 : i32
    %25 = tpu.dynamic_rotate %24 by %c32_i32 dim 1 : vector<8x128xf32>, i32 -> vector<8x128xf32>
    %26 = arith.mulf %22, %12 : vector<8x128xf32>
    %27 = arith.addf %26, %25 : vector<8x128xf32>
    %28 = math.tanh %27 : vector<8x128xf32>
    %29 = arith.mulf %23, %28 : vector<8x128xf32>
    %30 = vector.extract_strided_slice %29 {offsets = [0, 0], sizes = [8, 32], strides = [1, 1]} : vector<8x128xf32> to vector<8x32xf32>
    %31 = arith.truncf %30 : vector<8x32xf32> to vector<8x32xbf16>
    %32 = vector.extract_strided_slice %10 {offsets = [8, 0], sizes = [8, 128], strides = [1, 1]} : vector<64x128xf32> to vector<8x128xf32>
    %cst_11 = arith.constant dense<0.000000e+00> : vector<8x128xf32>
    %33 = tpu.matmul %31, %6, %cst_11 {dimension_numbers = #tpu.dot_dimension_numbers<[1], [0], [0], [1], [0, 0, 1, 1], [], []>} : vector<8x32xbf16>, vector<32x128xbf16>, vector<8x128xf32> -> vector<8x128xf32>
    %34 = arith.addf %32, %33 : vector<8x128xf32>
    %35 = math.tanh %34 : vector<8x128xf32>
    %36 = arith.negf %34 : vector<8x128xf32>
    %37 = math.exp %36 : vector<8x128xf32>
    %cst_12 = arith.constant 1.000000e+00 : f32
    %38 = vector.broadcast %cst_12 : f32 to vector<8x128xf32>
    %39 = arith.addf %38, %37 : vector<8x128xf32>
    %40 = arith.divf %38, %39 : vector<8x128xf32>
    %41 = arith.select %2, %35, %40 : vector<8x128xi1>, vector<8x128xf32>
    %c64_i32_13 = arith.constant 64 : i32
    %42 = tpu.dynamic_rotate %41 by %c64_i32_13 dim 1 : vector<8x128xf32>, i32 -> vector<8x128xf32>
    %43 = arith.mulf %41, %42 : vector<8x128xf32>
    %c32_i32_14 = arith.constant 32 : i32
    %44 = tpu.dynamic_rotate %43 by %c32_i32_14 dim 1 : vector<8x128xf32>, i32 -> vector<8x128xf32>
    %45 = arith.mulf %41, %27 : vector<8x128xf32>
    %46 = arith.addf %45, %44 : vector<8x128xf32>
    %47 = math.tanh %46 : vector<8x128xf32>
    %48 = arith.mulf %42, %47 : vector<8x128xf32>
    %49 = vector.extract_strided_slice %48 {offsets = [0, 0], sizes = [8, 32], strides = [1, 1]} : vector<8x128xf32> to vector<8x32xf32>
    %50 = arith.truncf %49 : vector<8x32xf32> to vector<8x32xbf16>
    %51 = vector.extract_strided_slice %10 {offsets = [16, 0], sizes = [8, 128], strides = [1, 1]} : vector<64x128xf32> to vector<8x128xf32>
    %cst_15 = arith.constant dense<0.000000e+00> : vector<8x128xf32>
    %52 = tpu.matmul %50, %6, %cst_15 {dimension_numbers = #tpu.dot_dimension_numbers<[1], [0], [0], [1], [0, 0, 1, 1], [], []>} : vector<8x32xbf16>, vector<32x128xbf16>, vector<8x128xf32> -> vector<8x128xf32>
    %53 = arith.addf %51, %52 : vector<8x128xf32>
    %54 = math.tanh %53 : vector<8x128xf32>
    %55 = arith.negf %53 : vector<8x128xf32>
    %56 = math.exp %55 : vector<8x128xf32>
    %cst_16 = arith.constant 1.000000e+00 : f32
    %57 = vector.broadcast %cst_16 : f32 to vector<8x128xf32>
    %58 = arith.addf %57, %56 : vector<8x128xf32>
    %59 = arith.divf %57, %58 : vector<8x128xf32>
    %60 = arith.select %2, %54, %59 : vector<8x128xi1>, vector<8x128xf32>
    %c64_i32_17 = arith.constant 64 : i32
    %61 = tpu.dynamic_rotate %60 by %c64_i32_17 dim 1 : vector<8x128xf32>, i32 -> vector<8x128xf32>
    %62 = arith.mulf %60, %61 : vector<8x128xf32>
    %c32_i32_18 = arith.constant 32 : i32
    %63 = tpu.dynamic_rotate %62 by %c32_i32_18 dim 1 : vector<8x128xf32>, i32 -> vector<8x128xf32>
    %64 = arith.mulf %60, %46 : vector<8x128xf32>
    %65 = arith.addf %64, %63 : vector<8x128xf32>
    %66 = math.tanh %65 : vector<8x128xf32>
    %67 = arith.mulf %61, %66 : vector<8x128xf32>
    %68 = vector.extract_strided_slice %67 {offsets = [0, 0], sizes = [8, 32], strides = [1, 1]} : vector<8x128xf32> to vector<8x32xf32>
    %69 = arith.truncf %68 : vector<8x32xf32> to vector<8x32xbf16>
    %70 = vector.extract_strided_slice %10 {offsets = [24, 0], sizes = [8, 128], strides = [1, 1]} : vector<64x128xf32> to vector<8x128xf32>
    %cst_19 = arith.constant dense<0.000000e+00> : vector<8x128xf32>
    %71 = tpu.matmul %69, %6, %cst_19 {dimension_numbers = #tpu.dot_dimension_numbers<[1], [0], [0], [1], [0, 0, 1, 1], [], []>} : vector<8x32xbf16>, vector<32x128xbf16>, vector<8x128xf32> -> vector<8x128xf32>
    %72 = arith.addf %70, %71 : vector<8x128xf32>
    %73 = math.tanh %72 : vector<8x128xf32>
    %74 = arith.negf %72 : vector<8x128xf32>
    %75 = math.exp %74 : vector<8x128xf32>
    %cst_20 = arith.constant 1.000000e+00 : f32
    %76 = vector.broadcast %cst_20 : f32 to vector<8x128xf32>
    %77 = arith.addf %76, %75 : vector<8x128xf32>
    %78 = arith.divf %76, %77 : vector<8x128xf32>
    %79 = arith.select %2, %73, %78 : vector<8x128xi1>, vector<8x128xf32>
    %c64_i32_21 = arith.constant 64 : i32
    %80 = tpu.dynamic_rotate %79 by %c64_i32_21 dim 1 : vector<8x128xf32>, i32 -> vector<8x128xf32>
    %81 = arith.mulf %79, %80 : vector<8x128xf32>
    %c32_i32_22 = arith.constant 32 : i32
    %82 = tpu.dynamic_rotate %81 by %c32_i32_22 dim 1 : vector<8x128xf32>, i32 -> vector<8x128xf32>
    %83 = arith.mulf %79, %65 : vector<8x128xf32>
    %84 = arith.addf %83, %82 : vector<8x128xf32>
    %85 = math.tanh %84 : vector<8x128xf32>
    %86 = arith.mulf %80, %85 : vector<8x128xf32>
    %87 = vector.extract_strided_slice %86 {offsets = [0, 0], sizes = [8, 32], strides = [1, 1]} : vector<8x128xf32> to vector<8x32xf32>
    %88 = arith.truncf %87 : vector<8x32xf32> to vector<8x32xbf16>
    %89 = vector.extract_strided_slice %10 {offsets = [32, 0], sizes = [8, 128], strides = [1, 1]} : vector<64x128xf32> to vector<8x128xf32>
    %cst_23 = arith.constant dense<0.000000e+00> : vector<8x128xf32>
    %90 = tpu.matmul %88, %6, %cst_23 {dimension_numbers = #tpu.dot_dimension_numbers<[1], [0], [0], [1], [0, 0, 1, 1], [], []>} : vector<8x32xbf16>, vector<32x128xbf16>, vector<8x128xf32> -> vector<8x128xf32>
    %91 = arith.addf %89, %90 : vector<8x128xf32>
    %92 = math.tanh %91 : vector<8x128xf32>
    %93 = arith.negf %91 : vector<8x128xf32>
    %94 = math.exp %93 : vector<8x128xf32>
    %cst_24 = arith.constant 1.000000e+00 : f32
    %95 = vector.broadcast %cst_24 : f32 to vector<8x128xf32>
    %96 = arith.addf %95, %94 : vector<8x128xf32>
    %97 = arith.divf %95, %96 : vector<8x128xf32>
    %98 = arith.select %2, %92, %97 : vector<8x128xi1>, vector<8x128xf32>
    %c64_i32_25 = arith.constant 64 : i32
    %99 = tpu.dynamic_rotate %98 by %c64_i32_25 dim 1 : vector<8x128xf32>, i32 -> vector<8x128xf32>
    %100 = arith.mulf %98, %99 : vector<8x128xf32>
    %c32_i32_26 = arith.constant 32 : i32
    %101 = tpu.dynamic_rotate %100 by %c32_i32_26 dim 1 : vector<8x128xf32>, i32 -> vector<8x128xf32>
    %102 = arith.mulf %98, %84 : vector<8x128xf32>
    %103 = arith.addf %102, %101 : vector<8x128xf32>
    %104 = math.tanh %103 : vector<8x128xf32>
    %105 = arith.mulf %99, %104 : vector<8x128xf32>
    %106 = vector.extract_strided_slice %105 {offsets = [0, 0], sizes = [8, 32], strides = [1, 1]} : vector<8x128xf32> to vector<8x32xf32>
    %107 = arith.truncf %106 : vector<8x32xf32> to vector<8x32xbf16>
    %108 = vector.extract_strided_slice %10 {offsets = [40, 0], sizes = [8, 128], strides = [1, 1]} : vector<64x128xf32> to vector<8x128xf32>
    %cst_27 = arith.constant dense<0.000000e+00> : vector<8x128xf32>
    %109 = tpu.matmul %107, %6, %cst_27 {dimension_numbers = #tpu.dot_dimension_numbers<[1], [0], [0], [1], [0, 0, 1, 1], [], []>} : vector<8x32xbf16>, vector<32x128xbf16>, vector<8x128xf32> -> vector<8x128xf32>
    %110 = arith.addf %108, %109 : vector<8x128xf32>
    %111 = math.tanh %110 : vector<8x128xf32>
    %112 = arith.negf %110 : vector<8x128xf32>
    %113 = math.exp %112 : vector<8x128xf32>
    %cst_28 = arith.constant 1.000000e+00 : f32
    %114 = vector.broadcast %cst_28 : f32 to vector<8x128xf32>
    %115 = arith.addf %114, %113 : vector<8x128xf32>
    %116 = arith.divf %114, %115 : vector<8x128xf32>
    %117 = arith.select %2, %111, %116 : vector<8x128xi1>, vector<8x128xf32>
    %c64_i32_29 = arith.constant 64 : i32
    %118 = tpu.dynamic_rotate %117 by %c64_i32_29 dim 1 : vector<8x128xf32>, i32 -> vector<8x128xf32>
    %119 = arith.mulf %117, %118 : vector<8x128xf32>
    %c32_i32_30 = arith.constant 32 : i32
    %120 = tpu.dynamic_rotate %119 by %c32_i32_30 dim 1 : vector<8x128xf32>, i32 -> vector<8x128xf32>
    %121 = arith.mulf %117, %103 : vector<8x128xf32>
    %122 = arith.addf %121, %120 : vector<8x128xf32>
    %123 = math.tanh %122 : vector<8x128xf32>
    %124 = arith.mulf %118, %123 : vector<8x128xf32>
    %125 = vector.extract_strided_slice %124 {offsets = [0, 0], sizes = [8, 32], strides = [1, 1]} : vector<8x128xf32> to vector<8x32xf32>
    %126 = arith.truncf %125 : vector<8x32xf32> to vector<8x32xbf16>
    %127 = vector.extract_strided_slice %10 {offsets = [48, 0], sizes = [8, 128], strides = [1, 1]} : vector<64x128xf32> to vector<8x128xf32>
    %cst_31 = arith.constant dense<0.000000e+00> : vector<8x128xf32>
    %128 = tpu.matmul %126, %6, %cst_31 {dimension_numbers = #tpu.dot_dimension_numbers<[1], [0], [0], [1], [0, 0, 1, 1], [], []>} : vector<8x32xbf16>, vector<32x128xbf16>, vector<8x128xf32> -> vector<8x128xf32>
    %129 = arith.addf %127, %128 : vector<8x128xf32>
    %130 = math.tanh %129 : vector<8x128xf32>
    %131 = arith.negf %129 : vector<8x128xf32>
    %132 = math.exp %131 : vector<8x128xf32>
    %cst_32 = arith.constant 1.000000e+00 : f32
    %133 = vector.broadcast %cst_32 : f32 to vector<8x128xf32>
    %134 = arith.addf %133, %132 : vector<8x128xf32>
    %135 = arith.divf %133, %134 : vector<8x128xf32>
    %136 = arith.select %2, %130, %135 : vector<8x128xi1>, vector<8x128xf32>
    %c64_i32_33 = arith.constant 64 : i32
    %137 = tpu.dynamic_rotate %136 by %c64_i32_33 dim 1 : vector<8x128xf32>, i32 -> vector<8x128xf32>
    %138 = arith.mulf %136, %137 : vector<8x128xf32>
    %c32_i32_34 = arith.constant 32 : i32
    %139 = tpu.dynamic_rotate %138 by %c32_i32_34 dim 1 : vector<8x128xf32>, i32 -> vector<8x128xf32>
    %140 = arith.mulf %136, %122 : vector<8x128xf32>
    %141 = arith.addf %140, %139 : vector<8x128xf32>
    %142 = math.tanh %141 : vector<8x128xf32>
    %143 = arith.mulf %137, %142 : vector<8x128xf32>
    %144 = vector.extract_strided_slice %143 {offsets = [0, 0], sizes = [8, 32], strides = [1, 1]} : vector<8x128xf32> to vector<8x32xf32>
    %145 = arith.truncf %144 : vector<8x32xf32> to vector<8x32xbf16>
    %146 = vector.extract_strided_slice %10 {offsets = [56, 0], sizes = [8, 128], strides = [1, 1]} : vector<64x128xf32> to vector<8x128xf32>
    %cst_35 = arith.constant dense<0.000000e+00> : vector<8x128xf32>
    %147 = tpu.matmul %145, %6, %cst_35 {dimension_numbers = #tpu.dot_dimension_numbers<[1], [0], [0], [1], [0, 0, 1, 1], [], []>} : vector<8x32xbf16>, vector<32x128xbf16>, vector<8x128xf32> -> vector<8x128xf32>
    %148 = arith.addf %146, %147 : vector<8x128xf32>
    %149 = math.tanh %148 : vector<8x128xf32>
    %150 = arith.negf %148 : vector<8x128xf32>
    %151 = math.exp %150 : vector<8x128xf32>
    %cst_36 = arith.constant 1.000000e+00 : f32
    %152 = vector.broadcast %cst_36 : f32 to vector<8x128xf32>
    %153 = arith.addf %152, %151 : vector<8x128xf32>
    %154 = arith.divf %152, %153 : vector<8x128xf32>
    %155 = arith.select %2, %149, %154 : vector<8x128xi1>, vector<8x128xf32>
    %c64_i32_37 = arith.constant 64 : i32
    %156 = tpu.dynamic_rotate %155 by %c64_i32_37 dim 1 : vector<8x128xf32>, i32 -> vector<8x128xf32>
    %157 = arith.mulf %155, %156 : vector<8x128xf32>
    %c32_i32_38 = arith.constant 32 : i32
    %158 = tpu.dynamic_rotate %157 by %c32_i32_38 dim 1 : vector<8x128xf32>, i32 -> vector<8x128xf32>
    %159 = arith.mulf %155, %141 : vector<8x128xf32>
    %160 = arith.addf %159, %158 : vector<8x128xf32>
    %161 = math.tanh %160 : vector<8x128xf32>
    %162 = arith.mulf %156, %161 : vector<8x128xf32>
    %163 = vector.extract_strided_slice %162 {offsets = [0, 0], sizes = [8, 32], strides = [1, 1]} : vector<8x128xf32> to vector<8x32xf32>
    %164 = tpu.concatenate %30, %49, %68, %87, %106, %125, %144, %163 in 0 : vector<8x32xf32>, vector<8x32xf32>, vector<8x32xf32>, vector<8x32xf32>, vector<8x32xf32>, vector<8x32xf32>, vector<8x32xf32>, vector<8x32xf32> -> vector<64x32xf32>
    %165 = arith.truncf %164 : vector<64x32xf32> to vector<64x32xbf16>
    %c0_39 = arith.constant 0 : index
    %c0_40 = arith.constant 0 : index
    %166 = vector.load %arg4[%c0_39, %c0_40] : memref<32x128xbf16, #tpu.memory_space<vmem>>, vector<32x128xbf16>
    %c0_41 = arith.constant 0 : index
    %c0_42 = arith.constant 0 : index
    %167 = vector.load %arg5[%c0_41, %c0_42] : memref<32x128xbf16, #tpu.memory_space<vmem>>, vector<32x128xbf16>
    %c0_43 = arith.constant 0 : index
    %c0_44 = arith.constant 0 : index
    %168 = vector.load %arg6[%c0_43, %c0_44] : memref<1x128xf32, #tpu.memory_space<vmem>>, vector<1x128xf32>
    %cst_45 = arith.constant dense<0.000000e+00> : vector<64x128xf32>
    %169 = tpu.matmul %165, %166, %cst_45 {dimension_numbers = #tpu.dot_dimension_numbers<[1], [0], [0], [1], [0, 0, 1, 1], [], []>} : vector<64x32xbf16>, vector<32x128xbf16>, vector<64x128xf32> -> vector<64x128xf32>
    %170 = vector.broadcast %168 : vector<1x128xf32> to vector<64x128xf32>
    %171 = arith.addf %169, %170 : vector<64x128xf32>
    %cst_46 = arith.constant 0.000000e+00 : bf16
    %172 = vector.broadcast %cst_46 : bf16 to vector<8x32xbf16>
    %cst_47 = arith.constant 0.000000e+00 : f32
    %173 = vector.broadcast %cst_47 : f32 to vector<8x128xf32>
    %174 = vector.extract_strided_slice %171 {offsets = [0, 0], sizes = [8, 128], strides = [1, 1]} : vector<64x128xf32> to vector<8x128xf32>
    %cst_48 = arith.constant dense<0.000000e+00> : vector<8x128xf32>
    %175 = tpu.matmul %172, %167, %cst_48 {dimension_numbers = #tpu.dot_dimension_numbers<[1], [0], [0], [1], [0, 0, 1, 1], [], []>} : vector<8x32xbf16>, vector<32x128xbf16>, vector<8x128xf32> -> vector<8x128xf32>
    %176 = arith.addf %174, %175 : vector<8x128xf32>
    %177 = math.tanh %176 : vector<8x128xf32>
    %178 = arith.negf %176 : vector<8x128xf32>
    %179 = math.exp %178 : vector<8x128xf32>
    %cst_49 = arith.constant 1.000000e+00 : f32
    %180 = vector.broadcast %cst_49 : f32 to vector<8x128xf32>
    %181 = arith.addf %180, %179 : vector<8x128xf32>
    %182 = arith.divf %180, %181 : vector<8x128xf32>
    %183 = arith.select %2, %177, %182 : vector<8x128xi1>, vector<8x128xf32>
    %c64_i32_50 = arith.constant 64 : i32
    %184 = tpu.dynamic_rotate %183 by %c64_i32_50 dim 1 : vector<8x128xf32>, i32 -> vector<8x128xf32>
    %185 = arith.mulf %183, %184 : vector<8x128xf32>
    %c32_i32_51 = arith.constant 32 : i32
    %186 = tpu.dynamic_rotate %185 by %c32_i32_51 dim 1 : vector<8x128xf32>, i32 -> vector<8x128xf32>
    %187 = arith.mulf %183, %173 : vector<8x128xf32>
    %188 = arith.addf %187, %186 : vector<8x128xf32>
    %189 = math.tanh %188 : vector<8x128xf32>
    %190 = arith.mulf %184, %189 : vector<8x128xf32>
    %191 = vector.extract_strided_slice %190 {offsets = [0, 0], sizes = [8, 32], strides = [1, 1]} : vector<8x128xf32> to vector<8x32xf32>
    %192 = arith.truncf %191 : vector<8x32xf32> to vector<8x32xbf16>
    %193 = vector.extract_strided_slice %171 {offsets = [8, 0], sizes = [8, 128], strides = [1, 1]} : vector<64x128xf32> to vector<8x128xf32>
    %cst_52 = arith.constant dense<0.000000e+00> : vector<8x128xf32>
    %194 = tpu.matmul %192, %167, %cst_52 {dimension_numbers = #tpu.dot_dimension_numbers<[1], [0], [0], [1], [0, 0, 1, 1], [], []>} : vector<8x32xbf16>, vector<32x128xbf16>, vector<8x128xf32> -> vector<8x128xf32>
    %195 = arith.addf %193, %194 : vector<8x128xf32>
    %196 = math.tanh %195 : vector<8x128xf32>
    %197 = arith.negf %195 : vector<8x128xf32>
    %198 = math.exp %197 : vector<8x128xf32>
    %cst_53 = arith.constant 1.000000e+00 : f32
    %199 = vector.broadcast %cst_53 : f32 to vector<8x128xf32>
    %200 = arith.addf %199, %198 : vector<8x128xf32>
    %201 = arith.divf %199, %200 : vector<8x128xf32>
    %202 = arith.select %2, %196, %201 : vector<8x128xi1>, vector<8x128xf32>
    %c64_i32_54 = arith.constant 64 : i32
    %203 = tpu.dynamic_rotate %202 by %c64_i32_54 dim 1 : vector<8x128xf32>, i32 -> vector<8x128xf32>
    %204 = arith.mulf %202, %203 : vector<8x128xf32>
    %c32_i32_55 = arith.constant 32 : i32
    %205 = tpu.dynamic_rotate %204 by %c32_i32_55 dim 1 : vector<8x128xf32>, i32 -> vector<8x128xf32>
    %206 = arith.mulf %202, %188 : vector<8x128xf32>
    %207 = arith.addf %206, %205 : vector<8x128xf32>
    %208 = math.tanh %207 : vector<8x128xf32>
    %209 = arith.mulf %203, %208 : vector<8x128xf32>
    %210 = vector.extract_strided_slice %209 {offsets = [0, 0], sizes = [8, 32], strides = [1, 1]} : vector<8x128xf32> to vector<8x32xf32>
    %211 = arith.truncf %210 : vector<8x32xf32> to vector<8x32xbf16>
    %212 = vector.extract_strided_slice %171 {offsets = [16, 0], sizes = [8, 128], strides = [1, 1]} : vector<64x128xf32> to vector<8x128xf32>
    %cst_56 = arith.constant dense<0.000000e+00> : vector<8x128xf32>
    %213 = tpu.matmul %211, %167, %cst_56 {dimension_numbers = #tpu.dot_dimension_numbers<[1], [0], [0], [1], [0, 0, 1, 1], [], []>} : vector<8x32xbf16>, vector<32x128xbf16>, vector<8x128xf32> -> vector<8x128xf32>
    %214 = arith.addf %212, %213 : vector<8x128xf32>
    %215 = math.tanh %214 : vector<8x128xf32>
    %216 = arith.negf %214 : vector<8x128xf32>
    %217 = math.exp %216 : vector<8x128xf32>
    %cst_57 = arith.constant 1.000000e+00 : f32
    %218 = vector.broadcast %cst_57 : f32 to vector<8x128xf32>
    %219 = arith.addf %218, %217 : vector<8x128xf32>
    %220 = arith.divf %218, %219 : vector<8x128xf32>
    %221 = arith.select %2, %215, %220 : vector<8x128xi1>, vector<8x128xf32>
    %c64_i32_58 = arith.constant 64 : i32
    %222 = tpu.dynamic_rotate %221 by %c64_i32_58 dim 1 : vector<8x128xf32>, i32 -> vector<8x128xf32>
    %223 = arith.mulf %221, %222 : vector<8x128xf32>
    %c32_i32_59 = arith.constant 32 : i32
    %224 = tpu.dynamic_rotate %223 by %c32_i32_59 dim 1 : vector<8x128xf32>, i32 -> vector<8x128xf32>
    %225 = arith.mulf %221, %207 : vector<8x128xf32>
    %226 = arith.addf %225, %224 : vector<8x128xf32>
    %227 = math.tanh %226 : vector<8x128xf32>
    %228 = arith.mulf %222, %227 : vector<8x128xf32>
    %229 = vector.extract_strided_slice %228 {offsets = [0, 0], sizes = [8, 32], strides = [1, 1]} : vector<8x128xf32> to vector<8x32xf32>
    %230 = arith.truncf %229 : vector<8x32xf32> to vector<8x32xbf16>
    %231 = vector.extract_strided_slice %171 {offsets = [24, 0], sizes = [8, 128], strides = [1, 1]} : vector<64x128xf32> to vector<8x128xf32>
    %cst_60 = arith.constant dense<0.000000e+00> : vector<8x128xf32>
    %232 = tpu.matmul %230, %167, %cst_60 {dimension_numbers = #tpu.dot_dimension_numbers<[1], [0], [0], [1], [0, 0, 1, 1], [], []>} : vector<8x32xbf16>, vector<32x128xbf16>, vector<8x128xf32> -> vector<8x128xf32>
    %233 = arith.addf %231, %232 : vector<8x128xf32>
    %234 = math.tanh %233 : vector<8x128xf32>
    %235 = arith.negf %233 : vector<8x128xf32>
    %236 = math.exp %235 : vector<8x128xf32>
    %cst_61 = arith.constant 1.000000e+00 : f32
    %237 = vector.broadcast %cst_61 : f32 to vector<8x128xf32>
    %238 = arith.addf %237, %236 : vector<8x128xf32>
    %239 = arith.divf %237, %238 : vector<8x128xf32>
    %240 = arith.select %2, %234, %239 : vector<8x128xi1>, vector<8x128xf32>
    %c64_i32_62 = arith.constant 64 : i32
    %241 = tpu.dynamic_rotate %240 by %c64_i32_62 dim 1 : vector<8x128xf32>, i32 -> vector<8x128xf32>
    %242 = arith.mulf %240, %241 : vector<8x128xf32>
    %c32_i32_63 = arith.constant 32 : i32
    %243 = tpu.dynamic_rotate %242 by %c32_i32_63 dim 1 : vector<8x128xf32>, i32 -> vector<8x128xf32>
    %244 = arith.mulf %240, %226 : vector<8x128xf32>
    %245 = arith.addf %244, %243 : vector<8x128xf32>
    %246 = math.tanh %245 : vector<8x128xf32>
    %247 = arith.mulf %241, %246 : vector<8x128xf32>
    %248 = vector.extract_strided_slice %247 {offsets = [0, 0], sizes = [8, 32], strides = [1, 1]} : vector<8x128xf32> to vector<8x32xf32>
    %249 = arith.truncf %248 : vector<8x32xf32> to vector<8x32xbf16>
    %250 = vector.extract_strided_slice %171 {offsets = [32, 0], sizes = [8, 128], strides = [1, 1]} : vector<64x128xf32> to vector<8x128xf32>
    %cst_64 = arith.constant dense<0.000000e+00> : vector<8x128xf32>
    %251 = tpu.matmul %249, %167, %cst_64 {dimension_numbers = #tpu.dot_dimension_numbers<[1], [0], [0], [1], [0, 0, 1, 1], [], []>} : vector<8x32xbf16>, vector<32x128xbf16>, vector<8x128xf32> -> vector<8x128xf32>
    %252 = arith.addf %250, %251 : vector<8x128xf32>
    %253 = math.tanh %252 : vector<8x128xf32>
    %254 = arith.negf %252 : vector<8x128xf32>
    %255 = math.exp %254 : vector<8x128xf32>
    %cst_65 = arith.constant 1.000000e+00 : f32
    %256 = vector.broadcast %cst_65 : f32 to vector<8x128xf32>
    %257 = arith.addf %256, %255 : vector<8x128xf32>
    %258 = arith.divf %256, %257 : vector<8x128xf32>
    %259 = arith.select %2, %253, %258 : vector<8x128xi1>, vector<8x128xf32>
    %c64_i32_66 = arith.constant 64 : i32
    %260 = tpu.dynamic_rotate %259 by %c64_i32_66 dim 1 : vector<8x128xf32>, i32 -> vector<8x128xf32>
    %261 = arith.mulf %259, %260 : vector<8x128xf32>
    %c32_i32_67 = arith.constant 32 : i32
    %262 = tpu.dynamic_rotate %261 by %c32_i32_67 dim 1 : vector<8x128xf32>, i32 -> vector<8x128xf32>
    %263 = arith.mulf %259, %245 : vector<8x128xf32>
    %264 = arith.addf %263, %262 : vector<8x128xf32>
    %265 = math.tanh %264 : vector<8x128xf32>
    %266 = arith.mulf %260, %265 : vector<8x128xf32>
    %267 = vector.extract_strided_slice %266 {offsets = [0, 0], sizes = [8, 32], strides = [1, 1]} : vector<8x128xf32> to vector<8x32xf32>
    %268 = arith.truncf %267 : vector<8x32xf32> to vector<8x32xbf16>
    %269 = vector.extract_strided_slice %171 {offsets = [40, 0], sizes = [8, 128], strides = [1, 1]} : vector<64x128xf32> to vector<8x128xf32>
    %cst_68 = arith.constant dense<0.000000e+00> : vector<8x128xf32>
    %270 = tpu.matmul %268, %167, %cst_68 {dimension_numbers = #tpu.dot_dimension_numbers<[1], [0], [0], [1], [0, 0, 1, 1], [], []>} : vector<8x32xbf16>, vector<32x128xbf16>, vector<8x128xf32> -> vector<8x128xf32>
    %271 = arith.addf %269, %270 : vector<8x128xf32>
    %272 = math.tanh %271 : vector<8x128xf32>
    %273 = arith.negf %271 : vector<8x128xf32>
    %274 = math.exp %273 : vector<8x128xf32>
    %cst_69 = arith.constant 1.000000e+00 : f32
    %275 = vector.broadcast %cst_69 : f32 to vector<8x128xf32>
    %276 = arith.addf %275, %274 : vector<8x128xf32>
    %277 = arith.divf %275, %276 : vector<8x128xf32>
    %278 = arith.select %2, %272, %277 : vector<8x128xi1>, vector<8x128xf32>
    %c64_i32_70 = arith.constant 64 : i32
    %279 = tpu.dynamic_rotate %278 by %c64_i32_70 dim 1 : vector<8x128xf32>, i32 -> vector<8x128xf32>
    %280 = arith.mulf %278, %279 : vector<8x128xf32>
    %c32_i32_71 = arith.constant 32 : i32
    %281 = tpu.dynamic_rotate %280 by %c32_i32_71 dim 1 : vector<8x128xf32>, i32 -> vector<8x128xf32>
    %282 = arith.mulf %278, %264 : vector<8x128xf32>
    %283 = arith.addf %282, %281 : vector<8x128xf32>
    %284 = math.tanh %283 : vector<8x128xf32>
    %285 = arith.mulf %279, %284 : vector<8x128xf32>
    %286 = vector.extract_strided_slice %285 {offsets = [0, 0], sizes = [8, 32], strides = [1, 1]} : vector<8x128xf32> to vector<8x32xf32>
    %287 = arith.truncf %286 : vector<8x32xf32> to vector<8x32xbf16>
    %288 = vector.extract_strided_slice %171 {offsets = [48, 0], sizes = [8, 128], strides = [1, 1]} : vector<64x128xf32> to vector<8x128xf32>
    %cst_72 = arith.constant dense<0.000000e+00> : vector<8x128xf32>
    %289 = tpu.matmul %287, %167, %cst_72 {dimension_numbers = #tpu.dot_dimension_numbers<[1], [0], [0], [1], [0, 0, 1, 1], [], []>} : vector<8x32xbf16>, vector<32x128xbf16>, vector<8x128xf32> -> vector<8x128xf32>
    %290 = arith.addf %288, %289 : vector<8x128xf32>
    %291 = math.tanh %290 : vector<8x128xf32>
    %292 = arith.negf %290 : vector<8x128xf32>
    %293 = math.exp %292 : vector<8x128xf32>
    %cst_73 = arith.constant 1.000000e+00 : f32
    %294 = vector.broadcast %cst_73 : f32 to vector<8x128xf32>
    %295 = arith.addf %294, %293 : vector<8x128xf32>
    %296 = arith.divf %294, %295 : vector<8x128xf32>
    %297 = arith.select %2, %291, %296 : vector<8x128xi1>, vector<8x128xf32>
    %c64_i32_74 = arith.constant 64 : i32
    %298 = tpu.dynamic_rotate %297 by %c64_i32_74 dim 1 : vector<8x128xf32>, i32 -> vector<8x128xf32>
    %299 = arith.mulf %297, %298 : vector<8x128xf32>
    %c32_i32_75 = arith.constant 32 : i32
    %300 = tpu.dynamic_rotate %299 by %c32_i32_75 dim 1 : vector<8x128xf32>, i32 -> vector<8x128xf32>
    %301 = arith.mulf %297, %283 : vector<8x128xf32>
    %302 = arith.addf %301, %300 : vector<8x128xf32>
    %303 = math.tanh %302 : vector<8x128xf32>
    %304 = arith.mulf %298, %303 : vector<8x128xf32>
    %305 = vector.extract_strided_slice %304 {offsets = [0, 0], sizes = [8, 32], strides = [1, 1]} : vector<8x128xf32> to vector<8x32xf32>
    %306 = arith.truncf %305 : vector<8x32xf32> to vector<8x32xbf16>
    %307 = vector.extract_strided_slice %171 {offsets = [56, 0], sizes = [8, 128], strides = [1, 1]} : vector<64x128xf32> to vector<8x128xf32>
    %cst_76 = arith.constant dense<0.000000e+00> : vector<8x128xf32>
    %308 = tpu.matmul %306, %167, %cst_76 {dimension_numbers = #tpu.dot_dimension_numbers<[1], [0], [0], [1], [0, 0, 1, 1], [], []>} : vector<8x32xbf16>, vector<32x128xbf16>, vector<8x128xf32> -> vector<8x128xf32>
    %309 = arith.addf %307, %308 : vector<8x128xf32>
    %310 = math.tanh %309 : vector<8x128xf32>
    %311 = arith.negf %309 : vector<8x128xf32>
    %312 = math.exp %311 : vector<8x128xf32>
    %cst_77 = arith.constant 1.000000e+00 : f32
    %313 = vector.broadcast %cst_77 : f32 to vector<8x128xf32>
    %314 = arith.addf %313, %312 : vector<8x128xf32>
    %315 = arith.divf %313, %314 : vector<8x128xf32>
    %316 = arith.select %2, %310, %315 : vector<8x128xi1>, vector<8x128xf32>
    %c64_i32_78 = arith.constant 64 : i32
    %317 = tpu.dynamic_rotate %316 by %c64_i32_78 dim 1 : vector<8x128xf32>, i32 -> vector<8x128xf32>
    %318 = arith.mulf %316, %317 : vector<8x128xf32>
    %c32_i32_79 = arith.constant 32 : i32
    %319 = tpu.dynamic_rotate %318 by %c32_i32_79 dim 1 : vector<8x128xf32>, i32 -> vector<8x128xf32>
    %320 = arith.mulf %316, %302 : vector<8x128xf32>
    %321 = arith.addf %320, %319 : vector<8x128xf32>
    %322 = math.tanh %321 : vector<8x128xf32>
    %323 = arith.mulf %317, %322 : vector<8x128xf32>
    %324 = vector.extract_strided_slice %323 {offsets = [0, 0], sizes = [8, 32], strides = [1, 1]} : vector<8x128xf32> to vector<8x32xf32>
    %325 = tpu.concatenate %191, %210, %229, %248, %267, %286, %305, %324 in 0 : vector<8x32xf32>, vector<8x32xf32>, vector<8x32xf32>, vector<8x32xf32>, vector<8x32xf32>, vector<8x32xf32>, vector<8x32xf32>, vector<8x32xf32> -> vector<64x32xf32>
    %326 = arith.truncf %325 : vector<64x32xf32> to vector<64x32xbf16>
    %c0_80 = arith.constant 0 : index
    %c0_81 = arith.constant 0 : index
    %327 = vector.load %arg7[%c0_80, %c0_81] : memref<32x128xbf16, #tpu.memory_space<vmem>>, vector<32x128xbf16>
    %c0_82 = arith.constant 0 : index
    %c0_83 = arith.constant 0 : index
    %328 = vector.load %arg8[%c0_82, %c0_83] : memref<32x128xbf16, #tpu.memory_space<vmem>>, vector<32x128xbf16>
    %c0_84 = arith.constant 0 : index
    %c0_85 = arith.constant 0 : index
    %329 = vector.load %arg9[%c0_84, %c0_85] : memref<1x128xf32, #tpu.memory_space<vmem>>, vector<1x128xf32>
    %cst_86 = arith.constant dense<0.000000e+00> : vector<64x128xf32>
    %330 = tpu.matmul %326, %327, %cst_86 {dimension_numbers = #tpu.dot_dimension_numbers<[1], [0], [0], [1], [0, 0, 1, 1], [], []>} : vector<64x32xbf16>, vector<32x128xbf16>, vector<64x128xf32> -> vector<64x128xf32>
    %331 = vector.broadcast %329 : vector<1x128xf32> to vector<64x128xf32>
    %332 = arith.addf %330, %331 : vector<64x128xf32>
    %cst_87 = arith.constant 0.000000e+00 : bf16
    %333 = vector.broadcast %cst_87 : bf16 to vector<8x32xbf16>
    %cst_88 = arith.constant 0.000000e+00 : f32
    %334 = vector.broadcast %cst_88 : f32 to vector<8x128xf32>
    %335 = vector.extract_strided_slice %332 {offsets = [0, 0], sizes = [8, 128], strides = [1, 1]} : vector<64x128xf32> to vector<8x128xf32>
    %cst_89 = arith.constant dense<0.000000e+00> : vector<8x128xf32>
    %336 = tpu.matmul %333, %328, %cst_89 {dimension_numbers = #tpu.dot_dimension_numbers<[1], [0], [0], [1], [0, 0, 1, 1], [], []>} : vector<8x32xbf16>, vector<32x128xbf16>, vector<8x128xf32> -> vector<8x128xf32>
    %337 = arith.addf %335, %336 : vector<8x128xf32>
    %338 = math.tanh %337 : vector<8x128xf32>
    %339 = arith.negf %337 : vector<8x128xf32>
    %340 = math.exp %339 : vector<8x128xf32>
    %cst_90 = arith.constant 1.000000e+00 : f32
    %341 = vector.broadcast %cst_90 : f32 to vector<8x128xf32>
    %342 = arith.addf %341, %340 : vector<8x128xf32>
    %343 = arith.divf %341, %342 : vector<8x128xf32>
    %344 = arith.select %2, %338, %343 : vector<8x128xi1>, vector<8x128xf32>
    %c64_i32_91 = arith.constant 64 : i32
    %345 = tpu.dynamic_rotate %344 by %c64_i32_91 dim 1 : vector<8x128xf32>, i32 -> vector<8x128xf32>
    %346 = arith.mulf %344, %345 : vector<8x128xf32>
    %c32_i32_92 = arith.constant 32 : i32
    %347 = tpu.dynamic_rotate %346 by %c32_i32_92 dim 1 : vector<8x128xf32>, i32 -> vector<8x128xf32>
    %348 = arith.mulf %344, %334 : vector<8x128xf32>
    %349 = arith.addf %348, %347 : vector<8x128xf32>
    %350 = math.tanh %349 : vector<8x128xf32>
    %351 = arith.mulf %345, %350 : vector<8x128xf32>
    %352 = vector.extract_strided_slice %351 {offsets = [0, 0], sizes = [8, 32], strides = [1, 1]} : vector<8x128xf32> to vector<8x32xf32>
    %353 = arith.truncf %352 : vector<8x32xf32> to vector<8x32xbf16>
    %354 = vector.extract_strided_slice %332 {offsets = [8, 0], sizes = [8, 128], strides = [1, 1]} : vector<64x128xf32> to vector<8x128xf32>
    %cst_93 = arith.constant dense<0.000000e+00> : vector<8x128xf32>
    %355 = tpu.matmul %353, %328, %cst_93 {dimension_numbers = #tpu.dot_dimension_numbers<[1], [0], [0], [1], [0, 0, 1, 1], [], []>} : vector<8x32xbf16>, vector<32x128xbf16>, vector<8x128xf32> -> vector<8x128xf32>
    %356 = arith.addf %354, %355 : vector<8x128xf32>
    %357 = math.tanh %356 : vector<8x128xf32>
    %358 = arith.negf %356 : vector<8x128xf32>
    %359 = math.exp %358 : vector<8x128xf32>
    %cst_94 = arith.constant 1.000000e+00 : f32
    %360 = vector.broadcast %cst_94 : f32 to vector<8x128xf32>
    %361 = arith.addf %360, %359 : vector<8x128xf32>
    %362 = arith.divf %360, %361 : vector<8x128xf32>
    %363 = arith.select %2, %357, %362 : vector<8x128xi1>, vector<8x128xf32>
    %c64_i32_95 = arith.constant 64 : i32
    %364 = tpu.dynamic_rotate %363 by %c64_i32_95 dim 1 : vector<8x128xf32>, i32 -> vector<8x128xf32>
    %365 = arith.mulf %363, %364 : vector<8x128xf32>
    %c32_i32_96 = arith.constant 32 : i32
    %366 = tpu.dynamic_rotate %365 by %c32_i32_96 dim 1 : vector<8x128xf32>, i32 -> vector<8x128xf32>
    %367 = arith.mulf %363, %349 : vector<8x128xf32>
    %368 = arith.addf %367, %366 : vector<8x128xf32>
    %369 = math.tanh %368 : vector<8x128xf32>
    %370 = arith.mulf %364, %369 : vector<8x128xf32>
    %371 = vector.extract_strided_slice %370 {offsets = [0, 0], sizes = [8, 32], strides = [1, 1]} : vector<8x128xf32> to vector<8x32xf32>
    %372 = arith.truncf %371 : vector<8x32xf32> to vector<8x32xbf16>
    %373 = vector.extract_strided_slice %332 {offsets = [16, 0], sizes = [8, 128], strides = [1, 1]} : vector<64x128xf32> to vector<8x128xf32>
    %cst_97 = arith.constant dense<0.000000e+00> : vector<8x128xf32>
    %374 = tpu.matmul %372, %328, %cst_97 {dimension_numbers = #tpu.dot_dimension_numbers<[1], [0], [0], [1], [0, 0, 1, 1], [], []>} : vector<8x32xbf16>, vector<32x128xbf16>, vector<8x128xf32> -> vector<8x128xf32>
    %375 = arith.addf %373, %374 : vector<8x128xf32>
    %376 = math.tanh %375 : vector<8x128xf32>
    %377 = arith.negf %375 : vector<8x128xf32>
    %378 = math.exp %377 : vector<8x128xf32>
    %cst_98 = arith.constant 1.000000e+00 : f32
    %379 = vector.broadcast %cst_98 : f32 to vector<8x128xf32>
    %380 = arith.addf %379, %378 : vector<8x128xf32>
    %381 = arith.divf %379, %380 : vector<8x128xf32>
    %382 = arith.select %2, %376, %381 : vector<8x128xi1>, vector<8x128xf32>
    %c64_i32_99 = arith.constant 64 : i32
    %383 = tpu.dynamic_rotate %382 by %c64_i32_99 dim 1 : vector<8x128xf32>, i32 -> vector<8x128xf32>
    %384 = arith.mulf %382, %383 : vector<8x128xf32>
    %c32_i32_100 = arith.constant 32 : i32
    %385 = tpu.dynamic_rotate %384 by %c32_i32_100 dim 1 : vector<8x128xf32>, i32 -> vector<8x128xf32>
    %386 = arith.mulf %382, %368 : vector<8x128xf32>
    %387 = arith.addf %386, %385 : vector<8x128xf32>
    %388 = math.tanh %387 : vector<8x128xf32>
    %389 = arith.mulf %383, %388 : vector<8x128xf32>
    %390 = vector.extract_strided_slice %389 {offsets = [0, 0], sizes = [8, 32], strides = [1, 1]} : vector<8x128xf32> to vector<8x32xf32>
    %391 = arith.truncf %390 : vector<8x32xf32> to vector<8x32xbf16>
    %392 = vector.extract_strided_slice %332 {offsets = [24, 0], sizes = [8, 128], strides = [1, 1]} : vector<64x128xf32> to vector<8x128xf32>
    %cst_101 = arith.constant dense<0.000000e+00> : vector<8x128xf32>
    %393 = tpu.matmul %391, %328, %cst_101 {dimension_numbers = #tpu.dot_dimension_numbers<[1], [0], [0], [1], [0, 0, 1, 1], [], []>} : vector<8x32xbf16>, vector<32x128xbf16>, vector<8x128xf32> -> vector<8x128xf32>
    %394 = arith.addf %392, %393 : vector<8x128xf32>
    %395 = math.tanh %394 : vector<8x128xf32>
    %396 = arith.negf %394 : vector<8x128xf32>
    %397 = math.exp %396 : vector<8x128xf32>
    %cst_102 = arith.constant 1.000000e+00 : f32
    %398 = vector.broadcast %cst_102 : f32 to vector<8x128xf32>
    %399 = arith.addf %398, %397 : vector<8x128xf32>
    %400 = arith.divf %398, %399 : vector<8x128xf32>
    %401 = arith.select %2, %395, %400 : vector<8x128xi1>, vector<8x128xf32>
    %c64_i32_103 = arith.constant 64 : i32
    %402 = tpu.dynamic_rotate %401 by %c64_i32_103 dim 1 : vector<8x128xf32>, i32 -> vector<8x128xf32>
    %403 = arith.mulf %401, %402 : vector<8x128xf32>
    %c32_i32_104 = arith.constant 32 : i32
    %404 = tpu.dynamic_rotate %403 by %c32_i32_104 dim 1 : vector<8x128xf32>, i32 -> vector<8x128xf32>
    %405 = arith.mulf %401, %387 : vector<8x128xf32>
    %406 = arith.addf %405, %404 : vector<8x128xf32>
    %407 = math.tanh %406 : vector<8x128xf32>
    %408 = arith.mulf %402, %407 : vector<8x128xf32>
    %409 = vector.extract_strided_slice %408 {offsets = [0, 0], sizes = [8, 32], strides = [1, 1]} : vector<8x128xf32> to vector<8x32xf32>
    %410 = arith.truncf %409 : vector<8x32xf32> to vector<8x32xbf16>
    %411 = vector.extract_strided_slice %332 {offsets = [32, 0], sizes = [8, 128], strides = [1, 1]} : vector<64x128xf32> to vector<8x128xf32>
    %cst_105 = arith.constant dense<0.000000e+00> : vector<8x128xf32>
    %412 = tpu.matmul %410, %328, %cst_105 {dimension_numbers = #tpu.dot_dimension_numbers<[1], [0], [0], [1], [0, 0, 1, 1], [], []>} : vector<8x32xbf16>, vector<32x128xbf16>, vector<8x128xf32> -> vector<8x128xf32>
    %413 = arith.addf %411, %412 : vector<8x128xf32>
    %414 = math.tanh %413 : vector<8x128xf32>
    %415 = arith.negf %413 : vector<8x128xf32>
    %416 = math.exp %415 : vector<8x128xf32>
    %cst_106 = arith.constant 1.000000e+00 : f32
    %417 = vector.broadcast %cst_106 : f32 to vector<8x128xf32>
    %418 = arith.addf %417, %416 : vector<8x128xf32>
    %419 = arith.divf %417, %418 : vector<8x128xf32>
    %420 = arith.select %2, %414, %419 : vector<8x128xi1>, vector<8x128xf32>
    %c64_i32_107 = arith.constant 64 : i32
    %421 = tpu.dynamic_rotate %420 by %c64_i32_107 dim 1 : vector<8x128xf32>, i32 -> vector<8x128xf32>
    %422 = arith.mulf %420, %421 : vector<8x128xf32>
    %c32_i32_108 = arith.constant 32 : i32
    %423 = tpu.dynamic_rotate %422 by %c32_i32_108 dim 1 : vector<8x128xf32>, i32 -> vector<8x128xf32>
    %424 = arith.mulf %420, %406 : vector<8x128xf32>
    %425 = arith.addf %424, %423 : vector<8x128xf32>
    %426 = math.tanh %425 : vector<8x128xf32>
    %427 = arith.mulf %421, %426 : vector<8x128xf32>
    %428 = vector.extract_strided_slice %427 {offsets = [0, 0], sizes = [8, 32], strides = [1, 1]} : vector<8x128xf32> to vector<8x32xf32>
    %429 = arith.truncf %428 : vector<8x32xf32> to vector<8x32xbf16>
    %430 = vector.extract_strided_slice %332 {offsets = [40, 0], sizes = [8, 128], strides = [1, 1]} : vector<64x128xf32> to vector<8x128xf32>
    %cst_109 = arith.constant dense<0.000000e+00> : vector<8x128xf32>
    %431 = tpu.matmul %429, %328, %cst_109 {dimension_numbers = #tpu.dot_dimension_numbers<[1], [0], [0], [1], [0, 0, 1, 1], [], []>} : vector<8x32xbf16>, vector<32x128xbf16>, vector<8x128xf32> -> vector<8x128xf32>
    %432 = arith.addf %430, %431 : vector<8x128xf32>
    %433 = math.tanh %432 : vector<8x128xf32>
    %434 = arith.negf %432 : vector<8x128xf32>
    %435 = math.exp %434 : vector<8x128xf32>
    %cst_110 = arith.constant 1.000000e+00 : f32
    %436 = vector.broadcast %cst_110 : f32 to vector<8x128xf32>
    %437 = arith.addf %436, %435 : vector<8x128xf32>
    %438 = arith.divf %436, %437 : vector<8x128xf32>
    %439 = arith.select %2, %433, %438 : vector<8x128xi1>, vector<8x128xf32>
    %c64_i32_111 = arith.constant 64 : i32
    %440 = tpu.dynamic_rotate %439 by %c64_i32_111 dim 1 : vector<8x128xf32>, i32 -> vector<8x128xf32>
    %441 = arith.mulf %439, %440 : vector<8x128xf32>
    %c32_i32_112 = arith.constant 32 : i32
    %442 = tpu.dynamic_rotate %441 by %c32_i32_112 dim 1 : vector<8x128xf32>, i32 -> vector<8x128xf32>
    %443 = arith.mulf %439, %425 : vector<8x128xf32>
    %444 = arith.addf %443, %442 : vector<8x128xf32>
    %445 = math.tanh %444 : vector<8x128xf32>
    %446 = arith.mulf %440, %445 : vector<8x128xf32>
    %447 = vector.extract_strided_slice %446 {offsets = [0, 0], sizes = [8, 32], strides = [1, 1]} : vector<8x128xf32> to vector<8x32xf32>
    %448 = arith.truncf %447 : vector<8x32xf32> to vector<8x32xbf16>
    %449 = vector.extract_strided_slice %332 {offsets = [48, 0], sizes = [8, 128], strides = [1, 1]} : vector<64x128xf32> to vector<8x128xf32>
    %cst_113 = arith.constant dense<0.000000e+00> : vector<8x128xf32>
    %450 = tpu.matmul %448, %328, %cst_113 {dimension_numbers = #tpu.dot_dimension_numbers<[1], [0], [0], [1], [0, 0, 1, 1], [], []>} : vector<8x32xbf16>, vector<32x128xbf16>, vector<8x128xf32> -> vector<8x128xf32>
    %451 = arith.addf %449, %450 : vector<8x128xf32>
    %452 = math.tanh %451 : vector<8x128xf32>
    %453 = arith.negf %451 : vector<8x128xf32>
    %454 = math.exp %453 : vector<8x128xf32>
    %cst_114 = arith.constant 1.000000e+00 : f32
    %455 = vector.broadcast %cst_114 : f32 to vector<8x128xf32>
    %456 = arith.addf %455, %454 : vector<8x128xf32>
    %457 = arith.divf %455, %456 : vector<8x128xf32>
    %458 = arith.select %2, %452, %457 : vector<8x128xi1>, vector<8x128xf32>
    %c64_i32_115 = arith.constant 64 : i32
    %459 = tpu.dynamic_rotate %458 by %c64_i32_115 dim 1 : vector<8x128xf32>, i32 -> vector<8x128xf32>
    %460 = arith.mulf %458, %459 : vector<8x128xf32>
    %c32_i32_116 = arith.constant 32 : i32
    %461 = tpu.dynamic_rotate %460 by %c32_i32_116 dim 1 : vector<8x128xf32>, i32 -> vector<8x128xf32>
    %462 = arith.mulf %458, %444 : vector<8x128xf32>
    %463 = arith.addf %462, %461 : vector<8x128xf32>
    %464 = math.tanh %463 : vector<8x128xf32>
    %465 = arith.mulf %459, %464 : vector<8x128xf32>
    %466 = vector.extract_strided_slice %465 {offsets = [0, 0], sizes = [8, 32], strides = [1, 1]} : vector<8x128xf32> to vector<8x32xf32>
    %467 = arith.truncf %466 : vector<8x32xf32> to vector<8x32xbf16>
    %468 = vector.extract_strided_slice %332 {offsets = [56, 0], sizes = [8, 128], strides = [1, 1]} : vector<64x128xf32> to vector<8x128xf32>
    %cst_117 = arith.constant dense<0.000000e+00> : vector<8x128xf32>
    %469 = tpu.matmul %467, %328, %cst_117 {dimension_numbers = #tpu.dot_dimension_numbers<[1], [0], [0], [1], [0, 0, 1, 1], [], []>} : vector<8x32xbf16>, vector<32x128xbf16>, vector<8x128xf32> -> vector<8x128xf32>
    %470 = arith.addf %468, %469 : vector<8x128xf32>
    %471 = math.tanh %470 : vector<8x128xf32>
    %472 = arith.negf %470 : vector<8x128xf32>
    %473 = math.exp %472 : vector<8x128xf32>
    %cst_118 = arith.constant 1.000000e+00 : f32
    %474 = vector.broadcast %cst_118 : f32 to vector<8x128xf32>
    %475 = arith.addf %474, %473 : vector<8x128xf32>
    %476 = arith.divf %474, %475 : vector<8x128xf32>
    %477 = arith.select %2, %471, %476 : vector<8x128xi1>, vector<8x128xf32>
    %c64_i32_119 = arith.constant 64 : i32
    %478 = tpu.dynamic_rotate %477 by %c64_i32_119 dim 1 : vector<8x128xf32>, i32 -> vector<8x128xf32>
    %479 = arith.mulf %477, %478 : vector<8x128xf32>
    %c32_i32_120 = arith.constant 32 : i32
    %480 = tpu.dynamic_rotate %479 by %c32_i32_120 dim 1 : vector<8x128xf32>, i32 -> vector<8x128xf32>
    %481 = arith.mulf %477, %463 : vector<8x128xf32>
    %482 = arith.addf %481, %480 : vector<8x128xf32>
    %483 = math.tanh %482 : vector<8x128xf32>
    %484 = arith.mulf %478, %483 : vector<8x128xf32>
    %485 = vector.extract_strided_slice %484 {offsets = [0, 0], sizes = [8, 32], strides = [1, 1]} : vector<8x128xf32> to vector<8x32xf32>
    %486 = tpu.concatenate %352, %371, %390, %409, %428, %447, %466, %485 in 0 : vector<8x32xf32>, vector<8x32xf32>, vector<8x32xf32>, vector<8x32xf32>, vector<8x32xf32>, vector<8x32xf32>, vector<8x32xf32>, vector<8x32xf32> -> vector<64x32xf32>
    %487 = arith.truncf %486 : vector<64x32xf32> to vector<64x32xbf16>
    %c0_121 = arith.constant 0 : index
    %c0_122 = arith.constant 0 : index
    %488 = vector.load %arg10[%c0_121, %c0_122] : memref<32x128xbf16, #tpu.memory_space<vmem>>, vector<32x128xbf16>
    %c0_123 = arith.constant 0 : index
    %c0_124 = arith.constant 0 : index
    %489 = vector.load %arg11[%c0_123, %c0_124] : memref<32x128xbf16, #tpu.memory_space<vmem>>, vector<32x128xbf16>
    %c0_125 = arith.constant 0 : index
    %c0_126 = arith.constant 0 : index
    %490 = vector.load %arg12[%c0_125, %c0_126] : memref<1x128xf32, #tpu.memory_space<vmem>>, vector<1x128xf32>
    %cst_127 = arith.constant dense<0.000000e+00> : vector<64x128xf32>
    %491 = tpu.matmul %487, %488, %cst_127 {dimension_numbers = #tpu.dot_dimension_numbers<[1], [0], [0], [1], [0, 0, 1, 1], [], []>} : vector<64x32xbf16>, vector<32x128xbf16>, vector<64x128xf32> -> vector<64x128xf32>
    %492 = vector.broadcast %490 : vector<1x128xf32> to vector<64x128xf32>
    %493 = arith.addf %491, %492 : vector<64x128xf32>
    %cst_128 = arith.constant 0.000000e+00 : bf16
    %494 = vector.broadcast %cst_128 : bf16 to vector<8x32xbf16>
    %cst_129 = arith.constant 0.000000e+00 : f32
    %495 = vector.broadcast %cst_129 : f32 to vector<8x128xf32>
    %496 = vector.extract_strided_slice %493 {offsets = [0, 0], sizes = [8, 128], strides = [1, 1]} : vector<64x128xf32> to vector<8x128xf32>
    %cst_130 = arith.constant dense<0.000000e+00> : vector<8x128xf32>
    %497 = tpu.matmul %494, %489, %cst_130 {dimension_numbers = #tpu.dot_dimension_numbers<[1], [0], [0], [1], [0, 0, 1, 1], [], []>} : vector<8x32xbf16>, vector<32x128xbf16>, vector<8x128xf32> -> vector<8x128xf32>
    %498 = arith.addf %496, %497 : vector<8x128xf32>
    %499 = math.tanh %498 : vector<8x128xf32>
    %500 = arith.negf %498 : vector<8x128xf32>
    %501 = math.exp %500 : vector<8x128xf32>
    %cst_131 = arith.constant 1.000000e+00 : f32
    %502 = vector.broadcast %cst_131 : f32 to vector<8x128xf32>
    %503 = arith.addf %502, %501 : vector<8x128xf32>
    %504 = arith.divf %502, %503 : vector<8x128xf32>
    %505 = arith.select %2, %499, %504 : vector<8x128xi1>, vector<8x128xf32>
    %c64_i32_132 = arith.constant 64 : i32
    %506 = tpu.dynamic_rotate %505 by %c64_i32_132 dim 1 : vector<8x128xf32>, i32 -> vector<8x128xf32>
    %507 = arith.mulf %505, %506 : vector<8x128xf32>
    %c32_i32_133 = arith.constant 32 : i32
    %508 = tpu.dynamic_rotate %507 by %c32_i32_133 dim 1 : vector<8x128xf32>, i32 -> vector<8x128xf32>
    %509 = arith.mulf %505, %495 : vector<8x128xf32>
    %510 = arith.addf %509, %508 : vector<8x128xf32>
    %511 = math.tanh %510 : vector<8x128xf32>
    %512 = arith.mulf %506, %511 : vector<8x128xf32>
    %513 = vector.extract_strided_slice %512 {offsets = [0, 0], sizes = [8, 32], strides = [1, 1]} : vector<8x128xf32> to vector<8x32xf32>
    %514 = arith.truncf %513 : vector<8x32xf32> to vector<8x32xbf16>
    %515 = vector.extract_strided_slice %493 {offsets = [8, 0], sizes = [8, 128], strides = [1, 1]} : vector<64x128xf32> to vector<8x128xf32>
    %cst_134 = arith.constant dense<0.000000e+00> : vector<8x128xf32>
    %516 = tpu.matmul %514, %489, %cst_134 {dimension_numbers = #tpu.dot_dimension_numbers<[1], [0], [0], [1], [0, 0, 1, 1], [], []>} : vector<8x32xbf16>, vector<32x128xbf16>, vector<8x128xf32> -> vector<8x128xf32>
    %517 = arith.addf %515, %516 : vector<8x128xf32>
    %518 = math.tanh %517 : vector<8x128xf32>
    %519 = arith.negf %517 : vector<8x128xf32>
    %520 = math.exp %519 : vector<8x128xf32>
    %cst_135 = arith.constant 1.000000e+00 : f32
    %521 = vector.broadcast %cst_135 : f32 to vector<8x128xf32>
    %522 = arith.addf %521, %520 : vector<8x128xf32>
    %523 = arith.divf %521, %522 : vector<8x128xf32>
    %524 = arith.select %2, %518, %523 : vector<8x128xi1>, vector<8x128xf32>
    %c64_i32_136 = arith.constant 64 : i32
    %525 = tpu.dynamic_rotate %524 by %c64_i32_136 dim 1 : vector<8x128xf32>, i32 -> vector<8x128xf32>
    %526 = arith.mulf %524, %525 : vector<8x128xf32>
    %c32_i32_137 = arith.constant 32 : i32
    %527 = tpu.dynamic_rotate %526 by %c32_i32_137 dim 1 : vector<8x128xf32>, i32 -> vector<8x128xf32>
    %528 = arith.mulf %524, %510 : vector<8x128xf32>
    %529 = arith.addf %528, %527 : vector<8x128xf32>
    %530 = math.tanh %529 : vector<8x128xf32>
    %531 = arith.mulf %525, %530 : vector<8x128xf32>
    %532 = vector.extract_strided_slice %531 {offsets = [0, 0], sizes = [8, 32], strides = [1, 1]} : vector<8x128xf32> to vector<8x32xf32>
    %533 = arith.truncf %532 : vector<8x32xf32> to vector<8x32xbf16>
    %534 = vector.extract_strided_slice %493 {offsets = [16, 0], sizes = [8, 128], strides = [1, 1]} : vector<64x128xf32> to vector<8x128xf32>
    %cst_138 = arith.constant dense<0.000000e+00> : vector<8x128xf32>
    %535 = tpu.matmul %533, %489, %cst_138 {dimension_numbers = #tpu.dot_dimension_numbers<[1], [0], [0], [1], [0, 0, 1, 1], [], []>} : vector<8x32xbf16>, vector<32x128xbf16>, vector<8x128xf32> -> vector<8x128xf32>
    %536 = arith.addf %534, %535 : vector<8x128xf32>
    %537 = math.tanh %536 : vector<8x128xf32>
    %538 = arith.negf %536 : vector<8x128xf32>
    %539 = math.exp %538 : vector<8x128xf32>
    %cst_139 = arith.constant 1.000000e+00 : f32
    %540 = vector.broadcast %cst_139 : f32 to vector<8x128xf32>
    %541 = arith.addf %540, %539 : vector<8x128xf32>
    %542 = arith.divf %540, %541 : vector<8x128xf32>
    %543 = arith.select %2, %537, %542 : vector<8x128xi1>, vector<8x128xf32>
    %c64_i32_140 = arith.constant 64 : i32
    %544 = tpu.dynamic_rotate %543 by %c64_i32_140 dim 1 : vector<8x128xf32>, i32 -> vector<8x128xf32>
    %545 = arith.mulf %543, %544 : vector<8x128xf32>
    %c32_i32_141 = arith.constant 32 : i32
    %546 = tpu.dynamic_rotate %545 by %c32_i32_141 dim 1 : vector<8x128xf32>, i32 -> vector<8x128xf32>
    %547 = arith.mulf %543, %529 : vector<8x128xf32>
    %548 = arith.addf %547, %546 : vector<8x128xf32>
    %549 = math.tanh %548 : vector<8x128xf32>
    %550 = arith.mulf %544, %549 : vector<8x128xf32>
    %551 = vector.extract_strided_slice %550 {offsets = [0, 0], sizes = [8, 32], strides = [1, 1]} : vector<8x128xf32> to vector<8x32xf32>
    %552 = arith.truncf %551 : vector<8x32xf32> to vector<8x32xbf16>
    %553 = vector.extract_strided_slice %493 {offsets = [24, 0], sizes = [8, 128], strides = [1, 1]} : vector<64x128xf32> to vector<8x128xf32>
    %cst_142 = arith.constant dense<0.000000e+00> : vector<8x128xf32>
    %554 = tpu.matmul %552, %489, %cst_142 {dimension_numbers = #tpu.dot_dimension_numbers<[1], [0], [0], [1], [0, 0, 1, 1], [], []>} : vector<8x32xbf16>, vector<32x128xbf16>, vector<8x128xf32> -> vector<8x128xf32>
    %555 = arith.addf %553, %554 : vector<8x128xf32>
    %556 = math.tanh %555 : vector<8x128xf32>
    %557 = arith.negf %555 : vector<8x128xf32>
    %558 = math.exp %557 : vector<8x128xf32>
    %cst_143 = arith.constant 1.000000e+00 : f32
    %559 = vector.broadcast %cst_143 : f32 to vector<8x128xf32>
    %560 = arith.addf %559, %558 : vector<8x128xf32>
    %561 = arith.divf %559, %560 : vector<8x128xf32>
    %562 = arith.select %2, %556, %561 : vector<8x128xi1>, vector<8x128xf32>
    %c64_i32_144 = arith.constant 64 : i32
    %563 = tpu.dynamic_rotate %562 by %c64_i32_144 dim 1 : vector<8x128xf32>, i32 -> vector<8x128xf32>
    %564 = arith.mulf %562, %563 : vector<8x128xf32>
    %c32_i32_145 = arith.constant 32 : i32
    %565 = tpu.dynamic_rotate %564 by %c32_i32_145 dim 1 : vector<8x128xf32>, i32 -> vector<8x128xf32>
    %566 = arith.mulf %562, %548 : vector<8x128xf32>
    %567 = arith.addf %566, %565 : vector<8x128xf32>
    %568 = math.tanh %567 : vector<8x128xf32>
    %569 = arith.mulf %563, %568 : vector<8x128xf32>
    %570 = vector.extract_strided_slice %569 {offsets = [0, 0], sizes = [8, 32], strides = [1, 1]} : vector<8x128xf32> to vector<8x32xf32>
    %571 = arith.truncf %570 : vector<8x32xf32> to vector<8x32xbf16>
    %572 = vector.extract_strided_slice %493 {offsets = [32, 0], sizes = [8, 128], strides = [1, 1]} : vector<64x128xf32> to vector<8x128xf32>
    %cst_146 = arith.constant dense<0.000000e+00> : vector<8x128xf32>
    %573 = tpu.matmul %571, %489, %cst_146 {dimension_numbers = #tpu.dot_dimension_numbers<[1], [0], [0], [1], [0, 0, 1, 1], [], []>} : vector<8x32xbf16>, vector<32x128xbf16>, vector<8x128xf32> -> vector<8x128xf32>
    %574 = arith.addf %572, %573 : vector<8x128xf32>
    %575 = math.tanh %574 : vector<8x128xf32>
    %576 = arith.negf %574 : vector<8x128xf32>
    %577 = math.exp %576 : vector<8x128xf32>
    %cst_147 = arith.constant 1.000000e+00 : f32
    %578 = vector.broadcast %cst_147 : f32 to vector<8x128xf32>
    %579 = arith.addf %578, %577 : vector<8x128xf32>
    %580 = arith.divf %578, %579 : vector<8x128xf32>
    %581 = arith.select %2, %575, %580 : vector<8x128xi1>, vector<8x128xf32>
    %c64_i32_148 = arith.constant 64 : i32
    %582 = tpu.dynamic_rotate %581 by %c64_i32_148 dim 1 : vector<8x128xf32>, i32 -> vector<8x128xf32>
    %583 = arith.mulf %581, %582 : vector<8x128xf32>
    %c32_i32_149 = arith.constant 32 : i32
    %584 = tpu.dynamic_rotate %583 by %c32_i32_149 dim 1 : vector<8x128xf32>, i32 -> vector<8x128xf32>
    %585 = arith.mulf %581, %567 : vector<8x128xf32>
    %586 = arith.addf %585, %584 : vector<8x128xf32>
    %587 = math.tanh %586 : vector<8x128xf32>
    %588 = arith.mulf %582, %587 : vector<8x128xf32>
    %589 = vector.extract_strided_slice %588 {offsets = [0, 0], sizes = [8, 32], strides = [1, 1]} : vector<8x128xf32> to vector<8x32xf32>
    %590 = arith.truncf %589 : vector<8x32xf32> to vector<8x32xbf16>
    %591 = vector.extract_strided_slice %493 {offsets = [40, 0], sizes = [8, 128], strides = [1, 1]} : vector<64x128xf32> to vector<8x128xf32>
    %cst_150 = arith.constant dense<0.000000e+00> : vector<8x128xf32>
    %592 = tpu.matmul %590, %489, %cst_150 {dimension_numbers = #tpu.dot_dimension_numbers<[1], [0], [0], [1], [0, 0, 1, 1], [], []>} : vector<8x32xbf16>, vector<32x128xbf16>, vector<8x128xf32> -> vector<8x128xf32>
    %593 = arith.addf %591, %592 : vector<8x128xf32>
    %594 = math.tanh %593 : vector<8x128xf32>
    %595 = arith.negf %593 : vector<8x128xf32>
    %596 = math.exp %595 : vector<8x128xf32>
    %cst_151 = arith.constant 1.000000e+00 : f32
    %597 = vector.broadcast %cst_151 : f32 to vector<8x128xf32>
    %598 = arith.addf %597, %596 : vector<8x128xf32>
    %599 = arith.divf %597, %598 : vector<8x128xf32>
    %600 = arith.select %2, %594, %599 : vector<8x128xi1>, vector<8x128xf32>
    %c64_i32_152 = arith.constant 64 : i32
    %601 = tpu.dynamic_rotate %600 by %c64_i32_152 dim 1 : vector<8x128xf32>, i32 -> vector<8x128xf32>
    %602 = arith.mulf %600, %601 : vector<8x128xf32>
    %c32_i32_153 = arith.constant 32 : i32
    %603 = tpu.dynamic_rotate %602 by %c32_i32_153 dim 1 : vector<8x128xf32>, i32 -> vector<8x128xf32>
    %604 = arith.mulf %600, %586 : vector<8x128xf32>
    %605 = arith.addf %604, %603 : vector<8x128xf32>
    %606 = math.tanh %605 : vector<8x128xf32>
    %607 = arith.mulf %601, %606 : vector<8x128xf32>
    %608 = vector.extract_strided_slice %607 {offsets = [0, 0], sizes = [8, 32], strides = [1, 1]} : vector<8x128xf32> to vector<8x32xf32>
    %609 = arith.truncf %608 : vector<8x32xf32> to vector<8x32xbf16>
    %610 = vector.extract_strided_slice %493 {offsets = [48, 0], sizes = [8, 128], strides = [1, 1]} : vector<64x128xf32> to vector<8x128xf32>
    %cst_154 = arith.constant dense<0.000000e+00> : vector<8x128xf32>
    %611 = tpu.matmul %609, %489, %cst_154 {dimension_numbers = #tpu.dot_dimension_numbers<[1], [0], [0], [1], [0, 0, 1, 1], [], []>} : vector<8x32xbf16>, vector<32x128xbf16>, vector<8x128xf32> -> vector<8x128xf32>
    %612 = arith.addf %610, %611 : vector<8x128xf32>
    %613 = math.tanh %612 : vector<8x128xf32>
    %614 = arith.negf %612 : vector<8x128xf32>
    %615 = math.exp %614 : vector<8x128xf32>
    %cst_155 = arith.constant 1.000000e+00 : f32
    %616 = vector.broadcast %cst_155 : f32 to vector<8x128xf32>
    %617 = arith.addf %616, %615 : vector<8x128xf32>
    %618 = arith.divf %616, %617 : vector<8x128xf32>
    %619 = arith.select %2, %613, %618 : vector<8x128xi1>, vector<8x128xf32>
    %c64_i32_156 = arith.constant 64 : i32
    %620 = tpu.dynamic_rotate %619 by %c64_i32_156 dim 1 : vector<8x128xf32>, i32 -> vector<8x128xf32>
    %621 = arith.mulf %619, %620 : vector<8x128xf32>
    %c32_i32_157 = arith.constant 32 : i32
    %622 = tpu.dynamic_rotate %621 by %c32_i32_157 dim 1 : vector<8x128xf32>, i32 -> vector<8x128xf32>
    %623 = arith.mulf %619, %605 : vector<8x128xf32>
    %624 = arith.addf %623, %622 : vector<8x128xf32>
    %625 = math.tanh %624 : vector<8x128xf32>
    %626 = arith.mulf %620, %625 : vector<8x128xf32>
    %627 = vector.extract_strided_slice %626 {offsets = [0, 0], sizes = [8, 32], strides = [1, 1]} : vector<8x128xf32> to vector<8x32xf32>
    %628 = arith.truncf %627 : vector<8x32xf32> to vector<8x32xbf16>
    %629 = vector.extract_strided_slice %493 {offsets = [56, 0], sizes = [8, 128], strides = [1, 1]} : vector<64x128xf32> to vector<8x128xf32>
    %cst_158 = arith.constant dense<0.000000e+00> : vector<8x128xf32>
    %630 = tpu.matmul %628, %489, %cst_158 {dimension_numbers = #tpu.dot_dimension_numbers<[1], [0], [0], [1], [0, 0, 1, 1], [], []>} : vector<8x32xbf16>, vector<32x128xbf16>, vector<8x128xf32> -> vector<8x128xf32>
    %631 = arith.addf %629, %630 : vector<8x128xf32>
    %632 = math.tanh %631 : vector<8x128xf32>
    %633 = arith.negf %631 : vector<8x128xf32>
    %634 = math.exp %633 : vector<8x128xf32>
    %cst_159 = arith.constant 1.000000e+00 : f32
    %635 = vector.broadcast %cst_159 : f32 to vector<8x128xf32>
    %636 = arith.addf %635, %634 : vector<8x128xf32>
    %637 = arith.divf %635, %636 : vector<8x128xf32>
    %638 = arith.select %2, %632, %637 : vector<8x128xi1>, vector<8x128xf32>
    %c64_i32_160 = arith.constant 64 : i32
    %639 = tpu.dynamic_rotate %638 by %c64_i32_160 dim 1 : vector<8x128xf32>, i32 -> vector<8x128xf32>
    %640 = arith.mulf %638, %639 : vector<8x128xf32>
    %c32_i32_161 = arith.constant 32 : i32
    %641 = tpu.dynamic_rotate %640 by %c32_i32_161 dim 1 : vector<8x128xf32>, i32 -> vector<8x128xf32>
    %642 = arith.mulf %638, %624 : vector<8x128xf32>
    %643 = arith.addf %642, %641 : vector<8x128xf32>
    %644 = math.tanh %643 : vector<8x128xf32>
    %645 = arith.mulf %639, %644 : vector<8x128xf32>
    %646 = vector.extract_strided_slice %645 {offsets = [0, 0], sizes = [8, 32], strides = [1, 1]} : vector<8x128xf32> to vector<8x32xf32>
    %647 = arith.truncf %646 : vector<8x32xf32> to vector<8x32xbf16>
    %c0_162 = arith.constant 0 : index
    %c0_163 = arith.constant 0 : index
    %648 = vector.load %arg13[%c0_162, %c0_163] : memref<32x128xbf16, #tpu.memory_space<vmem>>, vector<32x128xbf16>
    %cst_164 = arith.constant dense<0.000000e+00> : vector<8x128xf32>
    %649 = tpu.matmul %647, %648, %cst_164 {dimension_numbers = #tpu.dot_dimension_numbers<[1], [0], [0], [1], [0, 0, 1, 1], [], []>} : vector<8x32xbf16>, vector<32x128xbf16>, vector<8x128xf32> -> vector<8x128xf32>
    %c0_165 = arith.constant 0 : index
    %c0_166 = arith.constant 0 : index
    %650 = vector.load %arg14[%c0_165, %c0_166] : memref<1x128xf32, #tpu.memory_space<vmem>>, vector<1x128xf32>
    %651 = vector.broadcast %650 : vector<1x128xf32> to vector<8x128xf32>
    %652 = arith.addf %649, %651 : vector<8x128xf32>
    %c0_167 = arith.constant 0 : index
    %c0_168 = arith.constant 0 : index
    %653 = vector.load %arg15[%c0_167, %c0_168] : memref<8x128xf32, #tpu.memory_space<vmem>>, vector<8x128xf32>
    tpu.vector_store %arg15[%c0_167, %c0_168], %652 {strides = array<i32>} : memref<8x128xf32, #tpu.memory_space<vmem>>, vector<8x128xf32>,
    return
  }
}

</mosaic_0001>

<llo_original>
// kernel: lstm_classifier_forward.1
$region0: #{lstm_classifier_forward.1}
  #allocation0 [shape = 'u32[]', space=smem, size = 0x4, offset = 0x4, fixed_abs, tag = 'smem constant byte address 0x4 - core index']
  #allocation1 [shape = 'u32[144,128]{1,0:T(1,128)}', space=vmem, size = 0x12000, scoped, tag = 'internal scratch']
  %s0 = inlined_call_operand.vmem [shape: f32[64,16], index: 0, kind: input, shape index: {}]
  %s1 = inlined_call_operand.hbm [shape: bf16[16,128], index: 1, kind: input, shape index: {}]
  %s2 = inlined_call_operand.vmem [shape: bf16[32,128], index: 2, kind: input, shape index: {}]
  %s3 = inlined_call_operand.vmem [shape: f32[1,128], index: 3, kind: input, shape index: {}]
  %s4 = inlined_call_operand.vmem [shape: bf16[32,128], index: 4, kind: input, shape index: {}]
  %s5 = inlined_call_operand.vmem [shape: bf16[32,128], index: 5, kind: input, shape index: {}]
  %s6 = inlined_call_operand.vmem [shape: f32[1,128], index: 6, kind: input, shape index: {}]
  %s7 = inlined_call_operand.vmem [shape: bf16[32,128], index: 7, kind: input, shape index: {}]
  %s8 = inlined_call_operand.vmem [shape: bf16[32,128], index: 8, kind: input, shape index: {}]
  %s9 = inlined_call_operand.vmem [shape: f32[1,128], index: 9, kind: input, shape index: {}]
  %s10 = inlined_call_operand.vmem [shape: bf16[32,128], index: 10, kind: input, shape index: {}]
  %s11 = inlined_call_operand.vmem [shape: bf16[32,128], index: 11, kind: input, shape index: {}]
  %s12 = inlined_call_operand.vmem [shape: f32[1,128], index: 12, kind: input, shape index: {}]
  %s13 = inlined_call_operand.vmem [shape: bf16[32,128], index: 13, kind: input, shape index: {}]
  %s14 = inlined_call_operand.vmem [shape: f32[1,128], index: 14, kind: input, shape index: {}]
  %s15 = inlined_call_operand.vmem [shape: f32[8,128], index: 15, kind: output, shape index: {}]
  %s16 = sld [smem:[#allocation0]]
  $region74: #{lstm_classifier_forward.1} parent=0
    _
  %s18 = ssub.s32 1, %s16
  %s19 = scalar_select 0, %s18, %s16
  $region1: #{lstm_classifier_forward.1} parent=0
    #allocation2 [shape = 'u8[4096]{0}', space=vmem, size = 0x1000, scoped, tag = 'input window, operand 1, single buffered']
    #allocation3 [shape = 's32[1]{0}', space=sflag, size = 0x4, scoped, tag = 'scoped memory for lstm_classifier_forward.1']
    %20 = vsyncpa [#allocation3], 0
    // Predicated region
    $region2: #{lstm_classifier_forward.1} parent=1 // pred_check
      _
    $region3: #{lstm_classifier_forward.1} parent=1 // pred_check_branch
      %22 = sbr.rel (0) target = $region5
    $region4: #{lstm_classifier_forward.1} parent=1 // pred_region
      _
    $region5: #{lstm_classifier_forward.1} parent=1 // pred_fallthru
      _
    // Predicated region
    $region6: #{lstm_classifier_forward.1} parent=1 // pred_check
      _
    $region7: #{lstm_classifier_forward.1} parent=1 // pred_check_branch
      %24 = sbr.rel (0) target = $region9
    $region8: #{lstm_classifier_forward.1} parent=1 // pred_region
      %s26 = ssub.s32 128, 128
      %27 = vsyncadd [#allocation3], %s26
      %s28 = sshll.u32 [#allocation2], 4
      %s29 = int_to_ptr.vmem [resolvable:$true] %s28
      %34 = dma.hbm_to_vmem [thread:$0]  %s1, 128, %s29, [#allocation3], 64, 64, 4
    $region9: #{lstm_classifier_forward.1} parent=1 // pred_fallthru
      _
    // Predicated region
    $region10: #{lstm_classifier_forward.1} parent=1 // pred_check
      _
    $region11: #{lstm_classifier_forward.1} parent=1 // pred_check_branch
      %36 = sbr.rel (0) target = $region13
    $region12: #{lstm_classifier_forward.1} parent=1 // pred_region
      _
    $region13: #{lstm_classifier_forward.1} parent=1 // pred_fallthru
      _
    // Predicated region
    $region14: #{lstm_classifier_forward.1} parent=1 // pred_check
      _
    $region15: #{lstm_classifier_forward.1} parent=1 // pred_check_branch
      %38 = sbr.rel (0) target = $region17
    $region16: #{lstm_classifier_forward.1} parent=1 // pred_region
      _
    $region17: #{lstm_classifier_forward.1} parent=1 // pred_fallthru
      _
    // Predicated region
    $region18: #{lstm_classifier_forward.1} parent=1 // pred_check
      _
    $region19: #{lstm_classifier_forward.1} parent=1 // pred_check_branch
      %40 = sbr.rel (0) target = $region21
    $region20: #{lstm_classifier_forward.1} parent=1 // pred_region
      _
    $region21: #{lstm_classifier_forward.1} parent=1 // pred_fallthru
      _
    // Predicated region
    $region22: #{lstm_classifier_forward.1} parent=1 // pred_check
      _
    $region23: #{lstm_classifier_forward.1} parent=1 // pred_check_branch
      %42 = sbr.rel (0) target = $region25
    $region24: #{lstm_classifier_forward.1} parent=1 // pred_region
      _
    $region25: #{lstm_classifier_forward.1} parent=1 // pred_fallthru
      _
    // Predicated region
    $region26: #{lstm_classifier_forward.1} parent=1 // pred_check
      _
    $region27: #{lstm_classifier_forward.1} parent=1 // pred_check_branch
      %44 = sbr.rel (0) target = $region29
    $region28: #{lstm_classifier_forward.1} parent=1 // pred_region
      _
    $region29: #{lstm_classifier_forward.1} parent=1 // pred_fallthru
      _
    // Predicated region
    $region30: #{lstm_classifier_forward.1} parent=1 // pred_check
      _
    $region31: #{lstm_classifier_forward.1} parent=1 // pred_check_branch
      %46 = sbr.rel (0) target = $region33
    $region32: #{lstm_classifier_forward.1} parent=1 // pred_region
      _
    $region33: #{lstm_classifier_forward.1} parent=1 // pred_fallthru
      _
    // Predicated region
    $region34: #{lstm_classifier_forward.1} parent=1 // pred_check
      _
    $region35: #{lstm_classifier_forward.1} parent=1 // pred_check_branch
      %48 = sbr.rel (0) target = $region37
    $region36: #{lstm_classifier_forward.1} parent=1 // pred_region
      _
    $region37: #{lstm_classifier_forward.1} parent=1 // pred_fallthru
      _
    // Predicated region
    $region38: #{lstm_classifier_forward.1} parent=1 // pred_check
      _
    $region39: #{lstm_classifier_forward.1} parent=1 // pred_check_branch
      %50 = sbr.rel (0) target = $region41
    $region40: #{lstm_classifier_forward.1} parent=1 // pred_region
      _
    $region41: #{lstm_classifier_forward.1} parent=1 // pred_fallthru
      _
    // Predicated region
    $region42: #{lstm_classifier_forward.1} parent=1 // pred_check
      _
    $region43: #{lstm_classifier_forward.1} parent=1 // pred_check_branch
      %52 = sbr.rel (0) target = $region45
    $region44: #{lstm_classifier_forward.1} parent=1 // pred_region
      _
    $region45: #{lstm_classifier_forward.1} parent=1 // pred_fallthru
      _
    // Predicated region
    $region46: #{lstm_classifier_forward.1} parent=1 // pred_check
      _
    $region47: #{lstm_classifier_forward.1} parent=1 // pred_check_branch
      %54 = sbr.rel (0) target = $region49
    $region48: #{lstm_classifier_forward.1} parent=1 // pred_region
      _
    $region49: #{lstm_classifier_forward.1} parent=1 // pred_fallthru
      _
    // Predicated region
    $region50: #{lstm_classifier_forward.1} parent=1 // pred_check
      _
    $region51: #{lstm_classifier_forward.1} parent=1 // pred_check_branch
      %56 = sbr.rel (0) target = $region53
    $region52: #{lstm_classifier_forward.1} parent=1 // pred_region
      _
    $region53: #{lstm_classifier_forward.1} parent=1 // pred_fallthru
      _
    // Predicated region
    $region54: #{lstm_classifier_forward.1} parent=1 // pred_check
      _
    $region55: #{lstm_classifier_forward.1} parent=1 // pred_check_branch
      %58 = sbr.rel (0) target = $region57
    $region56: #{lstm_classifier_forward.1} parent=1 // pred_region
      _
    $region57: #{lstm_classifier_forward.1} parent=1 // pred_fallthru
      _
    // Predicated region
    $region58: #{lstm_classifier_forward.1} parent=1 // pred_check
      _
    $region59: #{lstm_classifier_forward.1} parent=1 // pred_check_branch
      %60 = sbr.rel (0) target = $region61
    $region60: #{lstm_classifier_forward.1} parent=1 // pred_region
      _
    $region61: #{lstm_classifier_forward.1} parent=1 // pred_fallthru
      _
    // Predicated region
    $region62: #{lstm_classifier_forward.1} parent=1 // pred_check
      _
    $region63: #{lstm_classifier_forward.1} parent=1 // pred_check_branch
      %62 = sbr.rel (0) target = $region65
    $region64: #{lstm_classifier_forward.1} parent=1 // pred_region
      %63 = dma.done [#allocation3], 128
    $region65: #{lstm_classifier_forward.1} parent=1 // pred_fallthru
      _
    %v65 = vlaneseq
    %v66 = vand.u32 %v65, 127
    %vm67 = vcmp.ge.s32.totalorder %v66, 96
    %v68 = vld [vmem:[%s0] sm:$0xff]
    %v69 = vld [vmem:[%s0 + $0x8] sm:$0xff]
    %v70 = vld [vmem:[%s0 + $0x10] sm:$0xff]
    %v71 = vld [vmem:[%s0 + $0x18] sm:$0xff]
    %v72 = vld [vmem:[%s0 + $0x20] sm:$0xff]
    %v73 = vld [vmem:[%s0 + $0x28] sm:$0xff]
    %v74 = vld [vmem:[%s0 + $0x30] sm:$0xff]
    %v75 = vld [vmem:[%s0 + $0x38] sm:$0xff]
    %v76 = vpack.c.bf16 %v69, %v68
    %v77 = vpack.c.bf16 %v71, %v70
    %v78 = vpack.c.bf16 %v73, %v72
    %v79 = vpack.c.bf16 %v75, %v74
    %v80 = vld [vmem:[#allocation2] sm:$0xf]
    %v81 = vld [vmem:[#allocation2 + $0x4] sm:$0xf]
    %v82 = vld [vmem:[%s2] sm:$0xf]
    %v83 = vld [vmem:[%s2 + $0x4] sm:$0xf]
    %v84 = vld [vmem:[%s2 + $0x8] sm:$0xf]
    %v85 = vld [vmem:[%s2 + $0xc] sm:$0xf]
    %v86 = vld [vmem:[%s3] sm:$0x1]
    %v88 = vlaneseq
    %v89 = vshrl.u32 %v88, 7
    %v90 = vsub.s32 0, %v89
    %v91 = vrot.slane %v86, %v90
    %v95 = vunpack.c.l.b16 %v80
    %v96 = vunpack.c.l.b16 %v81
    %v97 = vpack.c.b16 %v96, %v95
    %vm99 = vcmask 130048
    %v101 = vsel %vm99, %v76, 0
    %v104 = vsel %vm99, %v77, 0
    %v107 = vsel %vm99, %v78, 0
    %v110 = vsel %vm99, %v79, 0
    %112 = vmatprep.subr.bf16.mxu0 0
    %113 = vmatpush1.bf16.msra.mxu0 %v97
    %114 = vmatprep.subr.bf16.mxu0 0
    %115 = vmatpush1.bf16.msra.mxu0 0
    %116 = vmatprep.subr.bf16.mxu0 0
    %117 = vmatpush1.bf16.msra.mxu0 0
    %118 = vmatprep.subr.bf16.mxu0 0
    %119 = vmatpush1.bf16.msra.mxu0 0
    %120 = vmatprep.subr.bf16.mxu0 0
    %121 = vmatpush1.bf16.msra.mxu0 0
    %122 = vmatprep.subr.bf16.mxu0 0
    %123 = vmatpush1.bf16.msra.mxu0 0
    %124 = vmatprep.subr.bf16.mxu0 0
    %125 = vmatpush1.bf16.msra.mxu0 0
    %126 = vmatprep.subr.bf16.mxu0 0
    %127 = vmatpush1.bf16.msra.mxu0 0
    %128 = vmatprep.subr.bf16.mxu0 0
    %129 = vmatpush1.bf16.msra.mxu0 0
    %130 = vmatprep.subr.bf16.mxu0 0
    %131 = vmatpush1.bf16.msra.mxu0 0
    %132 = vmatprep.subr.bf16.mxu0 0
    %133 = vmatpush1.bf16.msra.mxu0 0
    %134 = vmatprep.subr.bf16.mxu0 0
    %135 = vmatpush1.bf16.msra.mxu0 0
    %136 = vmatprep.subr.bf16.mxu0 0
    %137 = vmatpush1.bf16.msra.mxu0 0
    %138 = vmatprep.subr.bf16.mxu0 0
    %139 = vmatpush1.bf16.msra.mxu0 0
    %140 = vmatprep.subr.bf16.mxu0 0
    %141 = vmatpush1.bf16.msra.mxu0 0
    %142 = vmatprep.subr.bf16.mxu0 0
    %143 = vmatpush1.bf16.msra.mxu0 0
    %144 = vmatprep.mubr.bf16.mxu0 0
    %145 = vmatmul.mubr.bf16.gmra.mrb[0].mxu0 %v101
    %v146 = vpop.f32.mrb[0].mxu0
    %v147 = vadd.f32 %v91, %v146
    %v148 = vpop.f32.mrb[0].mxu0
    %v149 = vpop.f32.mrb[0].mxu0
    %v150 = vadd.f32 %v91, %v149
    %v151 = vpop.f32.mrb[0].mxu0
    %152 = vmatprep.mubr.bf16.mxu0 0
    %153 = vmatmul.mubr.bf16.gmra.mrb[0].mxu0 %v104
    %v154 = vpop.f32.mrb[0].mxu0
    %v155 = vadd.f32 %v91, %v154
    %v156 = vpop.f32.mrb[0].mxu0
    %v157 = vpop.f32.mrb[0].mxu0
    %v158 = vadd.f32 %v91, %v157
    %v159 = vpop.f32.mrb[0].mxu0
    %160 = vmatprep.mubr.bf16.mxu0 0
    %161 = vmatmul.mubr.bf16.gmra.mrb[0].mxu0 %v107
    %v162 = vpop.f32.mrb[0].mxu0
    %v163 = vadd.f32 %v91, %v162
    %v164 = vpop.f32.mrb[0].mxu0
    %v165 = vpop.f32.mrb[0].mxu0
    %v166 = vadd.f32 %v91, %v165
    %v167 = vpop.f32.mrb[0].mxu0
    %168 = vmatprep.mubr.bf16.mxu0 0
    %169 = vmatmul.mubr.bf16.gmra.mrb[0].mxu0 %v110
    %v170 = vpop.f32.mrb[0].mxu0
    %v171 = vadd.f32 %v91, %v170
    %v172 = vpop.f32.mrb[0].mxu0
    %v173 = vpop.f32.mrb[0].mxu0
    %v174 = vadd.f32 %v91, %v173
    %v175 = vpop.f32.mrb[0].mxu0
    %176 = vdwg.mxu0
    %v181 = vunpack.c.l.b16 %v82
    %v182 = vunpack.c.l.b16 %v83
    %v183 = vunpack.c.l.b16 %v84
    %v184 = vunpack.c.l.b16 %v85
    %v185 = vpack.c.b16 %v182, %v181
    %v186 = vpack.c.b16 %v184, %v183
    %vm189 = vcmask 261120
    %v191 = vsel %vm189, 0, 0
    %193 = vmatprep.subr.bf16.mxu0 0
    %194 = vmatpush1.bf16.msra.mxu0 %v185
    %195 = vmatprep.subr.bf16.mxu0 0
    %196 = vmatpush1.bf16.msra.mxu0 %v186
    %197 = vmatprep.subr.bf16.mxu0 0
    %198 = vmatpush1.bf16.msra.mxu0 0
    %199 = vmatprep.subr.bf16.mxu0 0
    %200 = vmatpush1.bf16.msra.mxu0 0
    %201 = vmatprep.subr.bf16.mxu0 0
    %202 = vmatpush1.bf16.msra.mxu0 0
    %203 = vmatprep.subr.bf16.mxu0 0
    %204 = vmatpush1.bf16.msra.mxu0 0
    %205 = vmatprep.subr.bf16.mxu0 0
    %206 = vmatpush1.bf16.msra.mxu0 0
    %207 = vmatprep.subr.bf16.mxu0 0
    %208 = vmatpush1.bf16.msra.mxu0 0
    %209 = vmatprep.subr.bf16.mxu0 0
    %210 = vmatpush1.bf16.msra.mxu0 0
    %211 = vmatprep.subr.bf16.mxu0 0
    %212 = vmatpush1.bf16.msra.mxu0 0
    %213 = vmatprep.subr.bf16.mxu0 0
    %214 = vmatpush1.bf16.msra.mxu0 0
    %215 = vmatprep.subr.bf16.mxu0 0
    %216 = vmatpush1.bf16.msra.mxu0 0
    %217 = vmatprep.subr.bf16.mxu0 0
    %218 = vmatpush1.bf16.msra.mxu0 0
    %219 = vmatprep.subr.bf16.mxu0 0
    %220 = vmatpush1.bf16.msra.mxu0 0
    %221 = vmatprep.subr.bf16.mxu0 0
    %222 = vmatpush1.bf16.msra.mxu0 0
    %223 = vmatprep.subr.bf16.mxu0 0
    %224 = vmatpush1.bf16.msra.mxu0 0
    %225 = vmatprep.mubr.bf16.mxu0 0
    %226 = vmatmul.mubr.bf16.gmra.mrb[0].mxu0 %v191
    %v227 = vpop.f32.mrb[0].mxu0
    %v228 = vadd.f32 0.0, %v227
    %v229 = vpop.f32.mrb[0].mxu0
    %v230 = vpop.f32.mrb[0].mxu0
    %v231 = vpop.f32.mrb[0].mxu0
    %232 = vdwg.mxu0
    %v233 = vadd.f32 %v147, %v228
    %v234 = vtanh.pop %v233
    %v235 = vxor.u32 %v233, 2147483648
    %v236 = vmul.f32 %v235, 1.442695
    %v237 = vpow.pop %v236
    %v238 = vadd.f32 %v237, 1.0
    %v239 = vrcp.pop %v238
    %v240 = vmul.f32 1.0, %v239
    %v241 = vsel %vm67, %v234, %v240
    %242 = vrot.lane.b32.xlu0 %v241, 64
    %v243 = vpop.permute.xlu0 %242
    %v244 = vmul.f32 %v241, %v243
    %245 = vrot.lane.b32.xlu0 %v244, 32
    %v246 = vpop.permute.xlu0 %245
    %v247 = vmul.f32 %v241, 0.0
    %v248 = vadd.f32 %v247, %v246
    %v249 = vtanh.pop %v248
    %v250 = vmul.f32 %v243, %v249
    %v251 = vpack.c.bf16 %v250, %v250
    %v253 = vsel %vm189, %v251, 0
    %255 = vmatprep.subr.bf16.mxu0 0
    %256 = vmatpush1.bf16.msra.mxu0 %v185
    %257 = vmatprep.subr.bf16.mxu0 0
    %258 = vmatpush1.bf16.msra.mxu0 %v186
    %259 = vmatprep.subr.bf16.mxu0 0
    %260 = vmatpush1.bf16.msra.mxu0 0
    %261 = vmatprep.subr.bf16.mxu0 0
    %262 = vmatpush1.bf16.msra.mxu0 0
    %263 = vmatprep.subr.bf16.mxu0 0
    %264 = vmatpush1.bf16.msra.mxu0 0
    %265 = vmatprep.subr.bf16.mxu0 0
    %266 = vmatpush1.bf16.msra.mxu0 0
    %267 = vmatprep.subr.bf16.mxu0 0
    %268 = vmatpush1.bf16.msra.mxu0 0
    %269 = vmatprep.subr.bf16.mxu0 0
    %270 = vmatpush1.bf16.msra.mxu0 0
    %271 = vmatprep.subr.bf16.mxu0 0
    %272 = vmatpush1.bf16.msra.mxu0 0
    %273 = vmatprep.subr.bf16.mxu0 0
    %274 = vmatpush1.bf16.msra.mxu0 0
    %275 = vmatprep.subr.bf16.mxu0 0
    %276 = vmatpush1.bf16.msra.mxu0 0
    %277 = vmatprep.subr.bf16.mxu0 0
    %278 = vmatpush1.bf16.msra.mxu0 0
    %279 = vmatprep.subr.bf16.mxu0 0
    %280 = vmatpush1.bf16.msra.mxu0 0
    %281 = vmatprep.subr.bf16.mxu0 0
    %282 = vmatpush1.bf16.msra.mxu0 0
    %283 = vmatprep.subr.bf16.mxu0 0
    %284 = vmatpush1.bf16.msra.mxu0 0
    %285 = vmatprep.subr.bf16.mxu0 0
    %286 = vmatpush1.bf16.msra.mxu0 0
    %287 = vmatprep.mubr.bf16.mxu0 0
    %288 = vmatmul.mubr.bf16.gmra.mrb[0].mxu0 %v253
    %v289 = vpop.f32.mrb[0].mxu0
    %v290 = vadd.f32 0.0, %v289
    %v291 = vpop.f32.mrb[0].mxu0
    %v292 = vpop.f32.mrb[0].mxu0
    %v293 = vpop.f32.mrb[0].mxu0
    %294 = vdwg.mxu0
    %v295 = vadd.f32 %v150, %v290
    %v296 = vtanh.pop %v295
    %v297 = vxor.u32 %v295, 2147483648
    %v298 = vmul.f32 %v297, 1.442695
    %v299 = vpow.pop %v298
    %v300 = vadd.f32 %v299, 1.0
    %v301 = vrcp.pop %v300
    %v302 = vmul.f32 1.0, %v301
    %v303 = vsel %vm67, %v296, %v302
    %304 = vrot.lane.b32.xlu0 %v303, 64
    %v305 = vpop.permute.xlu0 %304
    %v306 = vmul.f32 %v303, %v305
    %307 = vrot.lane.b32.xlu0 %v306, 32
    %v308 = vpop.permute.xlu0 %307
    %v309 = vmul.f32 %v303, %v248
    %v310 = vadd.f32 %v309, %v308
    %v311 = vtanh.pop %v310
    %v312 = vmul.f32 %v305, %v311
    %v313 = vpack.c.bf16 %v312, %v312
    %v315 = vsel %vm189, %v313, 0
    %317 = vmatprep.subr.bf16.mxu0 0
    %318 = vmatpush1.bf16.msra.mxu0 %v185
    %319 = vmatprep.subr.bf16.mxu0 0
    %320 = vmatpush1.bf16.msra.mxu0 %v186
    %321 = vmatprep.subr.bf16.mxu0 0
    %322 = vmatpush1.bf16.msra.mxu0 0
    %323 = vmatprep.subr.bf16.mxu0 0
    %324 = vmatpush1.bf16.msra.mxu0 0
    %325 = vmatprep.subr.bf16.mxu0 0
    %326 = vmatpush1.bf16.msra.mxu0 0
    %327 = vmatprep.subr.bf16.mxu0 0
    %328 = vmatpush1.bf16.msra.mxu0 0
    %329 = vmatprep.subr.bf16.mxu0 0
    %330 = vmatpush1.bf16.msra.mxu0 0
    %331 = vmatprep.subr.bf16.mxu0 0
    %332 = vmatpush1.bf16.msra.mxu0 0
    %333 = vmatprep.subr.bf16.mxu0 0
    %334 = vmatpush1.bf16.msra.mxu0 0
    %335 = vmatprep.subr.bf16.mxu0 0
    %336 = vmatpush1.bf16.msra.mxu0 0
    %337 = vmatprep.subr.bf16.mxu0 0
    %338 = vmatpush1.bf16.msra.mxu0 0
    %339 = vmatprep.subr.bf16.mxu0 0
    %340 = vmatpush1.bf16.msra.mxu0 0
    %341 = vmatprep.subr.bf16.mxu0 0
    %342 = vmatpush1.bf16.msra.mxu0 0
    %343 = vmatprep.subr.bf16.mxu0 0
    %344 = vmatpush1.bf16.msra.mxu0 0
    %345 = vmatprep.subr.bf16.mxu0 0
    %346 = vmatpush1.bf16.msra.mxu0 0
    %347 = vmatprep.subr.bf16.mxu0 0
    %348 = vmatpush1.bf16.msra.mxu0 0
    %349 = vmatprep.mubr.bf16.mxu0 0
    %350 = vmatmul.mubr.bf16.gmra.mrb[0].mxu0 %v315
    %v351 = vpop.f32.mrb[0].mxu0
    %v352 = vadd.f32 0.0, %v351
    %v353 = vpop.f32.mrb[0].mxu0
    %v354 = vpop.f32.mrb[0].mxu0
    %v355 = vpop.f32.mrb[0].mxu0
    %356 = vdwg.mxu0
    %v357 = vadd.f32 %v155, %v352
    %v358 = vtanh.pop %v357
    %v359 = vxor.u32 %v357, 2147483648
    %v360 = vmul.f32 %v359, 1.442695
    %v361 = vpow.pop %v360
    %v362 = vadd.f32 %v361, 1.0
    %v363 = vrcp.pop %v362
    %v364 = vmul.f32 1.0, %v363
    %v365 = vsel %vm67, %v358, %v364
    %366 = vrot.lane.b32.xlu0 %v365, 64
    %v367 = vpop.permute.xlu0 %366
    %v368 = vmul.f32 %v365, %v367
    %369 = vrot.lane.b32.xlu0 %v368, 32
    %v370 = vpop.permute.xlu0 %369
    %v371 = vmul.f32 %v365, %v310
    %v372 = vadd.f32 %v371, %v370
    %v373 = vtanh.pop %v372
    %v374 = vmul.f32 %v367, %v373
    %v375 = vpack.c.bf16 %v374, %v374
    %v377 = vsel %vm189, %v375, 0
    %379 = vmatprep.subr.bf16.mxu0 0
    %380 = vmatpush1.bf16.msra.mxu0 %v185
    %381 = vmatprep.subr.bf16.mxu0 0
    %382 = vmatpush1.bf16.msra.mxu0 %v186
    %383 = vmatprep.subr.bf16.mxu0 0
    %384 = vmatpush1.bf16.msra.mxu0 0
    %385 = vmatprep.subr.bf16.mxu0 0
    %386 = vmatpush1.bf16.msra.mxu0 0
    %387 = vmatprep.subr.bf16.mxu0 0
    %388 = vmatpush1.bf16.msra.mxu0 0
    %389 = vmatprep.subr.bf16.mxu0 0
    %390 = vmatpush1.bf16.msra.mxu0 0
    %391 = vmatprep.subr.bf16.mxu0 0
    %392 = vmatpush1.bf16.msra.mxu0 0
    %393 = vmatprep.subr.bf16.mxu0 0
    %394 = vmatpush1.bf16.msra.mxu0 0
    %395 = vmatprep.subr.bf16.mxu0 0
    %396 = vmatpush1.bf16.msra.mxu0 0
    %397 = vmatprep.subr.bf16.mxu0 0
    %398 = vmatpush1.bf16.msra.mxu0 0
    %399 = vmatprep.subr.bf16.mxu0 0
    %400 = vmatpush1.bf16.msra.mxu0 0
    %401 = vmatprep.subr.bf16.mxu0 0
    %402 = vmatpush1.bf16.msra.mxu0 0
    %403 = vmatprep.subr.bf16.mxu0 0
    %404 = vmatpush1.bf16.msra.mxu0 0
    %405 = vmatprep.subr.bf16.mxu0 0
    %406 = vmatpush1.bf16.msra.mxu0 0
    %407 = vmatprep.subr.bf16.mxu0 0
    %408 = vmatpush1.bf16.msra.mxu0 0
    %409 = vmatprep.subr.bf16.mxu0 0
    %410 = vmatpush1.bf16.msra.mxu0 0
    %411 = vmatprep.mubr.bf16.mxu0 0
    %412 = vmatmul.mubr.bf16.gmra.mrb[0].mxu0 %v377
    %v413 = vpop.f32.mrb[0].mxu0
    %v414 = vadd.f32 0.0, %v413
    %v415 = vpop.f32.mrb[0].mxu0
    %v416 = vpop.f32.mrb[0].mxu0
    %v417 = vpop.f32.mrb[0].mxu0
    %418 = vdwg.mxu0
    %v419 = vadd.f32 %v158, %v414
    %v420 = vtanh.pop %v419
    %v421 = vxor.u32 %v419, 2147483648
    %v422 = vmul.f32 %v421, 1.442695
    %v423 = vpow.pop %v422
    %v424 = vadd.f32 %v423, 1.0
    %v425 = vrcp.pop %v424
    %v426 = vmul.f32 1.0, %v425
    %v427 = vsel %vm67, %v420, %v426
    %428 = vrot.lane.b32.xlu0 %v427, 64
    %v429 = vpop.permute.xlu0 %428
    %v430 = vmul.f32 %v427, %v429
    %431 = vrot.lane.b32.xlu0 %v430, 32
    %v432 = vpop.permute.xlu0 %431
    %v433 = vmul.f32 %v427, %v372
    %v434 = vadd.f32 %v433, %v432
    %v435 = vtanh.pop %v434
    %v436 = vmul.f32 %v429, %v435
    %v437 = vpack.c.bf16 %v436, %v436
    %v439 = vsel %vm189, %v437, 0
    %441 = vmatprep.subr.bf16.mxu0 0
    %442 = vmatpush1.bf16.msra.mxu0 %v185
    %443 = vmatprep.subr.bf16.mxu0 0
    %444 = vmatpush1.bf16.msra.mxu0 %v186
    %445 = vmatprep.subr.bf16.mxu0 0
    %446 = vmatpush1.bf16.msra.mxu0 0
    %447 = vmatprep.subr.bf16.mxu0 0
    %448 = vmatpush1.bf16.msra.mxu0 0
    %449 = vmatprep.subr.bf16.mxu0 0
    %450 = vmatpush1.bf16.msra.mxu0 0
    %451 = vmatprep.subr.bf16.mxu0 0
    %452 = vmatpush1.bf16.msra.mxu0 0
    %453 = vmatprep.subr.bf16.mxu0 0
    %454 = vmatpush1.bf16.msra.mxu0 0
    %455 = vmatprep.subr.bf16.mxu0 0
    %456 = vmatpush1.bf16.msra.mxu0 0
    %457 = vmatprep.subr.bf16.mxu0 0
    %458 = vmatpush1.bf16.msra.mxu0 0
    %459 = vmatprep.subr.bf16.mxu0 0
    %460 = vmatpush1.bf16.msra.mxu0 0
    %461 = vmatprep.subr.bf16.mxu0 0
    %462 = vmatpush1.bf16.msra.mxu0 0
    %463 = vmatprep.subr.bf16.mxu0 0
    %464 = vmatpush1.bf16.msra.mxu0 0
    %465 = vmatprep.subr.bf16.mxu0 0
    %466 = vmatpush1.bf16.msra.mxu0 0
    %467 = vmatprep.subr.bf16.mxu0 0
    %468 = vmatpush1.bf16.msra.mxu0 0
    %469 = vmatprep.subr.bf16.mxu0 0
    %470 = vmatpush1.bf16.msra.mxu0 0
    %471 = vmatprep.subr.bf16.mxu0 0
    %472 = vmatpush1.bf16.msra.mxu0 0
    %473 = vmatprep.mubr.bf16.mxu0 0
    %474 = vmatmul.mubr.bf16.gmra.mrb[0].mxu0 %v439
    %v475 = vpop.f32.mrb[0].mxu0
    %v476 = vadd.f32 0.0, %v475
    %v477 = vpop.f32.mrb[0].mxu0
    %v478 = vpop.f32.mrb[0].mxu0
    %v479 = vpop.f32.mrb[0].mxu0
    %480 = vdwg.mxu0
    %v481 = vadd.f32 %v163, %v476
    %v482 = vtanh.pop %v481
    %v483 = vxor.u32 %v481, 2147483648
    %v484 = vmul.f32 %v483, 1.442695
    %v485 = vpow.pop %v484
    %v486 = vadd.f32 %v485, 1.0
    %v487 = vrcp.pop %v486
    %v488 = vmul.f32 1.0, %v487
    %v489 = vsel %vm67, %v482, %v488
    %490 = vrot.lane.b32.xlu0 %v489, 64
    %v491 = vpop.permute.xlu0 %490
    %v492 = vmul.f32 %v489, %v491
    %493 = vrot.lane.b32.xlu0 %v492, 32
    %v494 = vpop.permute.xlu0 %493
    %v495 = vmul.f32 %v489, %v434
    %v496 = vadd.f32 %v495, %v494
    %v497 = vtanh.pop %v496
    %v498 = vmul.f32 %v491, %v497
    %v499 = vpack.c.bf16 %v498, %v498
    %v501 = vsel %vm189, %v499, 0
    %503 = vmatprep.subr.bf16.mxu0 0
    %504 = vmatpush1.bf16.msra.mxu0 %v185
    %505 = vmatprep.subr.bf16.mxu0 0
    %506 = vmatpush1.bf16.msra.mxu0 %v186
    %507 = vmatprep.subr.bf16.mxu0 0
    %508 = vmatpush1.bf16.msra.mxu0 0
    %509 = vmatprep.subr.bf16.mxu0 0
    %510 = vmatpush1.bf16.msra.mxu0 0
    %511 = vmatprep.subr.bf16.mxu0 0
    %512 = vmatpush1.bf16.msra.mxu0 0
    %513 = vmatprep.subr.bf16.mxu0 0
    %514 = vmatpush1.bf16.msra.mxu0 0
    %515 = vmatprep.subr.bf16.mxu0 0
    %516 = vmatpush1.bf16.msra.mxu0 0
    %517 = vmatprep.subr.bf16.mxu0 0
    %518 = vmatpush1.bf16.msra.mxu0 0
    %519 = vmatprep.subr.bf16.mxu0 0
    %520 = vmatpush1.bf16.msra.mxu0 0
    %521 = vmatprep.subr.bf16.mxu0 0
    %522 = vmatpush1.bf16.msra.mxu0 0
    %523 = vmatprep.subr.bf16.mxu0 0
    %524 = vmatpush1.bf16.msra.mxu0 0
    %525 = vmatprep.subr.bf16.mxu0 0
    %526 = vmatpush1.bf16.msra.mxu0 0
    %527 = vmatprep.subr.bf16.mxu0 0
    %528 = vmatpush1.bf16.msra.mxu0 0
    %529 = vmatprep.subr.bf16.mxu0 0
    %530 = vmatpush1.bf16.msra.mxu0 0
    %531 = vmatprep.subr.bf16.mxu0 0
    %532 = vmatpush1.bf16.msra.mxu0 0
    %533 = vmatprep.subr.bf16.mxu0 0
    %534 = vmatpush1.bf16.msra.mxu0 0
    %535 = vmatprep.mubr.bf16.mxu0 0
    %536 = vmatmul.mubr.bf16.gmra.mrb[0].mxu0 %v501
    %v537 = vpop.f32.mrb[0].mxu0
    %v538 = vadd.f32 0.0, %v537
    %v539 = vpop.f32.mrb[0].mxu0
    %v540 = vpop.f32.mrb[0].mxu0
    %v541 = vpop.f32.mrb[0].mxu0
    %542 = vdwg.mxu0
    %v543 = vadd.f32 %v166, %v538
    %v544 = vtanh.pop %v543
    %v545 = vxor.u32 %v543, 2147483648
    %v546 = vmul.f32 %v545, 1.442695
    %v547 = vpow.pop %v546
    %v548 = vadd.f32 %v547, 1.0
    %v549 = vrcp.pop %v548
    %v550 = vmul.f32 1.0, %v549
    %v551 = vsel %vm67, %v544, %v550
    %552 = vrot.lane.b32.xlu0 %v551, 64
    %v553 = vpop.permute.xlu0 %552
    %v554 = vmul.f32 %v551, %v553
    %555 = vrot.lane.b32.xlu0 %v554, 32
    %v556 = vpop.permute.xlu0 %555
    %v557 = vmul.f32 %v551, %v496
    %v558 = vadd.f32 %v557, %v556
    %v559 = vtanh.pop %v558
    %v560 = vmul.f32 %v553, %v559
    %v561 = vpack.c.bf16 %v560, %v560
    %v563 = vsel %vm189, %v561, 0
    %565 = vmatprep.subr.bf16.mxu0 0
    %566 = vmatpush1.bf16.msra.mxu0 %v185
    %567 = vmatprep.subr.bf16.mxu0 0
    %568 = vmatpush1.bf16.msra.mxu0 %v186
    %569 = vmatprep.subr.bf16.mxu0 0
    %570 = vmatpush1.bf16.msra.mxu0 0
    %571 = vmatprep.subr.bf16.mxu0 0
    %572 = vmatpush1.bf16.msra.mxu0 0
    %573 = vmatprep.subr.bf16.mxu0 0
    %574 = vmatpush1.bf16.msra.mxu0 0
    %575 = vmatprep.subr.bf16.mxu0 0
    %576 = vmatpush1.bf16.msra.mxu0 0
    %577 = vmatprep.subr.bf16.mxu0 0
    %578 = vmatpush1.bf16.msra.mxu0 0
    %579 = vmatprep.subr.bf16.mxu0 0
    %580 = vmatpush1.bf16.msra.mxu0 0
    %581 = vmatprep.subr.bf16.mxu0 0
    %582 = vmatpush1.bf16.msra.mxu0 0
    %583 = vmatprep.subr.bf16.mxu0 0
    %584 = vmatpush1.bf16.msra.mxu0 0
    %585 = vmatprep.subr.bf16.mxu0 0
    %586 = vmatpush1.bf16.msra.mxu0 0
    %587 = vmatprep.subr.bf16.mxu0 0
    %588 = vmatpush1.bf16.msra.mxu0 0
    %589 = vmatprep.subr.bf16.mxu0 0
    %590 = vmatpush1.bf16.msra.mxu0 0
    %591 = vmatprep.subr.bf16.mxu0 0
    %592 = vmatpush1.bf16.msra.mxu0 0
    %593 = vmatprep.subr.bf16.mxu0 0
    %594 = vmatpush1.bf16.msra.mxu0 0
    %595 = vmatprep.subr.bf16.mxu0 0
    %596 = vmatpush1.bf16.msra.mxu0 0
    %597 = vmatprep.mubr.bf16.mxu0 0
    %598 = vmatmul.mubr.bf16.gmra.mrb[0].mxu0 %v563
    %v599 = vpop.f32.mrb[0].mxu0
    %v600 = vadd.f32 0.0, %v599
    %v601 = vpop.f32.mrb[0].mxu0
    %v602 = vpop.f32.mrb[0].mxu0
    %v603 = vpop.f32.mrb[0].mxu0
    %604 = vdwg.mxu0
    %v605 = vadd.f32 %v171, %v600
    %v606 = vtanh.pop %v605
    %v607 = vxor.u32 %v605, 2147483648
    %v608 = vmul.f32 %v607, 1.442695
    %v609 = vpow.pop %v608
    %v610 = vadd.f32 %v609, 1.0
    %v611 = vrcp.pop %v610
    %v612 = vmul.f32 1.0, %v611
    %v613 = vsel %vm67, %v606, %v612
    %614 = vrot.lane.b32.xlu0 %v613, 64
    %v615 = vpop.permute.xlu0 %614
    %v616 = vmul.f32 %v613, %v615
    %617 = vrot.lane.b32.xlu0 %v616, 32
    %v618 = vpop.permute.xlu0 %617
    %v619 = vmul.f32 %v613, %v558
    %v620 = vadd.f32 %v619, %v618
    %v621 = vtanh.pop %v620
    %v622 = vmul.f32 %v615, %v621
    %v623 = vpack.c.bf16 %v622, %v622
    %v625 = vsel %vm189, %v623, 0
    %627 = vmatprep.subr.bf16.mxu0 0
    %628 = vmatpush1.bf16.msra.mxu0 %v185
    %629 = vmatprep.subr.bf16.mxu0 0
    %630 = vmatpush1.bf16.msra.mxu0 %v186
    %631 = vmatprep.subr.bf16.mxu0 0
    %632 = vmatpush1.bf16.msra.mxu0 0
    %633 = vmatprep.subr.bf16.mxu0 0
    %634 = vmatpush1.bf16.msra.mxu0 0
    %635 = vmatprep.subr.bf16.mxu0 0
    %636 = vmatpush1.bf16.msra.mxu0 0
    %637 = vmatprep.subr.bf16.mxu0 0
    %638 = vmatpush1.bf16.msra.mxu0 0
    %639 = vmatprep.subr.bf16.mxu0 0
    %640 = vmatpush1.bf16.msra.mxu0 0
    %641 = vmatprep.subr.bf16.mxu0 0
    %642 = vmatpush1.bf16.msra.mxu0 0
    %643 = vmatprep.subr.bf16.mxu0 0
    %644 = vmatpush1.bf16.msra.mxu0 0
    %645 = vmatprep.subr.bf16.mxu0 0
    %646 = vmatpush1.bf16.msra.mxu0 0
    %647 = vmatprep.subr.bf16.mxu0 0
    %648 = vmatpush1.bf16.msra.mxu0 0
    %649 = vmatprep.subr.bf16.mxu0 0
    %650 = vmatpush1.bf16.msra.mxu0 0
    %651 = vmatprep.subr.bf16.mxu0 0
    %652 = vmatpush1.bf16.msra.mxu0 0
    %653 = vmatprep.subr.bf16.mxu0 0
    %654 = vmatpush1.bf16.msra.mxu0 0
    %655 = vmatprep.subr.bf16.mxu0 0
    %656 = vmatpush1.bf16.msra.mxu0 0
    %657 = vmatprep.subr.bf16.mxu0 0
    %658 = vmatpush1.bf16.msra.mxu0 0
    %659 = vmatprep.mubr.bf16.mxu0 0
    %660 = vmatmul.mubr.bf16.gmra.mrb[0].mxu0 %v625
    %v661 = vpop.f32.mrb[0].mxu0
    %v662 = vadd.f32 0.0, %v661
    %v663 = vpop.f32.mrb[0].mxu0
    %v664 = vpop.f32.mrb[0].mxu0
    %v665 = vpop.f32.mrb[0].mxu0
    %666 = vdwg.mxu0
    %v667 = vadd.f32 %v174, %v662
    %v668 = vtanh.pop %v667
    %v669 = vxor.u32 %v667, 2147483648
    %v670 = vmul.f32 %v669, 1.442695
    %v671 = vpow.pop %v670
    %v672 = vadd.f32 %v671, 1.0
    %v673 = vrcp.pop %v672
    %v674 = vmul.f32 1.0, %v673
    %v675 = vsel %vm67, %v668, %v674
    %676 = vrot.lane.b32.xlu0 %v675, 64
    %v677 = vpop.permute.xlu0 %676
    %v678 = vmul.f32 %v675, %v677
    %679 = vrot.lane.b32.xlu0 %v678, 32
    %v680 = vpop.permute.xlu0 %679
    %v681 = vmul.f32 %v675, %v620
    %v682 = vadd.f32 %v681, %v680
    %v683 = vtanh.pop %v682
    %v684 = vmul.f32 %v677, %v683
    %v685 = vpack.c.bf16 %v312, %v250
    %v686 = vpack.c.bf16 %v436, %v374
    %v687 = vpack.c.bf16 %v560, %v498
    %v688 = vpack.c.bf16 %v684, %v622
    %v689 = vld [vmem:[%s4] sm:$0xf]
    %v690 = vld [vmem:[%s4 + $0x4] sm:$0xf]
    %v691 = vld [vmem:[%s4 + $0x8] sm:$0xf]
    %v692 = vld [vmem:[%s4 + $0xc] sm:$0xf]
    %v693 = vld [vmem:[%s5] sm:$0xf]
    %v694 = vld [vmem:[%s5 + $0x4] sm:$0xf]
    %v695 = vld [vmem:[%s5 + $0x8] sm:$0xf]
    %v696 = vld [vmem:[%s5 + $0xc] sm:$0xf]
    %v697 = vld [vmem:[%s6] sm:$0x1]
    %v699 = vlaneseq
    %v700 = vshrl.u32 %v699, 7
    %v701 = vsub.s32 0, %v700
    %v702 = vrot.slane %v697, %v701
    %v708 = vunpack.c.l.b16 %v689
    %v709 = vunpack.c.l.b16 %v690
    %v710 = vunpack.c.l.b16 %v691
    %v711 = vunpack.c.l.b16 %v692
    %v712 = vpack.c.b16 %v709, %v708
    %v713 = vpack.c.b16 %v711, %v710
    %v717 = vsel %vm189, %v685, 0
    %v720 = vsel %vm189, %v686, 0
    %v723 = vsel %vm189, %v687, 0
    %v726 = vsel %vm189, %v688, 0
    %728 = vmatprep.subr.bf16.mxu0 0
    %729 = vmatpush1.bf16.msra.mxu0 %v712
    %730 = vmatprep.subr.bf16.mxu0 0
    %731 = vmatpush1.bf16.msra.mxu0 %v713
    %732 = vmatprep.subr.bf16.mxu0 0
    %733 = vmatpush1.bf16.msra.mxu0 0
    %734 = vmatprep.subr.bf16.mxu0 0
    %735 = vmatpush1.bf16.msra.mxu0 0
    %736 = vmatprep.subr.bf16.mxu0 0
    %737 = vmatpush1.bf16.msra.mxu0 0
    %738 = vmatprep.subr.bf16.mxu0 0
    %739 = vmatpush1.bf16.msra.mxu0 0
    %740 = vmatprep.subr.bf16.mxu0 0
    %741 = vmatpush1.bf16.msra.mxu0 0
    %742 = vmatprep.subr.bf16.mxu0 0
    %743 = vmatpush1.bf16.msra.mxu0 0
    %744 = vmatprep.subr.bf16.mxu0 0
    %745 = vmatpush1.bf16.msra.mxu0 0
    %746 = vmatprep.subr.bf16.mxu0 0
    %747 = vmatpush1.bf16.msra.mxu0 0
    %748 = vmatprep.subr.bf16.mxu0 0
    %749 = vmatpush1.bf16.msra.mxu0 0
    %750 = vmatprep.subr.bf16.mxu0 0
    %751 = vmatpush1.bf16.msra.mxu0 0
    %752 = vmatprep.subr.bf16.mxu0 0
    %753 = vmatpush1.bf16.msra.mxu0 0
    %754 = vmatprep.subr.bf16.mxu0 0
    %755 = vmatpush1.bf16.msra.mxu0 0
    %756 = vmatprep.subr.bf16.mxu0 0
    %757 = vmatpush1.bf16.msra.mxu0 0
    %758 = vmatprep.subr.bf16.mxu0 0
    %759 = vmatpush1.bf16.msra.mxu0 0
    %760 = vmatprep.mubr.bf16.mxu0 0
    %761 = vmatmul.mubr.bf16.gmra.mrb[0].mxu0 %v717
    %v762 = vpop.f32.mrb[0].mxu0
    %v763 = vadd.f32 %v702, %v762
    %v764 = vpop.f32.mrb[0].mxu0
    %v765 = vpop.f32.mrb[0].mxu0
    %v766 = vadd.f32 %v702, %v765
    %v767 = vpop.f32.mrb[0].mxu0
    %768 = vmatprep.mubr.bf16.mxu0 0
    %769 = vmatmul.mubr.bf16.gmra.mrb[0].mxu0 %v720
    %v770 = vpop.f32.mrb[0].mxu0
    %v771 = vadd.f32 %v702, %v770
    %v772 = vpop.f32.mrb[0].mxu0
    %v773 = vpop.f32.mrb[0].mxu0
    %v774 = vadd.f32 %v702, %v773
    %v775 = vpop.f32.mrb[0].mxu0
    %776 = vmatprep.mubr.bf16.mxu0 0
    %777 = vmatmul.mubr.bf16.gmra.mrb[0].mxu0 %v723
    %v778 = vpop.f32.mrb[0].mxu0
    %v779 = vadd.f32 %v702, %v778
    %v780 = vpop.f32.mrb[0].mxu0
    %v781 = vpop.f32.mrb[0].mxu0
    %v782 = vadd.f32 %v702, %v781
    %v783 = vpop.f32.mrb[0].mxu0
    %784 = vmatprep.mubr.bf16.mxu0 0
    %785 = vmatmul.mubr.bf16.gmra.mrb[0].mxu0 %v726
    %v786 = vpop.f32.mrb[0].mxu0
    %v787 = vadd.f32 %v702, %v786
    %v788 = vpop.f32.mrb[0].mxu0
    %v789 = vpop.f32.mrb[0].mxu0
    %v790 = vadd.f32 %v702, %v789
    %v791 = vpop.f32.mrb[0].mxu0
    %792 = vdwg.mxu0
    %v797 = vunpack.c.l.b16 %v693
    %v798 = vunpack.c.l.b16 %v694
    %v799 = vunpack.c.l.b16 %v695
    %v800 = vunpack.c.l.b16 %v696
    %v801 = vpack.c.b16 %v798, %v797
    %v802 = vpack.c.b16 %v800, %v799
    %805 = vmatprep.subr.bf16.mxu0 0
    %806 = vmatpush1.bf16.msra.mxu0 %v801
    %807 = vmatprep.subr.bf16.mxu0 0
    %808 = vmatpush1.bf16.msra.mxu0 %v802
    %809 = vmatprep.subr.bf16.mxu0 0
    %810 = vmatpush1.bf16.msra.mxu0 0
    %811 = vmatprep.subr.bf16.mxu0 0
    %812 = vmatpush1.bf16.msra.mxu0 0
    %813 = vmatprep.subr.bf16.mxu0 0
    %814 = vmatpush1.bf16.msra.mxu0 0
    %815 = vmatprep.subr.bf16.mxu0 0
    %816 = vmatpush1.bf16.msra.mxu0 0
    %817 = vmatprep.subr.bf16.mxu0 0
    %818 = vmatpush1.bf16.msra.mxu0 0
    %819 = vmatprep.subr.bf16.mxu0 0
    %820 = vmatpush1.bf16.msra.mxu0 0
    %821 = vmatprep.subr.bf16.mxu0 0
    %822 = vmatpush1.bf16.msra.mxu0 0
    %823 = vmatprep.subr.bf16.mxu0 0
    %824 = vmatpush1.bf16.msra.mxu0 0
    %825 = vmatprep.subr.bf16.mxu0 0
    %826 = vmatpush1.bf16.msra.mxu0 0
    %827 = vmatprep.subr.bf16.mxu0 0
    %828 = vmatpush1.bf16.msra.mxu0 0
    %829 = vmatprep.subr.bf16.mxu0 0
    %830 = vmatpush1.bf16.msra.mxu0 0
    %831 = vmatprep.subr.bf16.mxu0 0
    %832 = vmatpush1.bf16.msra.mxu0 0
    %833 = vmatprep.subr.bf16.mxu0 0
    %834 = vmatpush1.bf16.msra.mxu0 0
    %835 = vmatprep.subr.bf16.mxu0 0
    %836 = vmatpush1.bf16.msra.mxu0 0
    %837 = vmatprep.mubr.bf16.mxu0 0
    %838 = vmatmul.mubr.bf16.gmra.mrb[0].mxu0 %v191
    %v839 = vpop.f32.mrb[0].mxu0
    %v840 = vadd.f32 0.0, %v839
    %v841 = vpop.f32.mrb[0].mxu0
    %v842 = vpop.f32.mrb[0].mxu0
    %v843 = vpop.f32.mrb[0].mxu0
    %844 = vdwg.mxu0
    %v845 = vadd.f32 %v763, %v840
    %v846 = vtanh.pop %v845
    %v847 = vxor.u32 %v845, 2147483648
    %v848 = vmul.f32 %v847, 1.442695
    %v849 = vpow.pop %v848
    %v850 = vadd.f32 %v849, 1.0
    %v851 = vrcp.pop %v850
    %v852 = vmul.f32 1.0, %v851
    %v853 = vsel %vm67, %v846, %v852
    %854 = vrot.lane.b32.xlu0 %v853, 64
    %v855 = vpop.permute.xlu0 %854
    %v856 = vmul.f32 %v853, %v855
    %857 = vrot.lane.b32.xlu0 %v856, 32
    %v858 = vpop.permute.xlu0 %857
    %v859 = vmul.f32 %v853, 0.0
    %v860 = vadd.f32 %v859, %v858
    %v861 = vtanh.pop %v860
    %v862 = vmul.f32 %v855, %v861
    %v863 = vpack.c.bf16 %v862, %v862
    %v865 = vsel %vm189, %v863, 0
    %867 = vmatprep.subr.bf16.mxu0 0
    %868 = vmatpush1.bf16.msra.mxu0 %v801
    %869 = vmatprep.subr.bf16.mxu0 0
    %870 = vmatpush1.bf16.msra.mxu0 %v802
    %871 = vmatprep.subr.bf16.mxu0 0
    %872 = vmatpush1.bf16.msra.mxu0 0
    %873 = vmatprep.subr.bf16.mxu0 0
    %874 = vmatpush1.bf16.msra.mxu0 0
    %875 = vmatprep.subr.bf16.mxu0 0
    %876 = vmatpush1.bf16.msra.mxu0 0
    %877 = vmatprep.subr.bf16.mxu0 0
    %878 = vmatpush1.bf16.msra.mxu0 0
    %879 = vmatprep.subr.bf16.mxu0 0
    %880 = vmatpush1.bf16.msra.mxu0 0
    %881 = vmatprep.subr.bf16.mxu0 0
    %882 = vmatpush1.bf16.msra.mxu0 0
    %883 = vmatprep.subr.bf16.mxu0 0
    %884 = vmatpush1.bf16.msra.mxu0 0
    %885 = vmatprep.subr.bf16.mxu0 0
    %886 = vmatpush1.bf16.msra.mxu0 0
    %887 = vmatprep.subr.bf16.mxu0 0
    %888 = vmatpush1.bf16.msra.mxu0 0
    %889 = vmatprep.subr.bf16.mxu0 0
    %890 = vmatpush1.bf16.msra.mxu0 0
    %891 = vmatprep.subr.bf16.mxu0 0
    %892 = vmatpush1.bf16.msra.mxu0 0
    %893 = vmatprep.subr.bf16.mxu0 0
    %894 = vmatpush1.bf16.msra.mxu0 0
    %895 = vmatprep.subr.bf16.mxu0 0
    %896 = vmatpush1.bf16.msra.mxu0 0
    %897 = vmatprep.subr.bf16.mxu0 0
    %898 = vmatpush1.bf16.msra.mxu0 0
    %899 = vmatprep.mubr.bf16.mxu0 0
    %900 = vmatmul.mubr.bf16.gmra.mrb[0].mxu0 %v865
    %v901 = vpop.f32.mrb[0].mxu0
    %v902 = vadd.f32 0.0, %v901
    %v903 = vpop.f32.mrb[0].mxu0
    %v904 = vpop.f32.mrb[0].mxu0
    %v905 = vpop.f32.mrb[0].mxu0
    %906 = vdwg.mxu0
    %v907 = vadd.f32 %v766, %v902
    %v908 = vtanh.pop %v907
    %v909 = vxor.u32 %v907, 2147483648
    %v910 = vmul.f32 %v909, 1.442695
    %v911 = vpow.pop %v910
    %v912 = vadd.f32 %v911, 1.0
    %v913 = vrcp.pop %v912
    %v914 = vmul.f32 1.0, %v913
    %v915 = vsel %vm67, %v908, %v914
    %916 = vrot.lane.b32.xlu0 %v915, 64
    %v917 = vpop.permute.xlu0 %916
    %v918 = vmul.f32 %v915, %v917
    %919 = vrot.lane.b32.xlu0 %v918, 32
    %v920 = vpop.permute.xlu0 %919
    %v921 = vmul.f32 %v915, %v860
    %v922 = vadd.f32 %v921, %v920
    %v923 = vtanh.pop %v922
    %v924 = vmul.f32 %v917, %v923
    %v925 = vpack.c.bf16 %v924, %v924
    %v927 = vsel %vm189, %v925, 0
    %929 = vmatprep.subr.bf16.mxu0 0
    %930 = vmatpush1.bf16.msra.mxu0 %v801
    %931 = vmatprep.subr.bf16.mxu0 0
    %932 = vmatpush1.bf16.msra.mxu0 %v802
    %933 = vmatprep.subr.bf16.mxu0 0
    %934 = vmatpush1.bf16.msra.mxu0 0
    %935 = vmatprep.subr.bf16.mxu0 0
    %936 = vmatpush1.bf16.msra.mxu0 0
    %937 = vmatprep.subr.bf16.mxu0 0
    %938 = vmatpush1.bf16.msra.mxu0 0
    %939 = vmatprep.subr.bf16.mxu0 0
    %940 = vmatpush1.bf16.msra.mxu0 0
    %941 = vmatprep.subr.bf16.mxu0 0
    %942 = vmatpush1.bf16.msra.mxu0 0
    %943 = vmatprep.subr.bf16.mxu0 0
    %944 = vmatpush1.bf16.msra.mxu0 0
    %945 = vmatprep.subr.bf16.mxu0 0
    %946 = vmatpush1.bf16.msra.mxu0 0
    %947 = vmatprep.subr.bf16.mxu0 0
    %948 = vmatpush1.bf16.msra.mxu0 0
    %949 = vmatprep.subr.bf16.mxu0 0
    %950 = vmatpush1.bf16.msra.mxu0 0
    %951 = vmatprep.subr.bf16.mxu0 0
    %952 = vmatpush1.bf16.msra.mxu0 0
    %953 = vmatprep.subr.bf16.mxu0 0
    %954 = vmatpush1.bf16.msra.mxu0 0
    %955 = vmatprep.subr.bf16.mxu0 0
    %956 = vmatpush1.bf16.msra.mxu0 0
    %957 = vmatprep.subr.bf16.mxu0 0
    %958 = vmatpush1.bf16.msra.mxu0 0
    %959 = vmatprep.subr.bf16.mxu0 0
    %960 = vmatpush1.bf16.msra.mxu0 0
    %961 = vmatprep.mubr.bf16.mxu0 0
    %962 = vmatmul.mubr.bf16.gmra.mrb[0].mxu0 %v927
    %v963 = vpop.f32.mrb[0].mxu0
    %v964 = vadd.f32 0.0, %v963
    %v965 = vpop.f32.mrb[0].mxu0
    %v966 = vpop.f32.mrb[0].mxu0
    %v967 = vpop.f32.mrb[0].mxu0
    %968 = vdwg.mxu0
    %v969 = vadd.f32 %v771, %v964
    %v970 = vtanh.pop %v969
    %v971 = vxor.u32 %v969, 2147483648
    %v972 = vmul.f32 %v971, 1.442695
    %v973 = vpow.pop %v972
    %v974 = vadd.f32 %v973, 1.0
    %v975 = vrcp.pop %v974
    %v976 = vmul.f32 1.0, %v975
    %v977 = vsel %vm67, %v970, %v976
    %978 = vrot.lane.b32.xlu0 %v977, 64
    %v979 = vpop.permute.xlu0 %978
    %v980 = vmul.f32 %v977, %v979
    %981 = vrot.lane.b32.xlu0 %v980, 32
    %v982 = vpop.permute.xlu0 %981
    %v983 = vmul.f32 %v977, %v922
    %v984 = vadd.f32 %v983, %v982
    %v985 = vtanh.pop %v984
    %v986 = vmul.f32 %v979, %v985
    %v987 = vpack.c.bf16 %v986, %v986
    %v989 = vsel %vm189, %v987, 0
    %991 = vmatprep.subr.bf16.mxu0 0
    %992 = vmatpush1.bf16.msra.mxu0 %v801
    %993 = vmatprep.subr.bf16.mxu0 0
    %994 = vmatpush1.bf16.msra.mxu0 %v802
    %995 = vmatprep.subr.bf16.mxu0 0
    %996 = vmatpush1.bf16.msra.mxu0 0
    %997 = vmatprep.subr.bf16.mxu0 0
    %998 = vmatpush1.bf16.msra.mxu0 0
    %999 = vmatprep.subr.bf16.mxu0 0
    %1000 = vmatpush1.bf16.msra.mxu0 0
    %1001 = vmatprep.subr.bf16.mxu0 0
    %1002 = vmatpush1.bf16.msra.mxu0 0
    %1003 = vmatprep.subr.bf16.mxu0 0
    %1004 = vmatpush1.bf16.msra.mxu0 0
    %1005 = vmatprep.subr.bf16.mxu0 0
    %1006 = vmatpush1.bf16.msra.mxu0 0
    %1007 = vmatprep.subr.bf16.mxu0 0
    %1008 = vmatpush1.bf16.msra.mxu0 0
    %1009 = vmatprep.subr.bf16.mxu0 0
    %1010 = vmatpush1.bf16.msra.mxu0 0
    %1011 = vmatprep.subr.bf16.mxu0 0
    %1012 = vmatpush1.bf16.msra.mxu0 0
    %1013 = vmatprep.subr.bf16.mxu0 0
    %1014 = vmatpush1.bf16.msra.mxu0 0
    %1015 = vmatprep.subr.bf16.mxu0 0
    %1016 = vmatpush1.bf16.msra.mxu0 0
    %1017 = vmatprep.subr.bf16.mxu0 0
    %1018 = vmatpush1.bf16.msra.mxu0 0
    %1019 = vmatprep.subr.bf16.mxu0 0
    %1020 = vmatpush1.bf16.msra.mxu0 0
    %1021 = vmatprep.subr.bf16.mxu0 0
    %1022 = vmatpush1.bf16.msra.mxu0 0
    %1023 = vmatprep.mubr.bf16.mxu0 0
    %1024 = vmatmul.mubr.bf16.gmra.mrb[0].mxu0 %v989
    %v1025 = vpop.f32.mrb[0].mxu0
    %v1026 = vadd.f32 0.0, %v1025
    %v1027 = vpop.f32.mrb[0].mxu0
    %v1028 = vpop.f32.mrb[0].mxu0
    %v1029 = vpop.f32.mrb[0].mxu0
    %1030 = vdwg.mxu0
    %v1031 = vadd.f32 %v774, %v1026
    %v1032 = vtanh.pop %v1031
    %v1033 = vxor.u32 %v1031, 2147483648
    %v1034 = vmul.f32 %v1033, 1.442695
    %v1035 = vpow.pop %v1034
    %v1036 = vadd.f32 %v1035, 1.0
    %v1037 = vrcp.pop %v1036
    %v1038 = vmul.f32 1.0, %v1037
    %v1039 = vsel %vm67, %v1032, %v1038
    %1040 = vrot.lane.b32.xlu0 %v1039, 64
    %v1041 = vpop.permute.xlu0 %1040
    %v1042 = vmul.f32 %v1039, %v1041
    %1043 = vrot.lane.b32.xlu0 %v1042, 32
    %v1044 = vpop.permute.xlu0 %1043
    %v1045 = vmul.f32 %v1039, %v984
    %v1046 = vadd.f32 %v1045, %v1044
    %v1047 = vtanh.pop %v1046
    %v1048 = vmul.f32 %v1041, %v1047
    %v1049 = vpack.c.bf16 %v1048, %v1048
    %v1051 = vsel %vm189, %v1049, 0
    %1053 = vmatprep.subr.bf16.mxu0 0
    %1054 = vmatpush1.bf16.msra.mxu0 %v801
    %1055 = vmatprep.subr.bf16.mxu0 0
    %1056 = vmatpush1.bf16.msra.mxu0 %v802
    %1057 = vmatprep.subr.bf16.mxu0 0
    %1058 = vmatpush1.bf16.msra.mxu0 0
    %1059 = vmatprep.subr.bf16.mxu0 0
    %1060 = vmatpush1.bf16.msra.mxu0 0
    %1061 = vmatprep.subr.bf16.mxu0 0
    %1062 = vmatpush1.bf16.msra.mxu0 0
    %1063 = vmatprep.subr.bf16.mxu0 0
    %1064 = vmatpush1.bf16.msra.mxu0 0
    %1065 = vmatprep.subr.bf16.mxu0 0
    %1066 = vmatpush1.bf16.msra.mxu0 0
    %1067 = vmatprep.subr.bf16.mxu0 0
    %1068 = vmatpush1.bf16.msra.mxu0 0
    %1069 = vmatprep.subr.bf16.mxu0 0
    %1070 = vmatpush1.bf16.msra.mxu0 0
    %1071 = vmatprep.subr.bf16.mxu0 0
    %1072 = vmatpush1.bf16.msra.mxu0 0
    %1073 = vmatprep.subr.bf16.mxu0 0
    %1074 = vmatpush1.bf16.msra.mxu0 0
    %1075 = vmatprep.subr.bf16.mxu0 0
    %1076 = vmatpush1.bf16.msra.mxu0 0
    %1077 = vmatprep.subr.bf16.mxu0 0
    %1078 = vmatpush1.bf16.msra.mxu0 0
    %1079 = vmatprep.subr.bf16.mxu0 0
    %1080 = vmatpush1.bf16.msra.mxu0 0
    %1081 = vmatprep.subr.bf16.mxu0 0
    %1082 = vmatpush1.bf16.msra.mxu0 0
    %1083 = vmatprep.subr.bf16.mxu0 0
    %1084 = vmatpush1.bf16.msra.mxu0 0
    %1085 = vmatprep.mubr.bf16.mxu0 0
    %1086 = vmatmul.mubr.bf16.gmra.mrb[0].mxu0 %v1051
    %v1087 = vpop.f32.mrb[0].mxu0
    %v1088 = vadd.f32 0.0, %v1087
    %v1089 = vpop.f32.mrb[0].mxu0
    %v1090 = vpop.f32.mrb[0].mxu0
    %v1091 = vpop.f32.mrb[0].mxu0
    %1092 = vdwg.mxu0
    %v1093 = vadd.f32 %v779, %v1088
    %v1094 = vtanh.pop %v1093
    %v1095 = vxor.u32 %v1093, 2147483648
    %v1096 = vmul.f32 %v1095, 1.442695
    %v1097 = vpow.pop %v1096
    %v1098 = vadd.f32 %v1097, 1.0
    %v1099 = vrcp.pop %v1098
    %v1100 = vmul.f32 1.0, %v1099
    %v1101 = vsel %vm67, %v1094, %v1100
    %1102 = vrot.lane.b32.xlu0 %v1101, 64
    %v1103 = vpop.permute.xlu0 %1102
    %v1104 = vmul.f32 %v1101, %v1103
    %1105 = vrot.lane.b32.xlu0 %v1104, 32
    %v1106 = vpop.permute.xlu0 %1105
    %v1107 = vmul.f32 %v1101, %v1046
    %v1108 = vadd.f32 %v1107, %v1106
    %v1109 = vtanh.pop %v1108
    %v1110 = vmul.f32 %v1103, %v1109
    %v1111 = vpack.c.bf16 %v1110, %v1110
    %v1113 = vsel %vm189, %v1111, 0
    %1115 = vmatprep.subr.bf16.mxu0 0
    %1116 = vmatpush1.bf16.msra.mxu0 %v801
    %1117 = vmatprep.subr.bf16.mxu0 0
    %1118 = vmatpush1.bf16.msra.mxu0 %v802
    %1119 = vmatprep.subr.bf16.mxu0 0
    %1120 = vmatpush1.bf16.msra.mxu0 0
    %1121 = vmatprep.subr.bf16.mxu0 0
    %1122 = vmatpush1.bf16.msra.mxu0 0
    %1123 = vmatprep.subr.bf16.mxu0 0
    %1124 = vmatpush1.bf16.msra.mxu0 0
    %1125 = vmatprep.subr.bf16.mxu0 0
    %1126 = vmatpush1.bf16.msra.mxu0 0
    %1127 = vmatprep.subr.bf16.mxu0 0
    %1128 = vmatpush1.bf16.msra.mxu0 0
    %1129 = vmatprep.subr.bf16.mxu0 0
    %1130 = vmatpush1.bf16.msra.mxu0 0
    %1131 = vmatprep.subr.bf16.mxu0 0
    %1132 = vmatpush1.bf16.msra.mxu0 0
    %1133 = vmatprep.subr.bf16.mxu0 0
    %1134 = vmatpush1.bf16.msra.mxu0 0
    %1135 = vmatprep.subr.bf16.mxu0 0
    %1136 = vmatpush1.bf16.msra.mxu0 0
    %1137 = vmatprep.subr.bf16.mxu0 0
    %1138 = vmatpush1.bf16.msra.mxu0 0
    %1139 = vmatprep.subr.bf16.mxu0 0
    %1140 = vmatpush1.bf16.msra.mxu0 0
    %1141 = vmatprep.subr.bf16.mxu0 0
    %1142 = vmatpush1.bf16.msra.mxu0 0
    %1143 = vmatprep.subr.bf16.mxu0 0
    %1144 = vmatpush1.bf16.msra.mxu0 0
    %1145 = vmatprep.subr.bf16.mxu0 0
    %1146 = vmatpush1.bf16.msra.mxu0 0
    %1147 = vmatprep.mubr.bf16.mxu0 0
    %1148 = vmatmul.mubr.bf16.gmra.mrb[0].mxu0 %v1113
    %v1149 = vpop.f32.mrb[0].mxu0
    %v1150 = vadd.f32 0.0, %v1149
    %v1151 = vpop.f32.mrb[0].mxu0
    %v1152 = vpop.f32.mrb[0].mxu0
    %v1153 = vpop.f32.mrb[0].mxu0
    %1154 = vdwg.mxu0
    %v1155 = vadd.f32 %v782, %v1150
    %v1156 = vtanh.pop %v1155
    %v1157 = vxor.u32 %v1155, 2147483648
    %v1158 = vmul.f32 %v1157, 1.442695
    %v1159 = vpow.pop %v1158
    %v1160 = vadd.f32 %v1159, 1.0
    %v1161 = vrcp.pop %v1160
    %v1162 = vmul.f32 1.0, %v1161
    %v1163 = vsel %vm67, %v1156, %v1162
    %1164 = vrot.lane.b32.xlu0 %v1163, 64
    %v1165 = vpop.permute.xlu0 %1164
    %v1166 = vmul.f32 %v1163, %v1165
    %1167 = vrot.lane.b32.xlu0 %v1166, 32
    %v1168 = vpop.permute.xlu0 %1167
    %v1169 = vmul.f32 %v1163, %v1108
    %v1170 = vadd.f32 %v1169, %v1168
    %v1171 = vtanh.pop %v1170
    %v1172 = vmul.f32 %v1165, %v1171
    %v1173 = vpack.c.bf16 %v1172, %v1172
    %v1175 = vsel %vm189, %v1173, 0
    %1177 = vmatprep.subr.bf16.mxu0 0
    %1178 = vmatpush1.bf16.msra.mxu0 %v801
    %1179 = vmatprep.subr.bf16.mxu0 0
    %1180 = vmatpush1.bf16.msra.mxu0 %v802
    %1181 = vmatprep.subr.bf16.mxu0 0
    %1182 = vmatpush1.bf16.msra.mxu0 0
    %1183 = vmatprep.subr.bf16.mxu0 0
    %1184 = vmatpush1.bf16.msra.mxu0 0
    %1185 = vmatprep.subr.bf16.mxu0 0
    %1186 = vmatpush1.bf16.msra.mxu0 0
    %1187 = vmatprep.subr.bf16.mxu0 0
    %1188 = vmatpush1.bf16.msra.mxu0 0
    %1189 = vmatprep.subr.bf16.mxu0 0
    %1190 = vmatpush1.bf16.msra.mxu0 0
    %1191 = vmatprep.subr.bf16.mxu0 0
    %1192 = vmatpush1.bf16.msra.mxu0 0
    %1193 = vmatprep.subr.bf16.mxu0 0
    %1194 = vmatpush1.bf16.msra.mxu0 0
    %1195 = vmatprep.subr.bf16.mxu0 0
    %1196 = vmatpush1.bf16.msra.mxu0 0
    %1197 = vmatprep.subr.bf16.mxu0 0
    %1198 = vmatpush1.bf16.msra.mxu0 0
    %1199 = vmatprep.subr.bf16.mxu0 0
    %1200 = vmatpush1.bf16.msra.mxu0 0
    %1201 = vmatprep.subr.bf16.mxu0 0
    %1202 = vmatpush1.bf16.msra.mxu0 0
    %1203 = vmatprep.subr.bf16.mxu0 0
    %1204 = vmatpush1.bf16.msra.mxu0 0
    %1205 = vmatprep.subr.bf16.mxu0 0
    %1206 = vmatpush1.bf16.msra.mxu0 0
    %1207 = vmatprep.subr.bf16.mxu0 0
    %1208 = vmatpush1.bf16.msra.mxu0 0
    %1209 = vmatprep.mubr.bf16.mxu0 0
    %1210 = vmatmul.mubr.bf16.gmra.mrb[0].mxu0 %v1175
    %v1211 = vpop.f32.mrb[0].mxu0
    %v1212 = vadd.f32 0.0, %v1211
    %v1213 = vpop.f32.mrb[0].mxu0
    %v1214 = vpop.f32.mrb[0].mxu0
    %v1215 = vpop.f32.mrb[0].mxu0
    %1216 = vdwg.mxu0
    %v1217 = vadd.f32 %v787, %v1212
    %v1218 = vtanh.pop %v1217
    %v1219 = vxor.u32 %v1217, 2147483648
    %v1220 = vmul.f32 %v1219, 1.442695
    %v1221 = vpow.pop %v1220
    %v1222 = vadd.f32 %v1221, 1.0
    %v1223 = vrcp.pop %v1222
    %v1224 = vmul.f32 1.0, %v1223
    %v1225 = vsel %vm67, %v1218, %v1224
    %1226 = vrot.lane.b32.xlu0 %v1225, 64
    %v1227 = vpop.permute.xlu0 %1226
    %v1228 = vmul.f32 %v1225, %v1227
    %1229 = vrot.lane.b32.xlu0 %v1228, 32
    %v1230 = vpop.permute.xlu0 %1229
    %v1231 = vmul.f32 %v1225, %v1170
    %v1232 = vadd.f32 %v1231, %v1230
    %v1233 = vtanh.pop %v1232
    %v1234 = vmul.f32 %v1227, %v1233
    %v1235 = vpack.c.bf16 %v1234, %v1234
    %v1237 = vsel %vm189, %v1235, 0
    %1239 = vmatprep.subr.bf16.mxu0 0
    %1240 = vmatpush1.bf16.msra.mxu0 %v801
    %1241 = vmatprep.subr.bf16.mxu0 0
    %1242 = vmatpush1.bf16.msra.mxu0 %v802
    %1243 = vmatprep.subr.bf16.mxu0 0
    %1244 = vmatpush1.bf16.msra.mxu0 0
    %1245 = vmatprep.subr.bf16.mxu0 0
    %1246 = vmatpush1.bf16.msra.mxu0 0
    %1247 = vmatprep.subr.bf16.mxu0 0
    %1248 = vmatpush1.bf16.msra.mxu0 0
    %1249 = vmatprep.subr.bf16.mxu0 0
    %1250 = vmatpush1.bf16.msra.mxu0 0
    %1251 = vmatprep.subr.bf16.mxu0 0
    %1252 = vmatpush1.bf16.msra.mxu0 0
    %1253 = vmatprep.subr.bf16.mxu0 0
    %1254 = vmatpush1.bf16.msra.mxu0 0
    %1255 = vmatprep.subr.bf16.mxu0 0
    %1256 = vmatpush1.bf16.msra.mxu0 0
    %1257 = vmatprep.subr.bf16.mxu0 0
    %1258 = vmatpush1.bf16.msra.mxu0 0
    %1259 = vmatprep.subr.bf16.mxu0 0
    %1260 = vmatpush1.bf16.msra.mxu0 0
    %1261 = vmatprep.subr.bf16.mxu0 0
    %1262 = vmatpush1.bf16.msra.mxu0 0
    %1263 = vmatprep.subr.bf16.mxu0 0
    %1264 = vmatpush1.bf16.msra.mxu0 0
    %1265 = vmatprep.subr.bf16.mxu0 0
    %1266 = vmatpush1.bf16.msra.mxu0 0
    %1267 = vmatprep.subr.bf16.mxu0 0
    %1268 = vmatpush1.bf16.msra.mxu0 0
    %1269 = vmatprep.subr.bf16.mxu0 0
    %1270 = vmatpush1.bf16.msra.mxu0 0
    %1271 = vmatprep.mubr.bf16.mxu0 0
    %1272 = vmatmul.mubr.bf16.gmra.mrb[0].mxu0 %v1237
    %v1273 = vpop.f32.mrb[0].mxu0
    %v1274 = vadd.f32 0.0, %v1273
    %v1275 = vpop.f32.mrb[0].mxu0
    %v1276 = vpop.f32.mrb[0].mxu0
    %v1277 = vpop.f32.mrb[0].mxu0
    %1278 = vdwg.mxu0
    %v1279 = vadd.f32 %v790, %v1274
    %v1280 = vtanh.pop %v1279
    %v1281 = vxor.u32 %v1279, 2147483648
    %v1282 = vmul.f32 %v1281, 1.442695
    %v1283 = vpow.pop %v1282
    %v1284 = vadd.f32 %v1283, 1.0
    %v1285 = vrcp.pop %v1284
    %v1286 = vmul.f32 1.0, %v1285
    %v1287 = vsel %vm67, %v1280, %v1286
    %1288 = vrot.lane.b32.xlu0 %v1287, 64
    %v1289 = vpop.permute.xlu0 %1288
    %v1290 = vmul.f32 %v1287, %v1289
    %1291 = vrot.lane.b32.xlu0 %v1290, 32
    %v1292 = vpop.permute.xlu0 %1291
    %v1293 = vmul.f32 %v1287, %v1232
    %v1294 = vadd.f32 %v1293, %v1292
    %v1295 = vtanh.pop %v1294
    %v1296 = vmul.f32 %v1289, %v1295
    %v1297 = vpack.c.bf16 %v924, %v862
    %v1298 = vpack.c.bf16 %v1048, %v986
    %v1299 = vpack.c.bf16 %v1172, %v1110
    %v1300 = vpack.c.bf16 %v1296, %v1234
    %v1301 = vld [vmem:[%s7] sm:$0xf]
    %v1302 = vld [vmem:[%s7 + $0x4] sm:$0xf]
    %v1303 = vld [vmem:[%s7 + $0x8] sm:$0xf]
    %v1304 = vld [vmem:[%s7 + $0xc] sm:$0xf]
    %v1305 = vld [vmem:[%s8] sm:$0xf]
    %v1306 = vld [vmem:[%s8 + $0x4] sm:$0xf]
    %v1307 = vld [vmem:[%s8 + $0x8] sm:$0xf]
    %v1308 = vld [vmem:[%s8 + $0xc] sm:$0xf]
    %v1309 = vld [vmem:[%s9] sm:$0x1]
    %v1311 = vlaneseq
    %v1312 = vshrl.u32 %v1311, 7
    %v1313 = vsub.s32 0, %v1312
    %v1314 = vrot.slane %v1309, %v1313
    %v1320 = vunpack.c.l.b16 %v1301
    %v1321 = vunpack.c.l.b16 %v1302
    %v1322 = vunpack.c.l.b16 %v1303
    %v1323 = vunpack.c.l.b16 %v1304
    %v1324 = vpack.c.b16 %v1321, %v1320
    %v1325 = vpack.c.b16 %v1323, %v1322
    %v1329 = vsel %vm189, %v1297, 0
    %v1332 = vsel %vm189, %v1298, 0
    %v1335 = vsel %vm189, %v1299, 0
    %v1338 = vsel %vm189, %v1300, 0
    %1340 = vmatprep.subr.bf16.mxu0 0
    %1341 = vmatpush1.bf16.msra.mxu0 %v1324
    %1342 = vmatprep.subr.bf16.mxu0 0
    %1343 = vmatpush1.bf16.msra.mxu0 %v1325
    %1344 = vmatprep.subr.bf16.mxu0 0
    %1345 = vmatpush1.bf16.msra.mxu0 0
    %1346 = vmatprep.subr.bf16.mxu0 0
    %1347 = vmatpush1.bf16.msra.mxu0 0
    %1348 = vmatprep.subr.bf16.mxu0 0
    %1349 = vmatpush1.bf16.msra.mxu0 0
    %1350 = vmatprep.subr.bf16.mxu0 0
    %1351 = vmatpush1.bf16.msra.mxu0 0
    %1352 = vmatprep.subr.bf16.mxu0 0
    %1353 = vmatpush1.bf16.msra.mxu0 0
    %1354 = vmatprep.subr.bf16.mxu0 0
    %1355 = vmatpush1.bf16.msra.mxu0 0
    %1356 = vmatprep.subr.bf16.mxu0 0
    %1357 = vmatpush1.bf16.msra.mxu0 0
    %1358 = vmatprep.subr.bf16.mxu0 0
    %1359 = vmatpush1.bf16.msra.mxu0 0
    %1360 = vmatprep.subr.bf16.mxu0 0
    %1361 = vmatpush1.bf16.msra.mxu0 0
    %1362 = vmatprep.subr.bf16.mxu0 0
    %1363 = vmatpush1.bf16.msra.mxu0 0
    %1364 = vmatprep.subr.bf16.mxu0 0
    %1365 = vmatpush1.bf16.msra.mxu0 0
    %1366 = vmatprep.subr.bf16.mxu0 0
    %1367 = vmatpush1.bf16.msra.mxu0 0
    %1368 = vmatprep.subr.bf16.mxu0 0
    %1369 = vmatpush1.bf16.msra.mxu0 0
    %1370 = vmatprep.subr.bf16.mxu0 0
    %1371 = vmatpush1.bf16.msra.mxu0 0
    %1372 = vmatprep.mubr.bf16.mxu0 0
    %1373 = vmatmul.mubr.bf16.gmra.mrb[0].mxu0 %v1329
    %v1374 = vpop.f32.mrb[0].mxu0
    %v1375 = vadd.f32 %v1314, %v1374
    %v1376 = vpop.f32.mrb[0].mxu0
    %v1377 = vpop.f32.mrb[0].mxu0
    %v1378 = vadd.f32 %v1314, %v1377
    %v1379 = vpop.f32.mrb[0].mxu0
    %1380 = vmatprep.mubr.bf16.mxu0 0
    %1381 = vmatmul.mubr.bf16.gmra.mrb[0].mxu0 %v1332
    %v1382 = vpop.f32.mrb[0].mxu0
    %v1383 = vadd.f32 %v1314, %v1382
    %v1384 = vpop.f32.mrb[0].mxu0
    %v1385 = vpop.f32.mrb[0].mxu0
    %v1386 = vadd.f32 %v1314, %v1385
    %v1387 = vpop.f32.mrb[0].mxu0
    %1388 = vmatprep.mubr.bf16.mxu0 0
    %1389 = vmatmul.mubr.bf16.gmra.mrb[0].mxu0 %v1335
    %v1390 = vpop.f32.mrb[0].mxu0
    %v1391 = vadd.f32 %v1314, %v1390
    %v1392 = vpop.f32.mrb[0].mxu0
    %v1393 = vpop.f32.mrb[0].mxu0
    %v1394 = vadd.f32 %v1314, %v1393
    %v1395 = vpop.f32.mrb[0].mxu0
    %1396 = vmatprep.mubr.bf16.mxu0 0
    %1397 = vmatmul.mubr.bf16.gmra.mrb[0].mxu0 %v1338
    %v1398 = vpop.f32.mrb[0].mxu0
    %v1399 = vadd.f32 %v1314, %v1398
    %v1400 = vpop.f32.mrb[0].mxu0
    %v1401 = vpop.f32.mrb[0].mxu0
    %v1402 = vadd.f32 %v1314, %v1401
    %v1403 = vpop.f32.mrb[0].mxu0
    %1404 = vdwg.mxu0
    %v1409 = vunpack.c.l.b16 %v1305
    %v1410 = vunpack.c.l.b16 %v1306
    %v1411 = vunpack.c.l.b16 %v1307
    %v1412 = vunpack.c.l.b16 %v1308
    %v1413 = vpack.c.b16 %v1410, %v1409
    %v1414 = vpack.c.b16 %v1412, %v1411
    %1417 = vmatprep.subr.bf16.mxu0 0
    %1418 = vmatpush1.bf16.msra.mxu0 %v1413
    %1419 = vmatprep.subr.bf16.mxu0 0
    %1420 = vmatpush1.bf16.msra.mxu0 %v1414
    %1421 = vmatprep.subr.bf16.mxu0 0
    %1422 = vmatpush1.bf16.msra.mxu0 0
    %1423 = vmatprep.subr.bf16.mxu0 0
    %1424 = vmatpush1.bf16.msra.mxu0 0
    %1425 = vmatprep.subr.bf16.mxu0 0
    %1426 = vmatpush1.bf16.msra.mxu0 0
    %1427 = vmatprep.subr.bf16.mxu0 0
    %1428 = vmatpush1.bf16.msra.mxu0 0
    %1429 = vmatprep.subr.bf16.mxu0 0
    %1430 = vmatpush1.bf16.msra.mxu0 0
    %1431 = vmatprep.subr.bf16.mxu0 0
    %1432 = vmatpush1.bf16.msra.mxu0 0
    %1433 = vmatprep.subr.bf16.mxu0 0
    %1434 = vmatpush1.bf16.msra.mxu0 0
    %1435 = vmatprep.subr.bf16.mxu0 0
    %1436 = vmatpush1.bf16.msra.mxu0 0
    %1437 = vmatprep.subr.bf16.mxu0 0
    %1438 = vmatpush1.bf16.msra.mxu0 0
    %1439 = vmatprep.subr.bf16.mxu0 0
    %1440 = vmatpush1.bf16.msra.mxu0 0
    %1441 = vmatprep.subr.bf16.mxu0 0
    %1442 = vmatpush1.bf16.msra.mxu0 0
    %1443 = vmatprep.subr.bf16.mxu0 0
    %1444 = vmatpush1.bf16.msra.mxu0 0
    %1445 = vmatprep.subr.bf16.mxu0 0
    %1446 = vmatpush1.bf16.msra.mxu0 0
    %1447 = vmatprep.subr.bf16.mxu0 0
    %1448 = vmatpush1.bf16.msra.mxu0 0
    %1449 = vmatprep.mubr.bf16.mxu0 0
    %1450 = vmatmul.mubr.bf16.gmra.mrb[0].mxu0 %v191
    %v1451 = vpop.f32.mrb[0].mxu0
    %v1452 = vadd.f32 0.0, %v1451
    %v1453 = vpop.f32.mrb[0].mxu0
    %v1454 = vpop.f32.mrb[0].mxu0
    %v1455 = vpop.f32.mrb[0].mxu0
    %1456 = vdwg.mxu0
    %v1457 = vadd.f32 %v1375, %v1452
    %v1458 = vtanh.pop %v1457
    %v1459 = vxor.u32 %v1457, 2147483648
    %v1460 = vmul.f32 %v1459, 1.442695
    %v1461 = vpow.pop %v1460
    %v1462 = vadd.f32 %v1461, 1.0
    %v1463 = vrcp.pop %v1462
    %v1464 = vmul.f32 1.0, %v1463
    %v1465 = vsel %vm67, %v1458, %v1464
    %1466 = vrot.lane.b32.xlu0 %v1465, 64
    %v1467 = vpop.permute.xlu0 %1466
    %v1468 = vmul.f32 %v1465, %v1467
    %1469 = vrot.lane.b32.xlu0 %v1468, 32
    %v1470 = vpop.permute.xlu0 %1469
    %v1471 = vmul.f32 %v1465, 0.0
    %v1472 = vadd.f32 %v1471, %v1470
    %v1473 = vtanh.pop %v1472
    %v1474 = vmul.f32 %v1467, %v1473
    %v1475 = vpack.c.bf16 %v1474, %v1474
    %v1477 = vsel %vm189, %v1475, 0
    %1479 = vmatprep.subr.bf16.mxu0 0
    %1480 = vmatpush1.bf16.msra.mxu0 %v1413
    %1481 = vmatprep.subr.bf16.mxu0 0
    %1482 = vmatpush1.bf16.msra.mxu0 %v1414
    %1483 = vmatprep.subr.bf16.mxu0 0
    %1484 = vmatpush1.bf16.msra.mxu0 0
    %1485 = vmatprep.subr.bf16.mxu0 0
    %1486 = vmatpush1.bf16.msra.mxu0 0
    %1487 = vmatprep.subr.bf16.mxu0 0
    %1488 = vmatpush1.bf16.msra.mxu0 0
    %1489 = vmatprep.subr.bf16.mxu0 0
    %1490 = vmatpush1.bf16.msra.mxu0 0
    %1491 = vmatprep.subr.bf16.mxu0 0
    %1492 = vmatpush1.bf16.msra.mxu0 0
    %1493 = vmatprep.subr.bf16.mxu0 0
    %1494 = vmatpush1.bf16.msra.mxu0 0
    %1495 = vmatprep.subr.bf16.mxu0 0
    %1496 = vmatpush1.bf16.msra.mxu0 0
    %1497 = vmatprep.subr.bf16.mxu0 0
    %1498 = vmatpush1.bf16.msra.mxu0 0
    %1499 = vmatprep.subr.bf16.mxu0 0
    %1500 = vmatpush1.bf16.msra.mxu0 0
    %1501 = vmatprep.subr.bf16.mxu0 0
    %1502 = vmatpush1.bf16.msra.mxu0 0
    %1503 = vmatprep.subr.bf16.mxu0 0
    %1504 = vmatpush1.bf16.msra.mxu0 0
    %1505 = vmatprep.subr.bf16.mxu0 0
    %1506 = vmatpush1.bf16.msra.mxu0 0
    %1507 = vmatprep.subr.bf16.mxu0 0
    %1508 = vmatpush1.bf16.msra.mxu0 0
    %1509 = vmatprep.subr.bf16.mxu0 0
    %1510 = vmatpush1.bf16.msra.mxu0 0
    %1511 = vmatprep.mubr.bf16.mxu0 0
    %1512 = vmatmul.mubr.bf16.gmra.mrb[0].mxu0 %v1477
    %v1513 = vpop.f32.mrb[0].mxu0
    %v1514 = vadd.f32 0.0, %v1513
    %v1515 = vpop.f32.mrb[0].mxu0
    %v1516 = vpop.f32.mrb[0].mxu0
    %v1517 = vpop.f32.mrb[0].mxu0
    %1518 = vdwg.mxu0
    %v1519 = vadd.f32 %v1378, %v1514
    %v1520 = vtanh.pop %v1519
    %v1521 = vxor.u32 %v1519, 2147483648
    %v1522 = vmul.f32 %v1521, 1.442695
    %v1523 = vpow.pop %v1522
    %v1524 = vadd.f32 %v1523, 1.0
    %v1525 = vrcp.pop %v1524
    %v1526 = vmul.f32 1.0, %v1525
    %v1527 = vsel %vm67, %v1520, %v1526
    %1528 = vrot.lane.b32.xlu0 %v1527, 64
    %v1529 = vpop.permute.xlu0 %1528
    %v1530 = vmul.f32 %v1527, %v1529
    %1531 = vrot.lane.b32.xlu0 %v1530, 32
    %v1532 = vpop.permute.xlu0 %1531
    %v1533 = vmul.f32 %v1527, %v1472
    %v1534 = vadd.f32 %v1533, %v1532
    %v1535 = vtanh.pop %v1534
    %v1536 = vmul.f32 %v1529, %v1535
    %v1537 = vpack.c.bf16 %v1536, %v1536
    %v1539 = vsel %vm189, %v1537, 0
    %1541 = vmatprep.subr.bf16.mxu0 0
    %1542 = vmatpush1.bf16.msra.mxu0 %v1413
    %1543 = vmatprep.subr.bf16.mxu0 0
    %1544 = vmatpush1.bf16.msra.mxu0 %v1414
    %1545 = vmatprep.subr.bf16.mxu0 0
    %1546 = vmatpush1.bf16.msra.mxu0 0
    %1547 = vmatprep.subr.bf16.mxu0 0
    %1548 = vmatpush1.bf16.msra.mxu0 0
    %1549 = vmatprep.subr.bf16.mxu0 0
    %1550 = vmatpush1.bf16.msra.mxu0 0
    %1551 = vmatprep.subr.bf16.mxu0 0
    %1552 = vmatpush1.bf16.msra.mxu0 0
    %1553 = vmatprep.subr.bf16.mxu0 0
    %1554 = vmatpush1.bf16.msra.mxu0 0
    %1555 = vmatprep.subr.bf16.mxu0 0
    %1556 = vmatpush1.bf16.msra.mxu0 0
    %1557 = vmatprep.subr.bf16.mxu0 0
    %1558 = vmatpush1.bf16.msra.mxu0 0
    %1559 = vmatprep.subr.bf16.mxu0 0
    %1560 = vmatpush1.bf16.msra.mxu0 0
    %1561 = vmatprep.subr.bf16.mxu0 0
    %1562 = vmatpush1.bf16.msra.mxu0 0
    %1563 = vmatprep.subr.bf16.mxu0 0
    %1564 = vmatpush1.bf16.msra.mxu0 0
    %1565 = vmatprep.subr.bf16.mxu0 0
    %1566 = vmatpush1.bf16.msra.mxu0 0
    %1567 = vmatprep.subr.bf16.mxu0 0
    %1568 = vmatpush1.bf16.msra.mxu0 0
    %1569 = vmatprep.subr.bf16.mxu0 0
    %1570 = vmatpush1.bf16.msra.mxu0 0
    %1571 = vmatprep.subr.bf16.mxu0 0
    %1572 = vmatpush1.bf16.msra.mxu0 0
    %1573 = vmatprep.mubr.bf16.mxu0 0
    %1574 = vmatmul.mubr.bf16.gmra.mrb[0].mxu0 %v1539
    %v1575 = vpop.f32.mrb[0].mxu0
    %v1576 = vadd.f32 0.0, %v1575
    %v1577 = vpop.f32.mrb[0].mxu0
    %v1578 = vpop.f32.mrb[0].mxu0
    %v1579 = vpop.f32.mrb[0].mxu0
    %1580 = vdwg.mxu0
    %v1581 = vadd.f32 %v1383, %v1576
    %v1582 = vtanh.pop %v1581
    %v1583 = vxor.u32 %v1581, 2147483648
    %v1584 = vmul.f32 %v1583, 1.442695
    %v1585 = vpow.pop %v1584
    %v1586 = vadd.f32 %v1585, 1.0
    %v1587 = vrcp.pop %v1586
    %v1588 = vmul.f32 1.0, %v1587
    %v1589 = vsel %vm67, %v1582, %v1588
    %1590 = vrot.lane.b32.xlu0 %v1589, 64
    %v1591 = vpop.permute.xlu0 %1590
    %v1592 = vmul.f32 %v1589, %v1591
    %1593 = vrot.lane.b32.xlu0 %v1592, 32
    %v1594 = vpop.permute.xlu0 %1593
    %v1595 = vmul.f32 %v1589, %v1534
    %v1596 = vadd.f32 %v1595, %v1594
    %v1597 = vtanh.pop %v1596
    %v1598 = vmul.f32 %v1591, %v1597
    %v1599 = vpack.c.bf16 %v1598, %v1598
    %v1601 = vsel %vm189, %v1599, 0
    %1603 = vmatprep.subr.bf16.mxu0 0
    %1604 = vmatpush1.bf16.msra.mxu0 %v1413
    %1605 = vmatprep.subr.bf16.mxu0 0
    %1606 = vmatpush1.bf16.msra.mxu0 %v1414
    %1607 = vmatprep.subr.bf16.mxu0 0
    %1608 = vmatpush1.bf16.msra.mxu0 0
    %1609 = vmatprep.subr.bf16.mxu0 0
    %1610 = vmatpush1.bf16.msra.mxu0 0
    %1611 = vmatprep.subr.bf16.mxu0 0
    %1612 = vmatpush1.bf16.msra.mxu0 0
    %1613 = vmatprep.subr.bf16.mxu0 0
    %1614 = vmatpush1.bf16.msra.mxu0 0
    %1615 = vmatprep.subr.bf16.mxu0 0
    %1616 = vmatpush1.bf16.msra.mxu0 0
    %1617 = vmatprep.subr.bf16.mxu0 0
    %1618 = vmatpush1.bf16.msra.mxu0 0
    %1619 = vmatprep.subr.bf16.mxu0 0
    %1620 = vmatpush1.bf16.msra.mxu0 0
    %1621 = vmatprep.subr.bf16.mxu0 0
    %1622 = vmatpush1.bf16.msra.mxu0 0
    %1623 = vmatprep.subr.bf16.mxu0 0
    %1624 = vmatpush1.bf16.msra.mxu0 0
    %1625 = vmatprep.subr.bf16.mxu0 0
    %1626 = vmatpush1.bf16.msra.mxu0 0
    %1627 = vmatprep.subr.bf16.mxu0 0
    %1628 = vmatpush1.bf16.msra.mxu0 0
    %1629 = vmatprep.subr.bf16.mxu0 0
    %1630 = vmatpush1.bf16.msra.mxu0 0
    %1631 = vmatprep.subr.bf16.mxu0 0
    %1632 = vmatpush1.bf16.msra.mxu0 0
    %1633 = vmatprep.subr.bf16.mxu0 0
    %1634 = vmatpush1.bf16.msra.mxu0 0
    %1635 = vmatprep.mubr.bf16.mxu0 0
    %1636 = vmatmul.mubr.bf16.gmra.mrb[0].mxu0 %v1601
    %v1637 = vpop.f32.mrb[0].mxu0
    %v1638 = vadd.f32 0.0, %v1637
    %v1639 = vpop.f32.mrb[0].mxu0
    %v1640 = vpop.f32.mrb[0].mxu0
    %v1641 = vpop.f32.mrb[0].mxu0
    %1642 = vdwg.mxu0
    %v1643 = vadd.f32 %v1386, %v1638
    %v1644 = vtanh.pop %v1643
    %v1645 = vxor.u32 %v1643, 2147483648
    %v1646 = vmul.f32 %v1645, 1.442695
    %v1647 = vpow.pop %v1646
    %v1648 = vadd.f32 %v1647, 1.0
    %v1649 = vrcp.pop %v1648
    %v1650 = vmul.f32 1.0, %v1649
    %v1651 = vsel %vm67, %v1644, %v1650
    %1652 = vrot.lane.b32.xlu0 %v1651, 64
    %v1653 = vpop.permute.xlu0 %1652
    %v1654 = vmul.f32 %v1651, %v1653
    %1655 = vrot.lane.b32.xlu0 %v1654, 32
    %v1656 = vpop.permute.xlu0 %1655
    %v1657 = vmul.f32 %v1651, %v1596
    %v1658 = vadd.f32 %v1657, %v1656
    %v1659 = vtanh.pop %v1658
    %v1660 = vmul.f32 %v1653, %v1659
    %v1661 = vpack.c.bf16 %v1660, %v1660
    %v1663 = vsel %vm189, %v1661, 0
    %1665 = vmatprep.subr.bf16.mxu0 0
    %1666 = vmatpush1.bf16.msra.mxu0 %v1413
    %1667 = vmatprep.subr.bf16.mxu0 0
    %1668 = vmatpush1.bf16.msra.mxu0 %v1414
    %1669 = vmatprep.subr.bf16.mxu0 0
    %1670 = vmatpush1.bf16.msra.mxu0 0
    %1671 = vmatprep.subr.bf16.mxu0 0
    %1672 = vmatpush1.bf16.msra.mxu0 0
    %1673 = vmatprep.subr.bf16.mxu0 0
    %1674 = vmatpush1.bf16.msra.mxu0 0
    %1675 = vmatprep.subr.bf16.mxu0 0
    %1676 = vmatpush1.bf16.msra.mxu0 0
    %1677 = vmatprep.subr.bf16.mxu0 0
    %1678 = vmatpush1.bf16.msra.mxu0 0
    %1679 = vmatprep.subr.bf16.mxu0 0
    %1680 = vmatpush1.bf16.msra.mxu0 0
    %1681 = vmatprep.subr.bf16.mxu0 0
    %1682 = vmatpush1.bf16.msra.mxu0 0
    %1683 = vmatprep.subr.bf16.mxu0 0
    %1684 = vmatpush1.bf16.msra.mxu0 0
    %1685 = vmatprep.subr.bf16.mxu0 0
    %1686 = vmatpush1.bf16.msra.mxu0 0
    %1687 = vmatprep.subr.bf16.mxu0 0
    %1688 = vmatpush1.bf16.msra.mxu0 0
    %1689 = vmatprep.subr.bf16.mxu0 0
    %1690 = vmatpush1.bf16.msra.mxu0 0
    %1691 = vmatprep.subr.bf16.mxu0 0
    %1692 = vmatpush1.bf16.msra.mxu0 0
    %1693 = vmatprep.subr.bf16.mxu0 0
    %1694 = vmatpush1.bf16.msra.mxu0 0
    %1695 = vmatprep.subr.bf16.mxu0 0
    %1696 = vmatpush1.bf16.msra.mxu0 0
    %1697 = vmatprep.mubr.bf16.mxu0 0
    %1698 = vmatmul.mubr.bf16.gmra.mrb[0].mxu0 %v1663
    %v1699 = vpop.f32.mrb[0].mxu0
    %v1700 = vadd.f32 0.0, %v1699
    %v1701 = vpop.f32.mrb[0].mxu0
    %v1702 = vpop.f32.mrb[0].mxu0
    %v1703 = vpop.f32.mrb[0].mxu0
    %1704 = vdwg.mxu0
    %v1705 = vadd.f32 %v1391, %v1700
    %v1706 = vtanh.pop %v1705
    %v1707 = vxor.u32 %v1705, 2147483648
    %v1708 = vmul.f32 %v1707, 1.442695
    %v1709 = vpow.pop %v1708
    %v1710 = vadd.f32 %v1709, 1.0
    %v1711 = vrcp.pop %v1710
    %v1712 = vmul.f32 1.0, %v1711
    %v1713 = vsel %vm67, %v1706, %v1712
    %1714 = vrot.lane.b32.xlu0 %v1713, 64
    %v1715 = vpop.permute.xlu0 %1714
    %v1716 = vmul.f32 %v1713, %v1715
    %1717 = vrot.lane.b32.xlu0 %v1716, 32
    %v1718 = vpop.permute.xlu0 %1717
    %v1719 = vmul.f32 %v1713, %v1658
    %v1720 = vadd.f32 %v1719, %v1718
    %v1721 = vtanh.pop %v1720
    %v1722 = vmul.f32 %v1715, %v1721
    %v1723 = vpack.c.bf16 %v1722, %v1722
    %v1725 = vsel %vm189, %v1723, 0
    %1727 = vmatprep.subr.bf16.mxu0 0
    %1728 = vmatpush1.bf16.msra.mxu0 %v1413
    %1729 = vmatprep.subr.bf16.mxu0 0
    %1730 = vmatpush1.bf16.msra.mxu0 %v1414
    %1731 = vmatprep.subr.bf16.mxu0 0
    %1732 = vmatpush1.bf16.msra.mxu0 0
    %1733 = vmatprep.subr.bf16.mxu0 0
    %1734 = vmatpush1.bf16.msra.mxu0 0
    %1735 = vmatprep.subr.bf16.mxu0 0
    %1736 = vmatpush1.bf16.msra.mxu0 0
    %1737 = vmatprep.subr.bf16.mxu0 0
    %1738 = vmatpush1.bf16.msra.mxu0 0
    %1739 = vmatprep.subr.bf16.mxu0 0
    %1740 = vmatpush1.bf16.msra.mxu0 0
    %1741 = vmatprep.subr.bf16.mxu0 0
    %1742 = vmatpush1.bf16.msra.mxu0 0
    %1743 = vmatprep.subr.bf16.mxu0 0
    %1744 = vmatpush1.bf16.msra.mxu0 0
    %1745 = vmatprep.subr.bf16.mxu0 0
    %1746 = vmatpush1.bf16.msra.mxu0 0
    %1747 = vmatprep.subr.bf16.mxu0 0
    %1748 = vmatpush1.bf16.msra.mxu0 0
    %1749 = vmatprep.subr.bf16.mxu0 0
    %1750 = vmatpush1.bf16.msra.mxu0 0
    %1751 = vmatprep.subr.bf16.mxu0 0
    %1752 = vmatpush1.bf16.msra.mxu0 0
    %1753 = vmatprep.subr.bf16.mxu0 0
    %1754 = vmatpush1.bf16.msra.mxu0 0
    %1755 = vmatprep.subr.bf16.mxu0 0
    %1756 = vmatpush1.bf16.msra.mxu0 0
    %1757 = vmatprep.subr.bf16.mxu0 0
    %1758 = vmatpush1.bf16.msra.mxu0 0
    %1759 = vmatprep.mubr.bf16.mxu0 0
    %1760 = vmatmul.mubr.bf16.gmra.mrb[0].mxu0 %v1725
    %v1761 = vpop.f32.mrb[0].mxu0
    %v1762 = vadd.f32 0.0, %v1761
    %v1763 = vpop.f32.mrb[0].mxu0
    %v1764 = vpop.f32.mrb[0].mxu0
    %v1765 = vpop.f32.mrb[0].mxu0
    %1766 = vdwg.mxu0
    %v1767 = vadd.f32 %v1394, %v1762
    %v1768 = vtanh.pop %v1767
    %v1769 = vxor.u32 %v1767, 2147483648
    %v1770 = vmul.f32 %v1769, 1.442695
    %v1771 = vpow.pop %v1770
    %v1772 = vadd.f32 %v1771, 1.0
    %v1773 = vrcp.pop %v1772
    %v1774 = vmul.f32 1.0, %v1773
    %v1775 = vsel %vm67, %v1768, %v1774
    %1776 = vrot.lane.b32.xlu0 %v1775, 64
    %v1777 = vpop.permute.xlu0 %1776
    %v1778 = vmul.f32 %v1775, %v1777
    %1779 = vrot.lane.b32.xlu0 %v1778, 32
    %v1780 = vpop.permute.xlu0 %1779
    %v1781 = vmul.f32 %v1775, %v1720
    %v1782 = vadd.f32 %v1781, %v1780
    %v1783 = vtanh.pop %v1782
    %v1784 = vmul.f32 %v1777, %v1783
    %v1785 = vpack.c.bf16 %v1784, %v1784
    %v1787 = vsel %vm189, %v1785, 0
    %1789 = vmatprep.subr.bf16.mxu0 0
    %1790 = vmatpush1.bf16.msra.mxu0 %v1413
    %1791 = vmatprep.subr.bf16.mxu0 0
    %1792 = vmatpush1.bf16.msra.mxu0 %v1414
    %1793 = vmatprep.subr.bf16.mxu0 0
    %1794 = vmatpush1.bf16.msra.mxu0 0
    %1795 = vmatprep.subr.bf16.mxu0 0
    %1796 = vmatpush1.bf16.msra.mxu0 0
    %1797 = vmatprep.subr.bf16.mxu0 0
    %1798 = vmatpush1.bf16.msra.mxu0 0
    %1799 = vmatprep.subr.bf16.mxu0 0
    %1800 = vmatpush1.bf16.msra.mxu0 0
    %1801 = vmatprep.subr.bf16.mxu0 0
    %1802 = vmatpush1.bf16.msra.mxu0 0
    %1803 = vmatprep.subr.bf16.mxu0 0
    %1804 = vmatpush1.bf16.msra.mxu0 0
    %1805 = vmatprep.subr.bf16.mxu0 0
    %1806 = vmatpush1.bf16.msra.mxu0 0
    %1807 = vmatprep.subr.bf16.mxu0 0
    %1808 = vmatpush1.bf16.msra.mxu0 0
    %1809 = vmatprep.subr.bf16.mxu0 0
    %1810 = vmatpush1.bf16.msra.mxu0 0
    %1811 = vmatprep.subr.bf16.mxu0 0
    %1812 = vmatpush1.bf16.msra.mxu0 0
    %1813 = vmatprep.subr.bf16.mxu0 0
    %1814 = vmatpush1.bf16.msra.mxu0 0
    %1815 = vmatprep.subr.bf16.mxu0 0
    %1816 = vmatpush1.bf16.msra.mxu0 0
    %1817 = vmatprep.subr.bf16.mxu0 0
    %1818 = vmatpush1.bf16.msra.mxu0 0
    %1819 = vmatprep.subr.bf16.mxu0 0
    %1820 = vmatpush1.bf16.msra.mxu0 0
    %1821 = vmatprep.mubr.bf16.mxu0 0
    %1822 = vmatmul.mubr.bf16.gmra.mrb[0].mxu0 %v1787
    %v1823 = vpop.f32.mrb[0].mxu0
    %v1824 = vadd.f32 0.0, %v1823
    %v1825 = vpop.f32.mrb[0].mxu0
    %v1826 = vpop.f32.mrb[0].mxu0
    %v1827 = vpop.f32.mrb[0].mxu0
    %1828 = vdwg.mxu0
    %v1829 = vadd.f32 %v1399, %v1824
    %v1830 = vtanh.pop %v1829
    %v1831 = vxor.u32 %v1829, 2147483648
    %v1832 = vmul.f32 %v1831, 1.442695
    %v1833 = vpow.pop %v1832
    %v1834 = vadd.f32 %v1833, 1.0
    %v1835 = vrcp.pop %v1834
    %v1836 = vmul.f32 1.0, %v1835
    %v1837 = vsel %vm67, %v1830, %v1836
    %1838 = vrot.lane.b32.xlu0 %v1837, 64
    %v1839 = vpop.permute.xlu0 %1838
    %v1840 = vmul.f32 %v1837, %v1839
    %1841 = vrot.lane.b32.xlu0 %v1840, 32
    %v1842 = vpop.permute.xlu0 %1841
    %v1843 = vmul.f32 %v1837, %v1782
    %v1844 = vadd.f32 %v1843, %v1842
    %v1845 = vtanh.pop %v1844
    %v1846 = vmul.f32 %v1839, %v1845
    %v1847 = vpack.c.bf16 %v1846, %v1846
    %v1849 = vsel %vm189, %v1847, 0
    %1851 = vmatprep.subr.bf16.mxu0 0
    %1852 = vmatpush1.bf16.msra.mxu0 %v1413
    %1853 = vmatprep.subr.bf16.mxu0 0
    %1854 = vmatpush1.bf16.msra.mxu0 %v1414
    %1855 = vmatprep.subr.bf16.mxu0 0
    %1856 = vmatpush1.bf16.msra.mxu0 0
    %1857 = vmatprep.subr.bf16.mxu0 0
    %1858 = vmatpush1.bf16.msra.mxu0 0
    %1859 = vmatprep.subr.bf16.mxu0 0
    %1860 = vmatpush1.bf16.msra.mxu0 0
    %1861 = vmatprep.subr.bf16.mxu0 0
    %1862 = vmatpush1.bf16.msra.mxu0 0
    %1863 = vmatprep.subr.bf16.mxu0 0
    %1864 = vmatpush1.bf16.msra.mxu0 0
    %1865 = vmatprep.subr.bf16.mxu0 0
    %1866 = vmatpush1.bf16.msra.mxu0 0
    %1867 = vmatprep.subr.bf16.mxu0 0
    %1868 = vmatpush1.bf16.msra.mxu0 0
    %1869 = vmatprep.subr.bf16.mxu0 0
    %1870 = vmatpush1.bf16.msra.mxu0 0
    %1871 = vmatprep.subr.bf16.mxu0 0
    %1872 = vmatpush1.bf16.msra.mxu0 0
    %1873 = vmatprep.subr.bf16.mxu0 0
    %1874 = vmatpush1.bf16.msra.mxu0 0
    %1875 = vmatprep.subr.bf16.mxu0 0
    %1876 = vmatpush1.bf16.msra.mxu0 0
    %1877 = vmatprep.subr.bf16.mxu0 0
    %1878 = vmatpush1.bf16.msra.mxu0 0
    %1879 = vmatprep.subr.bf16.mxu0 0
    %1880 = vmatpush1.bf16.msra.mxu0 0
    %1881 = vmatprep.subr.bf16.mxu0 0
    %1882 = vmatpush1.bf16.msra.mxu0 0
    %1883 = vmatprep.mubr.bf16.mxu0 0
    %1884 = vmatmul.mubr.bf16.gmra.mrb[0].mxu0 %v1849
    %v1885 = vpop.f32.mrb[0].mxu0
    %v1886 = vadd.f32 0.0, %v1885
    %v1887 = vpop.f32.mrb[0].mxu0
    %v1888 = vpop.f32.mrb[0].mxu0
    %v1889 = vpop.f32.mrb[0].mxu0
    %1890 = vdwg.mxu0
    %v1891 = vadd.f32 %v1402, %v1886
    %v1892 = vtanh.pop %v1891
    %v1893 = vxor.u32 %v1891, 2147483648
    %v1894 = vmul.f32 %v1893, 1.442695
    %v1895 = vpow.pop %v1894
    %v1896 = vadd.f32 %v1895, 1.0
    %v1897 = vrcp.pop %v1896
    %v1898 = vmul.f32 1.0, %v1897
    %v1899 = vsel %vm67, %v1892, %v1898
    %1900 = vrot.lane.b32.xlu0 %v1899, 64
    %v1901 = vpop.permute.xlu0 %1900
    %v1902 = vmul.f32 %v1899, %v1901
    %1903 = vrot.lane.b32.xlu0 %v1902, 32
    %v1904 = vpop.permute.xlu0 %1903
    %v1905 = vmul.f32 %v1899, %v1844
    %v1906 = vadd.f32 %v1905, %v1904
    %v1907 = vtanh.pop %v1906
    %v1908 = vmul.f32 %v1901, %v1907
    %v1909 = vpack.c.bf16 %v1536, %v1474
    %v1910 = vpack.c.bf16 %v1660, %v1598
    %v1911 = vpack.c.bf16 %v1784, %v1722
    %v1912 = vpack.c.bf16 %v1908, %v1846
    %v1913 = vld [vmem:[%s10] sm:$0xf]
    %v1914 = vld [vmem:[%s10 + $0x4] sm:$0xf]
    %v1915 = vld [vmem:[%s10 + $0x8] sm:$0xf]
    %v1916 = vld [vmem:[%s10 + $0xc] sm:$0xf]
    %v1917 = vld [vmem:[%s11] sm:$0xf]
    %v1918 = vld [vmem:[%s11 + $0x4] sm:$0xf]
    %v1919 = vld [vmem:[%s11 + $0x8] sm:$0xf]
    %v1920 = vld [vmem:[%s11 + $0xc] sm:$0xf]
    %v1921 = vld [vmem:[%s12] sm:$0x1]
    %v1923 = vlaneseq
    %v1924 = vshrl.u32 %v1923, 7
    %v1925 = vsub.s32 0, %v1924
    %v1926 = vrot.slane %v1921, %v1925
    %v1932 = vunpack.c.l.b16 %v1913
    %v1933 = vunpack.c.l.b16 %v1914
    %v1934 = vunpack.c.l.b16 %v1915
    %v1935 = vunpack.c.l.b16 %v1916
    %v1936 = vpack.c.b16 %v1933, %v1932
    %v1937 = vpack.c.b16 %v1935, %v1934
    %v1941 = vsel %vm189, %v1909, 0
    %v1944 = vsel %vm189, %v1910, 0
    %v1947 = vsel %vm189, %v1911, 0
    %v1950 = vsel %vm189, %v1912, 0
    %1952 = vmatprep.subr.bf16.mxu0 0
    %1953 = vmatpush1.bf16.msra.mxu0 %v1936
    %1954 = vmatprep.subr.bf16.mxu0 0
    %1955 = vmatpush1.bf16.msra.mxu0 %v1937
    %1956 = vmatprep.subr.bf16.mxu0 0
    %1957 = vmatpush1.bf16.msra.mxu0 0
    %1958 = vmatprep.subr.bf16.mxu0 0
    %1959 = vmatpush1.bf16.msra.mxu0 0
    %1960 = vmatprep.subr.bf16.mxu0 0
    %1961 = vmatpush1.bf16.msra.mxu0 0
    %1962 = vmatprep.subr.bf16.mxu0 0
    %1963 = vmatpush1.bf16.msra.mxu0 0
    %1964 = vmatprep.subr.bf16.mxu0 0
    %1965 = vmatpush1.bf16.msra.mxu0 0
    %1966 = vmatprep.subr.bf16.mxu0 0
    %1967 = vmatpush1.bf16.msra.mxu0 0
    %1968 = vmatprep.subr.bf16.mxu0 0
    %1969 = vmatpush1.bf16.msra.mxu0 0
    %1970 = vmatprep.subr.bf16.mxu0 0
    %1971 = vmatpush1.bf16.msra.mxu0 0
    %1972 = vmatprep.subr.bf16.mxu0 0
    %1973 = vmatpush1.bf16.msra.mxu0 0
    %1974 = vmatprep.subr.bf16.mxu0 0
    %1975 = vmatpush1.bf16.msra.mxu0 0
    %1976 = vmatprep.subr.bf16.mxu0 0
    %1977 = vmatpush1.bf16.msra.mxu0 0
    %1978 = vmatprep.subr.bf16.mxu0 0
    %1979 = vmatpush1.bf16.msra.mxu0 0
    %1980 = vmatprep.subr.bf16.mxu0 0
    %1981 = vmatpush1.bf16.msra.mxu0 0
    %1982 = vmatprep.subr.bf16.mxu0 0
    %1983 = vmatpush1.bf16.msra.mxu0 0
    %1984 = vmatprep.mubr.bf16.mxu0 0
    %1985 = vmatmul.mubr.bf16.gmra.mrb[0].mxu0 %v1941
    %v1986 = vpop.f32.mrb[0].mxu0
    %v1987 = vadd.f32 %v1926, %v1986
    %v1988 = vpop.f32.mrb[0].mxu0
    %v1989 = vpop.f32.mrb[0].mxu0
    %v1990 = vadd.f32 %v1926, %v1989
    %v1991 = vpop.f32.mrb[0].mxu0
    %1992 = vmatprep.mubr.bf16.mxu0 0
    %1993 = vmatmul.mubr.bf16.gmra.mrb[0].mxu0 %v1944
    %v1994 = vpop.f32.mrb[0].mxu0
    %v1995 = vadd.f32 %v1926, %v1994
    %v1996 = vpop.f32.mrb[0].mxu0
    %v1997 = vpop.f32.mrb[0].mxu0
    %v1998 = vadd.f32 %v1926, %v1997
    %v1999 = vpop.f32.mrb[0].mxu0
    %2000 = vmatprep.mubr.bf16.mxu0 0
    %2001 = vmatmul.mubr.bf16.gmra.mrb[0].mxu0 %v1947
    %v2002 = vpop.f32.mrb[0].mxu0
    %v2003 = vadd.f32 %v1926, %v2002
    %v2004 = vpop.f32.mrb[0].mxu0
    %v2005 = vpop.f32.mrb[0].mxu0
    %v2006 = vadd.f32 %v1926, %v2005
    %v2007 = vpop.f32.mrb[0].mxu0
    %2008 = vmatprep.mubr.bf16.mxu0 0
    %2009 = vmatmul.mubr.bf16.gmra.mrb[0].mxu0 %v1950
    %v2010 = vpop.f32.mrb[0].mxu0
    %v2011 = vadd.f32 %v1926, %v2010
    %v2012 = vpop.f32.mrb[0].mxu0
    %v2013 = vpop.f32.mrb[0].mxu0
    %v2014 = vadd.f32 %v1926, %v2013
    %v2015 = vpop.f32.mrb[0].mxu0
    %2016 = vdwg.mxu0
    %v2021 = vunpack.c.l.b16 %v1917
    %v2022 = vunpack.c.l.b16 %v1918
    %v2023 = vunpack.c.l.b16 %v1919
    %v2024 = vunpack.c.l.b16 %v1920
    %v2025 = vpack.c.b16 %v2022, %v2021
    %v2026 = vpack.c.b16 %v2024, %v2023
    %2029 = vmatprep.subr.bf16.mxu0 0
    %2030 = vmatpush1.bf16.msra.mxu0 %v2025
    %2031 = vmatprep.subr.bf16.mxu0 0
    %2032 = vmatpush1.bf16.msra.mxu0 %v2026
    %2033 = vmatprep.subr.bf16.mxu0 0
    %2034 = vmatpush1.bf16.msra.mxu0 0
    %2035 = vmatprep.subr.bf16.mxu0 0
    %2036 = vmatpush1.bf16.msra.mxu0 0
    %2037 = vmatprep.subr.bf16.mxu0 0
    %2038 = vmatpush1.bf16.msra.mxu0 0
    %2039 = vmatprep.subr.bf16.mxu0 0
    %2040 = vmatpush1.bf16.msra.mxu0 0
    %2041 = vmatprep.subr.bf16.mxu0 0
    %2042 = vmatpush1.bf16.msra.mxu0 0
    %2043 = vmatprep.subr.bf16.mxu0 0
    %2044 = vmatpush1.bf16.msra.mxu0 0
    %2045 = vmatprep.subr.bf16.mxu0 0
    %2046 = vmatpush1.bf16.msra.mxu0 0
    %2047 = vmatprep.subr.bf16.mxu0 0
    %2048 = vmatpush1.bf16.msra.mxu0 0
    %2049 = vmatprep.subr.bf16.mxu0 0
    %2050 = vmatpush1.bf16.msra.mxu0 0
    %2051 = vmatprep.subr.bf16.mxu0 0
    %2052 = vmatpush1.bf16.msra.mxu0 0
    %2053 = vmatprep.subr.bf16.mxu0 0
    %2054 = vmatpush1.bf16.msra.mxu0 0
    %2055 = vmatprep.subr.bf16.mxu0 0
    %2056 = vmatpush1.bf16.msra.mxu0 0
    %2057 = vmatprep.subr.bf16.mxu0 0
    %2058 = vmatpush1.bf16.msra.mxu0 0
    %2059 = vmatprep.subr.bf16.mxu0 0
    %2060 = vmatpush1.bf16.msra.mxu0 0
    %2061 = vmatprep.mubr.bf16.mxu0 0
    %2062 = vmatmul.mubr.bf16.gmra.mrb[0].mxu0 %v191
    %v2063 = vpop.f32.mrb[0].mxu0
    %v2064 = vadd.f32 0.0, %v2063
    %v2065 = vpop.f32.mrb[0].mxu0
    %v2066 = vpop.f32.mrb[0].mxu0
    %v2067 = vpop.f32.mrb[0].mxu0
    %2068 = vdwg.mxu0
    %v2069 = vadd.f32 %v1987, %v2064
    %v2070 = vtanh.pop %v2069
    %v2071 = vxor.u32 %v2069, 2147483648
    %v2072 = vmul.f32 %v2071, 1.442695
    %v2073 = vpow.pop %v2072
    %v2074 = vadd.f32 %v2073, 1.0
    %v2075 = vrcp.pop %v2074
    %v2076 = vmul.f32 1.0, %v2075
    %v2077 = vsel %vm67, %v2070, %v2076
    %2078 = vrot.lane.b32.xlu0 %v2077, 64
    %v2079 = vpop.permute.xlu0 %2078
    %v2080 = vmul.f32 %v2077, %v2079
    %2081 = vrot.lane.b32.xlu0 %v2080, 32
    %v2082 = vpop.permute.xlu0 %2081
    %v2083 = vmul.f32 %v2077, 0.0
    %v2084 = vadd.f32 %v2083, %v2082
    %v2085 = vtanh.pop %v2084
    %v2086 = vmul.f32 %v2079, %v2085
    %v2087 = vpack.c.bf16 %v2086, %v2086
    %v2089 = vsel %vm189, %v2087, 0
    %2091 = vmatprep.subr.bf16.mxu0 0
    %2092 = vmatpush1.bf16.msra.mxu0 %v2025
    %2093 = vmatprep.subr.bf16.mxu0 0
    %2094 = vmatpush1.bf16.msra.mxu0 %v2026
    %2095 = vmatprep.subr.bf16.mxu0 0
    %2096 = vmatpush1.bf16.msra.mxu0 0
    %2097 = vmatprep.subr.bf16.mxu0 0
    %2098 = vmatpush1.bf16.msra.mxu0 0
    %2099 = vmatprep.subr.bf16.mxu0 0
    %2100 = vmatpush1.bf16.msra.mxu0 0
    %2101 = vmatprep.subr.bf16.mxu0 0
    %2102 = vmatpush1.bf16.msra.mxu0 0
    %2103 = vmatprep.subr.bf16.mxu0 0
    %2104 = vmatpush1.bf16.msra.mxu0 0
    %2105 = vmatprep.subr.bf16.mxu0 0
    %2106 = vmatpush1.bf16.msra.mxu0 0
    %2107 = vmatprep.subr.bf16.mxu0 0
    %2108 = vmatpush1.bf16.msra.mxu0 0
    %2109 = vmatprep.subr.bf16.mxu0 0
    %2110 = vmatpush1.bf16.msra.mxu0 0
    %2111 = vmatprep.subr.bf16.mxu0 0
    %2112 = vmatpush1.bf16.msra.mxu0 0
    %2113 = vmatprep.subr.bf16.mxu0 0
    %2114 = vmatpush1.bf16.msra.mxu0 0
    %2115 = vmatprep.subr.bf16.mxu0 0
    %2116 = vmatpush1.bf16.msra.mxu0 0
    %2117 = vmatprep.subr.bf16.mxu0 0
    %2118 = vmatpush1.bf16.msra.mxu0 0
    %2119 = vmatprep.subr.bf16.mxu0 0
    %2120 = vmatpush1.bf16.msra.mxu0 0
    %2121 = vmatprep.subr.bf16.mxu0 0
    %2122 = vmatpush1.bf16.msra.mxu0 0
    %2123 = vmatprep.mubr.bf16.mxu0 0
    %2124 = vmatmul.mubr.bf16.gmra.mrb[0].mxu0 %v2089
    %v2125 = vpop.f32.mrb[0].mxu0
    %v2126 = vadd.f32 0.0, %v2125
    %v2127 = vpop.f32.mrb[0].mxu0
    %v2128 = vpop.f32.mrb[0].mxu0
    %v2129 = vpop.f32.mrb[0].mxu0
    %2130 = vdwg.mxu0
    %v2131 = vadd.f32 %v1990, %v2126
    %v2132 = vtanh.pop %v2131
    %v2133 = vxor.u32 %v2131, 2147483648
    %v2134 = vmul.f32 %v2133, 1.442695
    %v2135 = vpow.pop %v2134
    %v2136 = vadd.f32 %v2135, 1.0
    %v2137 = vrcp.pop %v2136
    %v2138 = vmul.f32 1.0, %v2137
    %v2139 = vsel %vm67, %v2132, %v2138
    %2140 = vrot.lane.b32.xlu0 %v2139, 64
    %v2141 = vpop.permute.xlu0 %2140
    %v2142 = vmul.f32 %v2139, %v2141
    %2143 = vrot.lane.b32.xlu0 %v2142, 32
    %v2144 = vpop.permute.xlu0 %2143
    %v2145 = vmul.f32 %v2139, %v2084
    %v2146 = vadd.f32 %v2145, %v2144
    %v2147 = vtanh.pop %v2146
    %v2148 = vmul.f32 %v2141, %v2147
    %v2149 = vpack.c.bf16 %v2148, %v2148
    %v2151 = vsel %vm189, %v2149, 0
    %2153 = vmatprep.subr.bf16.mxu0 0
    %2154 = vmatpush1.bf16.msra.mxu0 %v2025
    %2155 = vmatprep.subr.bf16.mxu0 0
    %2156 = vmatpush1.bf16.msra.mxu0 %v2026
    %2157 = vmatprep.subr.bf16.mxu0 0
    %2158 = vmatpush1.bf16.msra.mxu0 0
    %2159 = vmatprep.subr.bf16.mxu0 0
    %2160 = vmatpush1.bf16.msra.mxu0 0
    %2161 = vmatprep.subr.bf16.mxu0 0
    %2162 = vmatpush1.bf16.msra.mxu0 0
    %2163 = vmatprep.subr.bf16.mxu0 0
    %2164 = vmatpush1.bf16.msra.mxu0 0
    %2165 = vmatprep.subr.bf16.mxu0 0
    %2166 = vmatpush1.bf16.msra.mxu0 0
    %2167 = vmatprep.subr.bf16.mxu0 0
    %2168 = vmatpush1.bf16.msra.mxu0 0
    %2169 = vmatprep.subr.bf16.mxu0 0
    %2170 = vmatpush1.bf16.msra.mxu0 0
    %2171 = vmatprep.subr.bf16.mxu0 0
    %2172 = vmatpush1.bf16.msra.mxu0 0
    %2173 = vmatprep.subr.bf16.mxu0 0
    %2174 = vmatpush1.bf16.msra.mxu0 0
    %2175 = vmatprep.subr.bf16.mxu0 0
    %2176 = vmatpush1.bf16.msra.mxu0 0
    %2177 = vmatprep.subr.bf16.mxu0 0
    %2178 = vmatpush1.bf16.msra.mxu0 0
    %2179 = vmatprep.subr.bf16.mxu0 0
    %2180 = vmatpush1.bf16.msra.mxu0 0
    %2181 = vmatprep.subr.bf16.mxu0 0
    %2182 = vmatpush1.bf16.msra.mxu0 0
    %2183 = vmatprep.subr.bf16.mxu0 0
    %2184 = vmatpush1.bf16.msra.mxu0 0
    %2185 = vmatprep.mubr.bf16.mxu0 0
    %2186 = vmatmul.mubr.bf16.gmra.mrb[0].mxu0 %v2151
    %v2187 = vpop.f32.mrb[0].mxu0
    %v2188 = vadd.f32 0.0, %v2187
    %v2189 = vpop.f32.mrb[0].mxu0
    %v2190 = vpop.f32.mrb[0].mxu0
    %v2191 = vpop.f32.mrb[0].mxu0
    %2192 = vdwg.mxu0
    %v2193 = vadd.f32 %v1995, %v2188
    %v2194 = vtanh.pop %v2193
    %v2195 = vxor.u32 %v2193, 2147483648
    %v2196 = vmul.f32 %v2195, 1.442695
    %v2197 = vpow.pop %v2196
    %v2198 = vadd.f32 %v2197, 1.0
    %v2199 = vrcp.pop %v2198
    %v2200 = vmul.f32 1.0, %v2199
    %v2201 = vsel %vm67, %v2194, %v2200
    %2202 = vrot.lane.b32.xlu0 %v2201, 64
    %v2203 = vpop.permute.xlu0 %2202
    %v2204 = vmul.f32 %v2201, %v2203
    %2205 = vrot.lane.b32.xlu0 %v2204, 32
    %v2206 = vpop.permute.xlu0 %2205
    %v2207 = vmul.f32 %v2201, %v2146
    %v2208 = vadd.f32 %v2207, %v2206
    %v2209 = vtanh.pop %v2208
    %v2210 = vmul.f32 %v2203, %v2209
    %v2211 = vpack.c.bf16 %v2210, %v2210
    %v2213 = vsel %vm189, %v2211, 0
    %2215 = vmatprep.subr.bf16.mxu0 0
    %2216 = vmatpush1.bf16.msra.mxu0 %v2025
    %2217 = vmatprep.subr.bf16.mxu0 0
    %2218 = vmatpush1.bf16.msra.mxu0 %v2026
    %2219 = vmatprep.subr.bf16.mxu0 0
    %2220 = vmatpush1.bf16.msra.mxu0 0
    %2221 = vmatprep.subr.bf16.mxu0 0
    %2222 = vmatpush1.bf16.msra.mxu0 0
    %2223 = vmatprep.subr.bf16.mxu0 0
    %2224 = vmatpush1.bf16.msra.mxu0 0
    %2225 = vmatprep.subr.bf16.mxu0 0
    %2226 = vmatpush1.bf16.msra.mxu0 0
    %2227 = vmatprep.subr.bf16.mxu0 0
    %2228 = vmatpush1.bf16.msra.mxu0 0
    %2229 = vmatprep.subr.bf16.mxu0 0
    %2230 = vmatpush1.bf16.msra.mxu0 0
    %2231 = vmatprep.subr.bf16.mxu0 0
    %2232 = vmatpush1.bf16.msra.mxu0 0
    %2233 = vmatprep.subr.bf16.mxu0 0
    %2234 = vmatpush1.bf16.msra.mxu0 0
    %2235 = vmatprep.subr.bf16.mxu0 0
    %2236 = vmatpush1.bf16.msra.mxu0 0
    %2237 = vmatprep.subr.bf16.mxu0 0
    %2238 = vmatpush1.bf16.msra.mxu0 0
    %2239 = vmatprep.subr.bf16.mxu0 0
    %2240 = vmatpush1.bf16.msra.mxu0 0
    %2241 = vmatprep.subr.bf16.mxu0 0
    %2242 = vmatpush1.bf16.msra.mxu0 0
    %2243 = vmatprep.subr.bf16.mxu0 0
    %2244 = vmatpush1.bf16.msra.mxu0 0
    %2245 = vmatprep.subr.bf16.mxu0 0
    %2246 = vmatpush1.bf16.msra.mxu0 0
    %2247 = vmatprep.mubr.bf16.mxu0 0
    %2248 = vmatmul.mubr.bf16.gmra.mrb[0].mxu0 %v2213
    %v2249 = vpop.f32.mrb[0].mxu0
    %v2250 = vadd.f32 0.0, %v2249
    %v2251 = vpop.f32.mrb[0].mxu0
    %v2252 = vpop.f32.mrb[0].mxu0
    %v2253 = vpop.f32.mrb[0].mxu0
    %2254 = vdwg.mxu0
    %v2255 = vadd.f32 %v1998, %v2250
    %v2256 = vtanh.pop %v2255
    %v2257 = vxor.u32 %v2255, 2147483648
    %v2258 = vmul.f32 %v2257, 1.442695
    %v2259 = vpow.pop %v2258
    %v2260 = vadd.f32 %v2259, 1.0
    %v2261 = vrcp.pop %v2260
    %v2262 = vmul.f32 1.0, %v2261
    %v2263 = vsel %vm67, %v2256, %v2262
    %2264 = vrot.lane.b32.xlu0 %v2263, 64
    %v2265 = vpop.permute.xlu0 %2264
    %v2266 = vmul.f32 %v2263, %v2265
    %2267 = vrot.lane.b32.xlu0 %v2266, 32
    %v2268 = vpop.permute.xlu0 %2267
    %v2269 = vmul.f32 %v2263, %v2208
    %v2270 = vadd.f32 %v2269, %v2268
    %v2271 = vtanh.pop %v2270
    %v2272 = vmul.f32 %v2265, %v2271
    %v2273 = vpack.c.bf16 %v2272, %v2272
    %v2275 = vsel %vm189, %v2273, 0
    %2277 = vmatprep.subr.bf16.mxu0 0
    %2278 = vmatpush1.bf16.msra.mxu0 %v2025
    %2279 = vmatprep.subr.bf16.mxu0 0
    %2280 = vmatpush1.bf16.msra.mxu0 %v2026
    %2281 = vmatprep.subr.bf16.mxu0 0
    %2282 = vmatpush1.bf16.msra.mxu0 0
    %2283 = vmatprep.subr.bf16.mxu0 0
    %2284 = vmatpush1.bf16.msra.mxu0 0
    %2285 = vmatprep.subr.bf16.mxu0 0
    %2286 = vmatpush1.bf16.msra.mxu0 0
    %2287 = vmatprep.subr.bf16.mxu0 0
    %2288 = vmatpush1.bf16.msra.mxu0 0
    %2289 = vmatprep.subr.bf16.mxu0 0
    %2290 = vmatpush1.bf16.msra.mxu0 0
    %2291 = vmatprep.subr.bf16.mxu0 0
    %2292 = vmatpush1.bf16.msra.mxu0 0
    %2293 = vmatprep.subr.bf16.mxu0 0
    %2294 = vmatpush1.bf16.msra.mxu0 0
    %2295 = vmatprep.subr.bf16.mxu0 0
    %2296 = vmatpush1.bf16.msra.mxu0 0
    %2297 = vmatprep.subr.bf16.mxu0 0
    %2298 = vmatpush1.bf16.msra.mxu0 0
    %2299 = vmatprep.subr.bf16.mxu0 0
    %2300 = vmatpush1.bf16.msra.mxu0 0
    %2301 = vmatprep.subr.bf16.mxu0 0
    %2302 = vmatpush1.bf16.msra.mxu0 0
    %2303 = vmatprep.subr.bf16.mxu0 0
    %2304 = vmatpush1.bf16.msra.mxu0 0
    %2305 = vmatprep.subr.bf16.mxu0 0
    %2306 = vmatpush1.bf16.msra.mxu0 0
    %2307 = vmatprep.subr.bf16.mxu0 0
    %2308 = vmatpush1.bf16.msra.mxu0 0
    %2309 = vmatprep.mubr.bf16.mxu0 0
    %2310 = vmatmul.mubr.bf16.gmra.mrb[0].mxu0 %v2275
    %v2311 = vpop.f32.mrb[0].mxu0
    %v2312 = vadd.f32 0.0, %v2311
    %v2313 = vpop.f32.mrb[0].mxu0
    %v2314 = vpop.f32.mrb[0].mxu0
    %v2315 = vpop.f32.mrb[0].mxu0
    %2316 = vdwg.mxu0
    %v2317 = vadd.f32 %v2003, %v2312
    %v2318 = vtanh.pop %v2317
    %v2319 = vxor.u32 %v2317, 2147483648
    %v2320 = vmul.f32 %v2319, 1.442695
    %v2321 = vpow.pop %v2320
    %v2322 = vadd.f32 %v2321, 1.0
    %v2323 = vrcp.pop %v2322
    %v2324 = vmul.f32 1.0, %v2323
    %v2325 = vsel %vm67, %v2318, %v2324
    %2326 = vrot.lane.b32.xlu0 %v2325, 64
    %v2327 = vpop.permute.xlu0 %2326
    %v2328 = vmul.f32 %v2325, %v2327
    %2329 = vrot.lane.b32.xlu0 %v2328, 32
    %v2330 = vpop.permute.xlu0 %2329
    %v2331 = vmul.f32 %v2325, %v2270
    %v2332 = vadd.f32 %v2331, %v2330
    %v2333 = vtanh.pop %v2332
    %v2334 = vmul.f32 %v2327, %v2333
    %v2335 = vpack.c.bf16 %v2334, %v2334
    %v2337 = vsel %vm189, %v2335, 0
    %2339 = vmatprep.subr.bf16.mxu0 0
    %2340 = vmatpush1.bf16.msra.mxu0 %v2025
    %2341 = vmatprep.subr.bf16.mxu0 0
    %2342 = vmatpush1.bf16.msra.mxu0 %v2026
    %2343 = vmatprep.subr.bf16.mxu0 0
    %2344 = vmatpush1.bf16.msra.mxu0 0
    %2345 = vmatprep.subr.bf16.mxu0 0
    %2346 = vmatpush1.bf16.msra.mxu0 0
    %2347 = vmatprep.subr.bf16.mxu0 0
    %2348 = vmatpush1.bf16.msra.mxu0 0
    %2349 = vmatprep.subr.bf16.mxu0 0
    %2350 = vmatpush1.bf16.msra.mxu0 0
    %2351 = vmatprep.subr.bf16.mxu0 0
    %2352 = vmatpush1.bf16.msra.mxu0 0
    %2353 = vmatprep.subr.bf16.mxu0 0
    %2354 = vmatpush1.bf16.msra.mxu0 0
    %2355 = vmatprep.subr.bf16.mxu0 0
    %2356 = vmatpush1.bf16.msra.mxu0 0
    %2357 = vmatprep.subr.bf16.mxu0 0
    %2358 = vmatpush1.bf16.msra.mxu0 0
    %2359 = vmatprep.subr.bf16.mxu0 0
    %2360 = vmatpush1.bf16.msra.mxu0 0
    %2361 = vmatprep.subr.bf16.mxu0 0
    %2362 = vmatpush1.bf16.msra.mxu0 0
    %2363 = vmatprep.subr.bf16.mxu0 0
    %2364 = vmatpush1.bf16.msra.mxu0 0
    %2365 = vmatprep.subr.bf16.mxu0 0
    %2366 = vmatpush1.bf16.msra.mxu0 0
    %2367 = vmatprep.subr.bf16.mxu0 0
    %2368 = vmatpush1.bf16.msra.mxu0 0
    %2369 = vmatprep.subr.bf16.mxu0 0
    %2370 = vmatpush1.bf16.msra.mxu0 0
    %2371 = vmatprep.mubr.bf16.mxu0 0
    %2372 = vmatmul.mubr.bf16.gmra.mrb[0].mxu0 %v2337
    %v2373 = vpop.f32.mrb[0].mxu0
    %v2374 = vadd.f32 0.0, %v2373
    %v2375 = vpop.f32.mrb[0].mxu0
    %v2376 = vpop.f32.mrb[0].mxu0
    %v2377 = vpop.f32.mrb[0].mxu0
    %2378 = vdwg.mxu0
    %v2379 = vadd.f32 %v2006, %v2374
    %v2380 = vtanh.pop %v2379
    %v2381 = vxor.u32 %v2379, 2147483648
    %v2382 = vmul.f32 %v2381, 1.442695
    %v2383 = vpow.pop %v2382
    %v2384 = vadd.f32 %v2383, 1.0
    %v2385 = vrcp.pop %v2384
    %v2386 = vmul.f32 1.0, %v2385
    %v2387 = vsel %vm67, %v2380, %v2386
    %2388 = vrot.lane.b32.xlu0 %v2387, 64
    %v2389 = vpop.permute.xlu0 %2388
    %v2390 = vmul.f32 %v2387, %v2389
    %2391 = vrot.lane.b32.xlu0 %v2390, 32
    %v2392 = vpop.permute.xlu0 %2391
    %v2393 = vmul.f32 %v2387, %v2332
    %v2394 = vadd.f32 %v2393, %v2392
    %v2395 = vtanh.pop %v2394
    %v2396 = vmul.f32 %v2389, %v2395
    %v2397 = vpack.c.bf16 %v2396, %v2396
    %v2399 = vsel %vm189, %v2397, 0
    %2401 = vmatprep.subr.bf16.mxu0 0
    %2402 = vmatpush1.bf16.msra.mxu0 %v2025
    %2403 = vmatprep.subr.bf16.mxu0 0
    %2404 = vmatpush1.bf16.msra.mxu0 %v2026
    %2405 = vmatprep.subr.bf16.mxu0 0
    %2406 = vmatpush1.bf16.msra.mxu0 0
    %2407 = vmatprep.subr.bf16.mxu0 0
    %2408 = vmatpush1.bf16.msra.mxu0 0
    %2409 = vmatprep.subr.bf16.mxu0 0
    %2410 = vmatpush1.bf16.msra.mxu0 0
    %2411 = vmatprep.subr.bf16.mxu0 0
    %2412 = vmatpush1.bf16.msra.mxu0 0
    %2413 = vmatprep.subr.bf16.mxu0 0
    %2414 = vmatpush1.bf16.msra.mxu0 0
    %2415 = vmatprep.subr.bf16.mxu0 0
    %2416 = vmatpush1.bf16.msra.mxu0 0
    %2417 = vmatprep.subr.bf16.mxu0 0
    %2418 = vmatpush1.bf16.msra.mxu0 0
    %2419 = vmatprep.subr.bf16.mxu0 0
    %2420 = vmatpush1.bf16.msra.mxu0 0
    %2421 = vmatprep.subr.bf16.mxu0 0
    %2422 = vmatpush1.bf16.msra.mxu0 0
    %2423 = vmatprep.subr.bf16.mxu0 0
    %2424 = vmatpush1.bf16.msra.mxu0 0
    %2425 = vmatprep.subr.bf16.mxu0 0
    %2426 = vmatpush1.bf16.msra.mxu0 0
    %2427 = vmatprep.subr.bf16.mxu0 0
    %2428 = vmatpush1.bf16.msra.mxu0 0
    %2429 = vmatprep.subr.bf16.mxu0 0
    %2430 = vmatpush1.bf16.msra.mxu0 0
    %2431 = vmatprep.subr.bf16.mxu0 0
    %2432 = vmatpush1.bf16.msra.mxu0 0
    %2433 = vmatprep.mubr.bf16.mxu0 0
    %2434 = vmatmul.mubr.bf16.gmra.mrb[0].mxu0 %v2399
    %v2435 = vpop.f32.mrb[0].mxu0
    %v2436 = vadd.f32 0.0, %v2435
    %v2437 = vpop.f32.mrb[0].mxu0
    %v2438 = vpop.f32.mrb[0].mxu0
    %v2439 = vpop.f32.mrb[0].mxu0
    %2440 = vdwg.mxu0
    %v2441 = vadd.f32 %v2011, %v2436
    %v2442 = vtanh.pop %v2441
    %v2443 = vxor.u32 %v2441, 2147483648
    %v2444 = vmul.f32 %v2443, 1.442695
    %v2445 = vpow.pop %v2444
    %v2446 = vadd.f32 %v2445, 1.0
    %v2447 = vrcp.pop %v2446
    %v2448 = vmul.f32 1.0, %v2447
    %v2449 = vsel %vm67, %v2442, %v2448
    %2450 = vrot.lane.b32.xlu0 %v2449, 64
    %v2451 = vpop.permute.xlu0 %2450
    %v2452 = vmul.f32 %v2449, %v2451
    %2453 = vrot.lane.b32.xlu0 %v2452, 32
    %v2454 = vpop.permute.xlu0 %2453
    %v2455 = vmul.f32 %v2449, %v2394
    %v2456 = vadd.f32 %v2455, %v2454
    %v2457 = vtanh.pop %v2456
    %v2458 = vmul.f32 %v2451, %v2457
    %v2459 = vpack.c.bf16 %v2458, %v2458
    %v2461 = vsel %vm189, %v2459, 0
    %2463 = vmatprep.subr.bf16.mxu0 0
    %2464 = vmatpush1.bf16.msra.mxu0 %v2025
    %2465 = vmatprep.subr.bf16.mxu0 0
    %2466 = vmatpush1.bf16.msra.mxu0 %v2026
    %2467 = vmatprep.subr.bf16.mxu0 0
    %2468 = vmatpush1.bf16.msra.mxu0 0
    %2469 = vmatprep.subr.bf16.mxu0 0
    %2470 = vmatpush1.bf16.msra.mxu0 0
    %2471 = vmatprep.subr.bf16.mxu0 0
    %2472 = vmatpush1.bf16.msra.mxu0 0
    %2473 = vmatprep.subr.bf16.mxu0 0
    %2474 = vmatpush1.bf16.msra.mxu0 0
    %2475 = vmatprep.subr.bf16.mxu0 0
    %2476 = vmatpush1.bf16.msra.mxu0 0
    %2477 = vmatprep.subr.bf16.mxu0 0
    %2478 = vmatpush1.bf16.msra.mxu0 0
    %2479 = vmatprep.subr.bf16.mxu0 0
    %2480 = vmatpush1.bf16.msra.mxu0 0
    %2481 = vmatprep.subr.bf16.mxu0 0
    %2482 = vmatpush1.bf16.msra.mxu0 0
    %2483 = vmatprep.subr.bf16.mxu0 0
    %2484 = vmatpush1.bf16.msra.mxu0 0
    %2485 = vmatprep.subr.bf16.mxu0 0
    %2486 = vmatpush1.bf16.msra.mxu0 0
    %2487 = vmatprep.subr.bf16.mxu0 0
    %2488 = vmatpush1.bf16.msra.mxu0 0
    %2489 = vmatprep.subr.bf16.mxu0 0
    %2490 = vmatpush1.bf16.msra.mxu0 0
    %2491 = vmatprep.subr.bf16.mxu0 0
    %2492 = vmatpush1.bf16.msra.mxu0 0
    %2493 = vmatprep.subr.bf16.mxu0 0
    %2494 = vmatpush1.bf16.msra.mxu0 0
    %2495 = vmatprep.mubr.bf16.mxu0 0
    %2496 = vmatmul.mubr.bf16.gmra.mrb[0].mxu0 %v2461
    %v2497 = vpop.f32.mrb[0].mxu0
    %v2498 = vadd.f32 0.0, %v2497
    %v2499 = vpop.f32.mrb[0].mxu0
    %v2500 = vpop.f32.mrb[0].mxu0
    %v2501 = vpop.f32.mrb[0].mxu0
    %2502 = vdwg.mxu0
    %v2503 = vadd.f32 %v2014, %v2498
    %v2504 = vtanh.pop %v2503
    %v2505 = vxor.u32 %v2503, 2147483648
    %v2506 = vmul.f32 %v2505, 1.442695
    %v2507 = vpow.pop %v2506
    %v2508 = vadd.f32 %v2507, 1.0
    %v2509 = vrcp.pop %v2508
    %v2510 = vmul.f32 1.0, %v2509
    %v2511 = vsel %vm67, %v2504, %v2510
    %2512 = vrot.lane.b32.xlu0 %v2511, 64
    %v2513 = vpop.permute.xlu0 %2512
    %v2514 = vmul.f32 %v2511, %v2513
    %2515 = vrot.lane.b32.xlu0 %v2514, 32
    %v2516 = vpop.permute.xlu0 %2515
    %v2517 = vmul.f32 %v2511, %v2456
    %v2518 = vadd.f32 %v2517, %v2516
    %v2519 = vtanh.pop %v2518
    %v2520 = vmul.f32 %v2513, %v2519
    %v2521 = vpack.c.bf16 %v2520, %v2520
    %v2522 = vld [vmem:[%s13] sm:$0xf]
    %v2523 = vld [vmem:[%s13 + $0x4] sm:$0xf]
    %v2524 = vld [vmem:[%s13 + $0x8] sm:$0xf]
    %v2525 = vld [vmem:[%s13 + $0xc] sm:$0xf]
    %v2526 = vld [vmem:[%s14] sm:$0x1]
    %v2528 = vlaneseq
    %v2529 = vshrl.u32 %v2528, 7
    %v2530 = vsub.s32 0, %v2529
    %v2531 = vrot.slane %v2526, %v2530
    %v2537 = vunpack.c.l.b16 %v2522
    %v2538 = vunpack.c.l.b16 %v2523
    %v2539 = vunpack.c.l.b16 %v2524
    %v2540 = vunpack.c.l.b16 %v2525
    %v2541 = vpack.c.b16 %v2538, %v2537
    %v2542 = vpack.c.b16 %v2540, %v2539
    %v2546 = vsel %vm189, %v2521, 0
    %2548 = vmatprep.subr.bf16.mxu0 0
    %2549 = vmatpush1.bf16.msra.mxu0 %v2541
    %2550 = vmatprep.subr.bf16.mxu0 0
    %2551 = vmatpush1.bf16.msra.mxu0 %v2542
    %2552 = vmatprep.subr.bf16.mxu0 0
    %2553 = vmatpush1.bf16.msra.mxu0 0
    %2554 = vmatprep.subr.bf16.mxu0 0
    %2555 = vmatpush1.bf16.msra.mxu0 0
    %2556 = vmatprep.subr.bf16.mxu0 0
    %2557 = vmatpush1.bf16.msra.mxu0 0
    %2558 = vmatprep.subr.bf16.mxu0 0
    %2559 = vmatpush1.bf16.msra.mxu0 0
    %2560 = vmatprep.subr.bf16.mxu0 0
    %2561 = vmatpush1.bf16.msra.mxu0 0
    %2562 = vmatprep.subr.bf16.mxu0 0
    %2563 = vmatpush1.bf16.msra.mxu0 0
    %2564 = vmatprep.subr.bf16.mxu0 0
    %2565 = vmatpush1.bf16.msra.mxu0 0
    %2566 = vmatprep.subr.bf16.mxu0 0
    %2567 = vmatpush1.bf16.msra.mxu0 0
    %2568 = vmatprep.subr.bf16.mxu0 0
    %2569 = vmatpush1.bf16.msra.mxu0 0
    %2570 = vmatprep.subr.bf16.mxu0 0
    %2571 = vmatpush1.bf16.msra.mxu0 0
    %2572 = vmatprep.subr.bf16.mxu0 0
    %2573 = vmatpush1.bf16.msra.mxu0 0
    %2574 = vmatprep.subr.bf16.mxu0 0
    %2575 = vmatpush1.bf16.msra.mxu0 0
    %2576 = vmatprep.subr.bf16.mxu0 0
    %2577 = vmatpush1.bf16.msra.mxu0 0
    %2578 = vmatprep.subr.bf16.mxu0 0
    %2579 = vmatpush1.bf16.msra.mxu0 0
    %2580 = vmatprep.mubr.bf16.mxu0 0
    %2581 = vmatmul.mubr.bf16.gmra.mrb[0].mxu0 %v2546
    %v2582 = vpop.f32.mrb[0].mxu0
    %v2583 = vadd.f32 %v2531, %v2582
    %v2584 = vpop.f32.mrb[0].mxu0
    %v2585 = vpop.f32.mrb[0].mxu0
    %v2586 = vpop.f32.mrb[0].mxu0
    %2587 = vdwg.mxu0
    %2588 = vst [vmem:[%s15] sm:$0xff] %v2583
    // Predicated region
    $region66: #{lstm_classifier_forward.1} parent=1 // pred_check
      _
    $region67: #{lstm_classifier_forward.1} parent=1 // pred_check_branch
      %2590 = sbr.rel (0) target = $region69
    $region68: #{lstm_classifier_forward.1} parent=1 // pred_region
      _
    $region69: #{lstm_classifier_forward.1} parent=1 // pred_fallthru
      _
    // Predicated region
    $region70: #{lstm_classifier_forward.1} parent=1 // pred_check
      _
    $region71: #{lstm_classifier_forward.1} parent=1 // pred_check_branch
      %2592 = sbr.rel (0) target = $region73
    $region72: #{lstm_classifier_forward.1} parent=1 // pred_region
      _
    $region73: #{lstm_classifier_forward.1} parent=1 // pred_fallthru
      _
    %2593 = vsyncpa [#allocation3], 1

</llo_original>
